<compile_context>
chip_gen: v6e
topology: v6e:2x2x1
jax: 0.10.0
libtpu: 0.0.40
codegen_flags: <defaults>
</compile_context>

<pallas_src>
import jax
import jax.numpy as jnp
from jax import lax
from jax.experimental import pallas as pl
from jax.experimental.pallas import tpu as pltpu


def _round_up(v, m):
    return (v + m - 1) // m * m


def dg_classifier_forward(x, params, *, t_hw=512, chunk_t=32):
    B, C, H, W = x.shape
    hidden = params["conv_w"].shape[0]
    ncls = params["cls_w"].shape[1]
    KH = KW = 3
    HW = H * W
    CK = C * KH * KW
    CK_in = CK + 1                      # +1 "ones" lane: conv bias folded into the matmul

    # --- padded, MXU/lane-aligned sizes ---
    B_BLK = 8
    # >= 2 batch blocks so the "parallel" grid axis can shard across v7x's two TCs.
    B_pad = max(_round_up(B, B_BLK), 2 * B_BLK)
    n_b = B_pad // B_BLK
    HID_pad = _round_up(hidden, 128)
    NCLS_pad = _round_up(ncls, 128)

    # HW tiling: per-grid-step tile T_HW (multiple of chunk_t), HW zero-padded up to a
    # multiple of it. Padded rows are all-zero *including the ones-lane*, so they add
    # exactly 0 to the pool (ReLU(0 @ W) = 0) -> divide by the true HW, no correction.
    CHUNK_T = _round_up(chunk_t, 8)
    T_HW = _round_up(max(CHUNK_T, min(t_hw, _round_up(HW, CHUNK_T))), CHUNK_T)
    HW_pad = _round_up(HW, T_HW)
    n_t = HW_pad // T_HW
    n_chunks = T_HW // CHUNK_T

    # ---- im2col glue (padding=1, stride=1, 'same'), bf16, UNPADDED CK ----
    # TODO(synk): fuse im2col fully in-kernel (9 shifted matmuls on a haloed NHWC tile)
    # to remove the 9x patch inflation entirely for large H, W.
    xb = x.astype(jnp.bfloat16)                                    # cast BEFORE the glue
    xp = jnp.pad(xb, ((0, 0), (0, 0), (1, 1), (1, 1)))
    cols = [xp[:, :, kh:kh + H, kw:kw + W] for kh in range(KH) for kw in range(KW)]
    patches = jnp.stack(cols, axis=2)                              # [B, C, 9, H, W]
    patches = patches.transpose(0, 3, 4, 1, 2).reshape(B, HW, CK)  # (c, kh, kw) ordering
    ones = jnp.ones((B, HW, 1), jnp.bfloat16)                      # bias lane (real rows only)
    patches = jnp.concatenate([patches, ones], axis=-1)            # [B, HW, CK_in]
    patches = jnp.pad(patches, ((0, B_pad - B), (0, HW_pad - HW), (0, 0)))

    # ---- weights: conv bias appended as an extra K row; bf16 MXU operands, f32 biases ----
    w_conv = params["conv_w"].reshape(hidden, CK).T                # [CK, hidden]
    w_conv = jnp.concatenate([w_conv, params["conv_b"][None, :]], axis=0)   # [CK_in, hidden]
    w_conv = jnp.pad(w_conv, ((0, 0), (0, HID_pad - hidden))).astype(jnp.bfloat16)
    w_mask = jnp.pad(params["mask_w"],
                     ((0, HID_pad - hidden), (0, HID_pad - hidden))).astype(jnp.bfloat16)
    b_mask = jnp.pad(params["mask_b"], (0, HID_pad - hidden)).reshape(1, HID_pad).astype(jnp.float32)
    w_cls = jnp.pad(params["cls_w"],
                    ((0, HID_pad - hidden), (0, NCLS_pad - ncls))).astype(jnp.bfloat16)
    b_cls = jnp.pad(params["cls_b"], (0, NCLS_pad - ncls)).reshape(1, NCLS_pad).astype(jnp.float32)

    inv_hw = 1.0 / float(HW)

    def fused_kernel(p_ref, wc_ref, wm_ref, bm_ref, wk_ref, bk_ref, o_ref, acc_ref):
        t = pl.program_id(1)

        @pl.when(t == 0)
        def _init():
            acc_ref[...] = jnp.zeros_like(acc_ref)

        bblk = p_ref.shape[0]
        hid = wc_ref.shape[1]

        # conv-as-matmul + ReLU + pool partial-sum, chunked over T_HW so the f32
        # intermediate stays small; bias arrives via the folded ones-lane, so there is
        # no broadcast add. Partial sum is carried in registers, written once per step.
        def chunk_body(c, acc):
            start = pl.multiple_of(c * CHUNK_T, CHUNK_T)
            pc = p_ref[:, pl.ds(start, CHUNK_T), :]                 # [bblk, CHUNK_T, CK_in]
            y = jnp.dot(pc.reshape(bblk * CHUNK_T, CK_in), wc_ref[...],
                        preferred_element_type=jnp.float32)
            y = jnp.maximum(y, 0.0)                                 # ReLU (f32)
            return acc + jnp.sum(y.reshape(bblk, CHUNK_T, hid), axis=1)

        part = lax.fori_loop(0, n_chunks, chunk_body,
                             jnp.zeros((bblk, hid), jnp.float32), unroll=True)
        acc_ref[...] += part

        @pl.when(t == pl.num_programs(1) - 1)
        def _finalize():
            pooled = acc_ref[...] * inv_hw                          # [bblk, hid] f32
            # masker: gate = sigmoid(pooled @ Wm + bm); features = pooled * gate
            g = jnp.dot(pooled.astype(jnp.bfloat16), wm_ref[...],
                        preferred_element_type=jnp.float32) + bm_ref[...]
            gate = jax.nn.sigmoid(g)                                # f32 sigmoid (EUP)
            masked = pooled * gate
            # classifier
            o_ref[...] = jnp.dot(masked.astype(jnp.bfloat16), wk_ref[...],
                                 preferred_element_type=jnp.float32) + bk_ref[...]

    out = pl.pallas_call(
        fused_kernel,
        out_shape=jax.ShapeDtypeStruct((B_pad, NCLS_pad), jnp.float32),
        grid=(n_b, n_t),
        in_specs=[
            pl.BlockSpec((B_BLK, T_HW, CK_in), lambda i, t: (i, t, 0)),   # lean patch stream
            pl.BlockSpec((CK_in, HID_pad), lambda i, t: (0, 0)),          # conv W (+bias row)
            pl.BlockSpec((HID_pad, HID_pad), lambda i, t: (0, 0)),        # mask W (resident)
            pl.BlockSpec((1, HID_pad), lambda i, t: (0, 0)),              # mask b
            pl.BlockSpec((HID_pad, NCLS_pad), lambda i, t: (0, 0)),       # cls W (resident)
            pl.BlockSpec((1, NCLS_pad), lambda i, t: (0, 0)),             # cls b
        ],
        out_specs=pl.BlockSpec((B_BLK, NCLS_pad), lambda i, t: (i, 0)),
        scratch_shapes=[pltpu.VMEM((B_BLK, HID_pad), jnp.float32)],       # pool accumulator
        compiler_params=pltpu.CompilerParams(
            dimension_semantics=("parallel", "arbitrary"),
            vmem_limit_bytes=32 * 1024 * 1024),
    )(patches, w_conv, w_mask, b_mask, w_cls, b_cls)

    return out[:B, :ncls]


def reference_forward(x, params):
    """Pure-JAX f32 reference (matches the PyTorch forward)."""
    B, C, H, W = x.shape
    hidden = params["conv_w"].shape[0]
    xp = jnp.pad(x, ((0, 0), (0, 0), (1, 1), (1, 1)))
    cols = [xp[:, :, kh:kh + H, kw:kw + W] for kh in range(3) for kw in range(3)]
    patches = jnp.stack(cols, axis=2).transpose(0, 3, 4, 1, 2).reshape(B, H * W, C * 9)
    w = params["conv_w"].reshape(hidden, C * 9).T
    y = jnp.maximum(patches @ w + params["conv_b"], 0.0)
    f = y.mean(axis=1)
    gate = jax.nn.sigmoid(f @ params["mask_w"] + params["mask_b"])
    f = f * gate
    return f @ params["cls_w"] + params["cls_b"]


def init_params(key, C, hidden, ncls):
    k = jax.random.split(key, 6)
    s_conv = 1.0 / jnp.sqrt(C * 9.0)
    s_hid = 1.0 / jnp.sqrt(float(hidden))
    return {
        "conv_w": jax.random.normal(k[0], (hidden, C, 3, 3), jnp.float32) * s_conv,
        "conv_b": jax.random.normal(k[1], (hidden,), jnp.float32) * s_conv,
        "mask_w": jax.random.normal(k[2], (hidden, hidden), jnp.float32) * s_hid,
        "mask_b": jax.random.normal(k[3], (hidden,), jnp.float32) * s_hid,
        "cls_w": jax.random.normal(k[4], (hidden, ncls), jnp.float32) * s_hid,
        "cls_b": jax.random.normal(k[5], (ncls,), jnp.float32) * s_hid,
    }


if __name__ == "__main__":
    B, C, H, W = 2, 4, 16, 16
    hidden, ncls = 32, 8

    key = jax.random.PRNGKey(0)
    kx, kp = jax.random.split(key)
    x = jax.random.normal(kx, (B, C, H, W), jnp.float32)
    params = init_params(kp, C, hidden, ncls)

    scores = jax.jit(dg_classifier_forward)(x, params)
    jax.block_until_ready(scores)
    assert scores.shape == (B, ncls), scores.shape

    # bf16 MXU operands with f32 accumulation -> small numeric drift vs f32 ref.
    ref = reference_forward(x, params)
    max_err = float(jnp.max(jnp.abs(scores - ref)))
    assert jnp.allclose(scores, ref, atol=2e-2, rtol=2e-2), max_err

    print("KERNEL_OK")
</pallas_src>

<mosaic_0001>
module attributes {stable_mosaic.version = 11 : i64} {
  func.func @fused_kernel(%arg0: i32, %arg1: i32, %arg2: memref<8x256x37xbf16, #tpu.memory_space<vmem>>, %arg3: memref<37x128xbf16, #tpu.memory_space<vmem>>, %arg4: memref<128x128xbf16, #tpu.memory_space<vmem>>, %arg5: memref<1x128xf32, #tpu.memory_space<vmem>>, %arg6: memref<128x128xbf16, #tpu.memory_space<vmem>>, %arg7: memref<1x128xf32, #tpu.memory_space<vmem>>, %arg8: memref<8x128xf32, #tpu.memory_space<vmem>>, %arg9: memref<8x128xf32, #tpu.memory_space<vmem>>) attributes {dimension_semantics = [#tpu.dimension_semantics<parallel>, #tpu.dimension_semantics<arbitrary>], iteration_bounds = array<i64: 2, 1>, scalar_prefetch = 0 : i64, scratch_operands = 1 : i64, tpu.core_type = #tpu.core_type<tc>, window_params = [{transform_indices = @transform_0, window_bounds = array<i64: 8, 256, 37>}, {pipeline_mode = #tpu.pipeline_mode<synchronous>, transform_indices = @transform_1, window_bounds = array<i64: 37, 128>}, {pipeline_mode = #tpu.pipeline_mode<synchronous>, transform_indices = @transform_2, window_bounds = array<i64: 128, 128>}, {pipeline_mode = #tpu.pipeline_mode<synchronous>, transform_indices = @transform_3, window_bounds = array<i64: 1, 128>}, {pipeline_mode = #tpu.pipeline_mode<synchronous>, transform_indices = @transform_4, window_bounds = array<i64: 128, 128>}, {pipeline_mode = #tpu.pipeline_mode<synchronous>, transform_indices = @transform_5, window_bounds = array<i64: 1, 128>}, {transform_indices = @transform_6, window_bounds = array<i64: 8, 128>}]} {
    %c0_i32 = arith.constant 0 : i32
    %0 = arith.cmpi eq, %arg1, %c0_i32 : i32
    %1 = arith.extui %0 : i1 to i32
    %c0_i32_0 = arith.constant 0 : i32
    %2 = arith.cmpi ne, %1, %c0_i32_0 : i32
    scf.if %2 {
      %cst_70 = arith.constant 0.000000e+00 : f32
      %106 = vector.broadcast %cst_70 : f32 to vector<8x128xf32>
      %c0_71 = arith.constant 0 : index
      %c0_72 = arith.constant 0 : index
      %107 = vector.load %arg9[%c0_71, %c0_72] : memref<8x128xf32, #tpu.memory_space<vmem>>, vector<8x128xf32>
      tpu.vector_store %arg9[%c0_71, %c0_72], %106 {strides = array<i32>} : memref<8x128xf32, #tpu.memory_space<vmem>>, vector<8x128xf32>,
    } else {
    }
    %cst = arith.constant 0.000000e+00 : f32
    %3 = vector.broadcast %cst : f32 to vector<8x128xf32>
    %c0_i32_1 = arith.constant 0 : i32
    %c32_i32 = arith.constant 32 : i32
    %4 = arith.muli %c0_i32_1, %c32_i32 : i32
    %5 = tpu.assume_multiple %4, 32 : i32
    %c0 = arith.constant 0 : index
    %6 = arith.index_cast %5 : i32 to index
    %c0_2 = arith.constant 0 : index
    %7 = vector.load %arg2[%c0, %6, %c0_2] : memref<8x256x37xbf16, #tpu.memory_space<vmem>>, vector<8x32x37xbf16>
    %8 = vector.shape_cast %7 : vector<8x32x37xbf16> to vector<256x37xbf16>
    %c0_3 = arith.constant 0 : index
    %c0_4 = arith.constant 0 : index
    %9 = vector.load %arg3[%c0_3, %c0_4] : memref<37x128xbf16, #tpu.memory_space<vmem>>, vector<37x128xbf16>
    %cst_5 = arith.constant dense<0.000000e+00> : vector<256x128xf32>
    %10 = tpu.matmul %8, %9, %cst_5 {dimension_numbers = #tpu.dot_dimension_numbers<[1], [0], [0], [1], [0, 0, 1, 1], [], []>} : vector<256x37xbf16>, vector<37x128xbf16>, vector<256x128xf32> -> vector<256x128xf32>
    %cst_6 = arith.constant 0.000000e+00 : f32
    %11 = vector.broadcast %cst_6 : f32 to vector<256x128xf32>
    %12 = arith.maximumf %10, %11 : vector<256x128xf32>
    %13 = vector.shape_cast %12 : vector<256x128xf32> to vector<8x32x128xf32>
    %cst_7 = arith.constant dense<0.000000e+00> : vector<8x128xf32>
    %14 = vector.multi_reduction <add>, %13, %cst_7 [1] : vector<8x32x128xf32> to vector<8x128xf32>
    %15 = arith.addf %3, %14 : vector<8x128xf32>
    %c1_i32 = arith.constant 1 : i32
    %c32_i32_8 = arith.constant 32 : i32
    %16 = arith.muli %c1_i32, %c32_i32_8 : i32
    %17 = tpu.assume_multiple %16, 32 : i32
    %c0_9 = arith.constant 0 : index
    %18 = arith.index_cast %17 : i32 to index
    %c0_10 = arith.constant 0 : index
    %19 = vector.load %arg2[%c0_9, %18, %c0_10] : memref<8x256x37xbf16, #tpu.memory_space<vmem>>, vector<8x32x37xbf16>
    %20 = vector.shape_cast %19 : vector<8x32x37xbf16> to vector<256x37xbf16>
    %c0_11 = arith.constant 0 : index
    %c0_12 = arith.constant 0 : index
    %21 = vector.load %arg3[%c0_11, %c0_12] : memref<37x128xbf16, #tpu.memory_space<vmem>>, vector<37x128xbf16>
    %cst_13 = arith.constant dense<0.000000e+00> : vector<256x128xf32>
    %22 = tpu.matmul %20, %21, %cst_13 {dimension_numbers = #tpu.dot_dimension_numbers<[1], [0], [0], [1], [0, 0, 1, 1], [], []>} : vector<256x37xbf16>, vector<37x128xbf16>, vector<256x128xf32> -> vector<256x128xf32>
    %cst_14 = arith.constant 0.000000e+00 : f32
    %23 = vector.broadcast %cst_14 : f32 to vector<256x128xf32>
    %24 = arith.maximumf %22, %23 : vector<256x128xf32>
    %25 = vector.shape_cast %24 : vector<256x128xf32> to vector<8x32x128xf32>
    %cst_15 = arith.constant dense<0.000000e+00> : vector<8x128xf32>
    %26 = vector.multi_reduction <add>, %25, %cst_15 [1] : vector<8x32x128xf32> to vector<8x128xf32>
    %27 = arith.addf %15, %26 : vector<8x128xf32>
    %c2_i32 = arith.constant 2 : i32
    %c32_i32_16 = arith.constant 32 : i32
    %28 = arith.muli %c2_i32, %c32_i32_16 : i32
    %29 = tpu.assume_multiple %28, 32 : i32
    %c0_17 = arith.constant 0 : index
    %30 = arith.index_cast %29 : i32 to index
    %c0_18 = arith.constant 0 : index
    %31 = vector.load %arg2[%c0_17, %30, %c0_18] : memref<8x256x37xbf16, #tpu.memory_space<vmem>>, vector<8x32x37xbf16>
    %32 = vector.shape_cast %31 : vector<8x32x37xbf16> to vector<256x37xbf16>
    %c0_19 = arith.constant 0 : index
    %c0_20 = arith.constant 0 : index
    %33 = vector.load %arg3[%c0_19, %c0_20] : memref<37x128xbf16, #tpu.memory_space<vmem>>, vector<37x128xbf16>
    %cst_21 = arith.constant dense<0.000000e+00> : vector<256x128xf32>
    %34 = tpu.matmul %32, %33, %cst_21 {dimension_numbers = #tpu.dot_dimension_numbers<[1], [0], [0], [1], [0, 0, 1, 1], [], []>} : vector<256x37xbf16>, vector<37x128xbf16>, vector<256x128xf32> -> vector<256x128xf32>
    %cst_22 = arith.constant 0.000000e+00 : f32
    %35 = vector.broadcast %cst_22 : f32 to vector<256x128xf32>
    %36 = arith.maximumf %34, %35 : vector<256x128xf32>
    %37 = vector.shape_cast %36 : vector<256x128xf32> to vector<8x32x128xf32>
    %cst_23 = arith.constant dense<0.000000e+00> : vector<8x128xf32>
    %38 = vector.multi_reduction <add>, %37, %cst_23 [1] : vector<8x32x128xf32> to vector<8x128xf32>
    %39 = arith.addf %27, %38 : vector<8x128xf32>
    %c3_i32 = arith.constant 3 : i32
    %c32_i32_24 = arith.constant 32 : i32
    %40 = arith.muli %c3_i32, %c32_i32_24 : i32
    %41 = tpu.assume_multiple %40, 32 : i32
    %c0_25 = arith.constant 0 : index
    %42 = arith.index_cast %41 : i32 to index
    %c0_26 = arith.constant 0 : index
    %43 = vector.load %arg2[%c0_25, %42, %c0_26] : memref<8x256x37xbf16, #tpu.memory_space<vmem>>, vector<8x32x37xbf16>
    %44 = vector.shape_cast %43 : vector<8x32x37xbf16> to vector<256x37xbf16>
    %c0_27 = arith.constant 0 : index
    %c0_28 = arith.constant 0 : index
    %45 = vector.load %arg3[%c0_27, %c0_28] : memref<37x128xbf16, #tpu.memory_space<vmem>>, vector<37x128xbf16>
    %cst_29 = arith.constant dense<0.000000e+00> : vector<256x128xf32>
    %46 = tpu.matmul %44, %45, %cst_29 {dimension_numbers = #tpu.dot_dimension_numbers<[1], [0], [0], [1], [0, 0, 1, 1], [], []>} : vector<256x37xbf16>, vector<37x128xbf16>, vector<256x128xf32> -> vector<256x128xf32>
    %cst_30 = arith.constant 0.000000e+00 : f32
    %47 = vector.broadcast %cst_30 : f32 to vector<256x128xf32>
    %48 = arith.maximumf %46, %47 : vector<256x128xf32>
    %49 = vector.shape_cast %48 : vector<256x128xf32> to vector<8x32x128xf32>
    %cst_31 = arith.constant dense<0.000000e+00> : vector<8x128xf32>
    %50 = vector.multi_reduction <add>, %49, %cst_31 [1] : vector<8x32x128xf32> to vector<8x128xf32>
    %51 = arith.addf %39, %50 : vector<8x128xf32>
    %c4_i32 = arith.constant 4 : i32
    %c32_i32_32 = arith.constant 32 : i32
    %52 = arith.muli %c4_i32, %c32_i32_32 : i32
    %53 = tpu.assume_multiple %52, 32 : i32
    %c0_33 = arith.constant 0 : index
    %54 = arith.index_cast %53 : i32 to index
    %c0_34 = arith.constant 0 : index
    %55 = vector.load %arg2[%c0_33, %54, %c0_34] : memref<8x256x37xbf16, #tpu.memory_space<vmem>>, vector<8x32x37xbf16>
    %56 = vector.shape_cast %55 : vector<8x32x37xbf16> to vector<256x37xbf16>
    %c0_35 = arith.constant 0 : index
    %c0_36 = arith.constant 0 : index
    %57 = vector.load %arg3[%c0_35, %c0_36] : memref<37x128xbf16, #tpu.memory_space<vmem>>, vector<37x128xbf16>
    %cst_37 = arith.constant dense<0.000000e+00> : vector<256x128xf32>
    %58 = tpu.matmul %56, %57, %cst_37 {dimension_numbers = #tpu.dot_dimension_numbers<[1], [0], [0], [1], [0, 0, 1, 1], [], []>} : vector<256x37xbf16>, vector<37x128xbf16>, vector<256x128xf32> -> vector<256x128xf32>
    %cst_38 = arith.constant 0.000000e+00 : f32
    %59 = vector.broadcast %cst_38 : f32 to vector<256x128xf32>
    %60 = arith.maximumf %58, %59 : vector<256x128xf32>
    %61 = vector.shape_cast %60 : vector<256x128xf32> to vector<8x32x128xf32>
    %cst_39 = arith.constant dense<0.000000e+00> : vector<8x128xf32>
    %62 = vector.multi_reduction <add>, %61, %cst_39 [1] : vector<8x32x128xf32> to vector<8x128xf32>
    %63 = arith.addf %51, %62 : vector<8x128xf32>
    %c5_i32 = arith.constant 5 : i32
    %c32_i32_40 = arith.constant 32 : i32
    %64 = arith.muli %c5_i32, %c32_i32_40 : i32
    %65 = tpu.assume_multiple %64, 32 : i32
    %c0_41 = arith.constant 0 : index
    %66 = arith.index_cast %65 : i32 to index
    %c0_42 = arith.constant 0 : index
    %67 = vector.load %arg2[%c0_41, %66, %c0_42] : memref<8x256x37xbf16, #tpu.memory_space<vmem>>, vector<8x32x37xbf16>
    %68 = vector.shape_cast %67 : vector<8x32x37xbf16> to vector<256x37xbf16>
    %c0_43 = arith.constant 0 : index
    %c0_44 = arith.constant 0 : index
    %69 = vector.load %arg3[%c0_43, %c0_44] : memref<37x128xbf16, #tpu.memory_space<vmem>>, vector<37x128xbf16>
    %cst_45 = arith.constant dense<0.000000e+00> : vector<256x128xf32>
    %70 = tpu.matmul %68, %69, %cst_45 {dimension_numbers = #tpu.dot_dimension_numbers<[1], [0], [0], [1], [0, 0, 1, 1], [], []>} : vector<256x37xbf16>, vector<37x128xbf16>, vector<256x128xf32> -> vector<256x128xf32>
    %cst_46 = arith.constant 0.000000e+00 : f32
    %71 = vector.broadcast %cst_46 : f32 to vector<256x128xf32>
    %72 = arith.maximumf %70, %71 : vector<256x128xf32>
    %73 = vector.shape_cast %72 : vector<256x128xf32> to vector<8x32x128xf32>
    %cst_47 = arith.constant dense<0.000000e+00> : vector<8x128xf32>
    %74 = vector.multi_reduction <add>, %73, %cst_47 [1] : vector<8x32x128xf32> to vector<8x128xf32>
    %75 = arith.addf %63, %74 : vector<8x128xf32>
    %c6_i32 = arith.constant 6 : i32
    %c32_i32_48 = arith.constant 32 : i32
    %76 = arith.muli %c6_i32, %c32_i32_48 : i32
    %77 = tpu.assume_multiple %76, 32 : i32
    %c0_49 = arith.constant 0 : index
    %78 = arith.index_cast %77 : i32 to index
    %c0_50 = arith.constant 0 : index
    %79 = vector.load %arg2[%c0_49, %78, %c0_50] : memref<8x256x37xbf16, #tpu.memory_space<vmem>>, vector<8x32x37xbf16>
    %80 = vector.shape_cast %79 : vector<8x32x37xbf16> to vector<256x37xbf16>
    %c0_51 = arith.constant 0 : index
    %c0_52 = arith.constant 0 : index
    %81 = vector.load %arg3[%c0_51, %c0_52] : memref<37x128xbf16, #tpu.memory_space<vmem>>, vector<37x128xbf16>
    %cst_53 = arith.constant dense<0.000000e+00> : vector<256x128xf32>
    %82 = tpu.matmul %80, %81, %cst_53 {dimension_numbers = #tpu.dot_dimension_numbers<[1], [0], [0], [1], [0, 0, 1, 1], [], []>} : vector<256x37xbf16>, vector<37x128xbf16>, vector<256x128xf32> -> vector<256x128xf32>
    %cst_54 = arith.constant 0.000000e+00 : f32
    %83 = vector.broadcast %cst_54 : f32 to vector<256x128xf32>
    %84 = arith.maximumf %82, %83 : vector<256x128xf32>
    %85 = vector.shape_cast %84 : vector<256x128xf32> to vector<8x32x128xf32>
    %cst_55 = arith.constant dense<0.000000e+00> : vector<8x128xf32>
    %86 = vector.multi_reduction <add>, %85, %cst_55 [1] : vector<8x32x128xf32> to vector<8x128xf32>
    %87 = arith.addf %75, %86 : vector<8x128xf32>
    %c7_i32 = arith.constant 7 : i32
    %c32_i32_56 = arith.constant 32 : i32
    %88 = arith.muli %c7_i32, %c32_i32_56 : i32
    %89 = tpu.assume_multiple %88, 32 : i32
    %c0_57 = arith.constant 0 : index
    %90 = arith.index_cast %89 : i32 to index
    %c0_58 = arith.constant 0 : index
    %91 = vector.load %arg2[%c0_57, %90, %c0_58] : memref<8x256x37xbf16, #tpu.memory_space<vmem>>, vector<8x32x37xbf16>
    %92 = vector.shape_cast %91 : vector<8x32x37xbf16> to vector<256x37xbf16>
    %c0_59 = arith.constant 0 : index
    %c0_60 = arith.constant 0 : index
    %93 = vector.load %arg3[%c0_59, %c0_60] : memref<37x128xbf16, #tpu.memory_space<vmem>>, vector<37x128xbf16>
    %cst_61 = arith.constant dense<0.000000e+00> : vector<256x128xf32>
    %94 = tpu.matmul %92, %93, %cst_61 {dimension_numbers = #tpu.dot_dimension_numbers<[1], [0], [0], [1], [0, 0, 1, 1], [], []>} : vector<256x37xbf16>, vector<37x128xbf16>, vector<256x128xf32> -> vector<256x128xf32>
    %cst_62 = arith.constant 0.000000e+00 : f32
    %95 = vector.broadcast %cst_62 : f32 to vector<256x128xf32>
    %96 = arith.maximumf %94, %95 : vector<256x128xf32>
    %97 = vector.shape_cast %96 : vector<256x128xf32> to vector<8x32x128xf32>
    %cst_63 = arith.constant dense<0.000000e+00> : vector<8x128xf32>
    %98 = vector.multi_reduction <add>, %97, %cst_63 [1] : vector<8x32x128xf32> to vector<8x128xf32>
    %99 = arith.addf %87, %98 : vector<8x128xf32>
    %c8_i32 = arith.constant 8 : i32
    %c0_64 = arith.constant 0 : index
    %c0_65 = arith.constant 0 : index
    %100 = vector.load %arg9[%c0_64, %c0_65] : memref<8x128xf32, #tpu.memory_space<vmem>>, vector<8x128xf32>
    %101 = arith.addf %100, %99 : vector<8x128xf32>
    %c0_66 = arith.constant 0 : index
    %c0_67 = arith.constant 0 : index
    %102 = vector.load %arg9[%c0_66, %c0_67] : memref<8x128xf32, #tpu.memory_space<vmem>>, vector<8x128xf32>
    tpu.vector_store %arg9[%c0_66, %c0_67], %101 {strides = array<i32>} : memref<8x128xf32, #tpu.memory_space<vmem>>, vector<8x128xf32>,
    %c0_i32_68 = arith.constant 0 : i32
    %103 = arith.cmpi eq, %arg1, %c0_i32_68 : i32
    %104 = arith.extui %103 : i1 to i32
    %c0_i32_69 = arith.constant 0 : i32
    %105 = arith.cmpi ne, %104, %c0_i32_69 : i32
    scf.if %105 {
      %c0_70 = arith.constant 0 : index
      %c0_71 = arith.constant 0 : index
      %106 = vector.load %arg9[%c0_70, %c0_71] : memref<8x128xf32, #tpu.memory_space<vmem>>, vector<8x128xf32>
      %cst_72 = arith.constant 3.906250e-03 : f32
      %107 = vector.broadcast %cst_72 : f32 to vector<8x128xf32>
      %108 = arith.mulf %106, %107 : vector<8x128xf32>
      %109 = arith.truncf %108 : vector<8x128xf32> to vector<8x128xbf16>
      %c0_73 = arith.constant 0 : index
      %c0_74 = arith.constant 0 : index
      %110 = vector.load %arg4[%c0_73, %c0_74] : memref<128x128xbf16, #tpu.memory_space<vmem>>, vector<128x128xbf16>
      %cst_75 = arith.constant dense<0.000000e+00> : vector<8x128xf32>
      %111 = tpu.matmul %109, %110, %cst_75 {dimension_numbers = #tpu.dot_dimension_numbers<[1], [0], [0], [1], [0, 0, 1, 1], [], []>} : vector<8x128xbf16>, vector<128x128xbf16>, vector<8x128xf32> -> vector<8x128xf32>
      %c0_76 = arith.constant 0 : index
      %c0_77 = arith.constant 0 : index
      %112 = vector.load %arg5[%c0_76, %c0_77] : memref<1x128xf32, #tpu.memory_space<vmem>>, vector<1x128xf32>
      %113 = vector.broadcast %112 : vector<1x128xf32> to vector<8x128xf32>
      %114 = arith.addf %111, %113 : vector<8x128xf32>
      %115 = arith.negf %114 : vector<8x128xf32>
      %116 = math.exp %115 : vector<8x128xf32>
      %cst_78 = arith.constant 1.000000e+00 : f32
      %117 = vector.broadcast %cst_78 : f32 to vector<8x128xf32>
      %118 = arith.addf %117, %116 : vector<8x128xf32>
      %119 = arith.divf %117, %118 : vector<8x128xf32>
      %120 = arith.mulf %108, %119 : vector<8x128xf32>
      %121 = arith.truncf %120 : vector<8x128xf32> to vector<8x128xbf16>
      %c0_79 = arith.constant 0 : index
      %c0_80 = arith.constant 0 : index
      %122 = vector.load %arg6[%c0_79, %c0_80] : memref<128x128xbf16, #tpu.memory_space<vmem>>, vector<128x128xbf16>
      %cst_81 = arith.constant dense<0.000000e+00> : vector<8x128xf32>
      %123 = tpu.matmul %121, %122, %cst_81 {dimension_numbers = #tpu.dot_dimension_numbers<[1], [0], [0], [1], [0, 0, 1, 1], [], []>} : vector<8x128xbf16>, vector<128x128xbf16>, vector<8x128xf32> -> vector<8x128xf32>
      %c0_82 = arith.constant 0 : index
      %c0_83 = arith.constant 0 : index
      %124 = vector.load %arg7[%c0_82, %c0_83] : memref<1x128xf32, #tpu.memory_space<vmem>>, vector<1x128xf32>
      %125 = vector.broadcast %124 : vector<1x128xf32> to vector<8x128xf32>
      %126 = arith.addf %123, %125 : vector<8x128xf32>
      %c0_84 = arith.constant 0 : index
      %c0_85 = arith.constant 0 : index
      %127 = vector.load %arg8[%c0_84, %c0_85] : memref<8x128xf32, #tpu.memory_space<vmem>>, vector<8x128xf32>
      tpu.vector_store %arg8[%c0_84, %c0_85], %126 {strides = array<i32>} : memref<8x128xf32, #tpu.memory_space<vmem>>, vector<8x128xf32>,
    } else {
    }
    return
  }
  func.func @transform_0(%arg0: i32, %arg1: i32) -> (i32, i32, i32) {
    %c0_i32 = arith.constant 0 : i32
    %c0_i32_0 = arith.constant 0 : i32
    return %arg0, %arg1, %c0_i32 : i32, i32, i32
  }
  func.func @transform_1(%arg0: i32, %arg1: i32) -> (i32, i32) {
    %c0_i32 = arith.constant 0 : i32
    %c0_i32_0 = arith.constant 0 : i32
    %c0_i32_1 = arith.constant 0 : i32
    return %c0_i32, %c0_i32_0 : i32, i32
  }
  func.func @transform_2(%arg0: i32, %arg1: i32) -> (i32, i32) {
    %c0_i32 = arith.constant 0 : i32
    %c0_i32_0 = arith.constant 0 : i32
    %c0_i32_1 = arith.constant 0 : i32
    return %c0_i32, %c0_i32_0 : i32, i32
  }
  func.func @transform_3(%arg0: i32, %arg1: i32) -> (i32, i32) {
    %c0_i32 = arith.constant 0 : i32
    %c0_i32_0 = arith.constant 0 : i32
    %c0_i32_1 = arith.constant 0 : i32
    return %c0_i32, %c0_i32_0 : i32, i32
  }
  func.func @transform_4(%arg0: i32, %arg1: i32) -> (i32, i32) {
    %c0_i32 = arith.constant 0 : i32
    %c0_i32_0 = arith.constant 0 : i32
    %c0_i32_1 = arith.constant 0 : i32
    return %c0_i32, %c0_i32_0 : i32, i32
  }
  func.func @transform_5(%arg0: i32, %arg1: i32) -> (i32, i32) {
    %c0_i32 = arith.constant 0 : i32
    %c0_i32_0 = arith.constant 0 : i32
    %c0_i32_1 = arith.constant 0 : i32
    return %c0_i32, %c0_i32_0 : i32, i32
  }
  func.func @transform_6(%arg0: i32, %arg1: i32) -> (i32, i32) {
    %c0_i32 = arith.constant 0 : i32
    %c0_i32_0 = arith.constant 0 : i32
    return %arg0, %c0_i32 : i32, i32
  }
}

</mosaic_0001>

<llo_original>
// kernel: dg_classifier_forward.1
$region0: #{dg_classifier_forward.1}
  #allocation0 [shape = 'u32[]', space=smem, size = 0x4, offset = 0x4, fixed_abs, tag = 'smem constant byte address 0x4 - core index']
  #allocation1 [shape = 'u32[144,128]{1,0:T(1,128)}', space=vmem, size = 0x12000, scoped, tag = 'internal scratch']
  #allocation2 [shape = 'f32[8,128]{1,0:T(8,128)}', space=vmem, size = 0x1000, scoped, tag = 'scratch operand']
  %s0 = inlined_call_operand.vmem [shape: bf16[16,256,37], index: 0, kind: input, shape index: {}]
  %s1 = inlined_call_operand.vmem [shape: bf16[37,128], index: 1, kind: input, shape index: {}]
  %s2 = inlined_call_operand.vmem [shape: bf16[128,128], index: 2, kind: input, shape index: {}]
  %s3 = inlined_call_operand.vmem [shape: f32[1,128], index: 3, kind: input, shape index: {}]
  %s4 = inlined_call_operand.vmem [shape: bf16[128,128], index: 4, kind: input, shape index: {}]
  %s5 = inlined_call_operand.vmem [shape: f32[1,128], index: 5, kind: input, shape index: {}]
  %s6 = inlined_call_operand.vmem [shape: f32[16,128], index: 6, kind: output, shape index: {}]
  %s7 = sld [smem:[#allocation0]]
  $region65: #{dg_classifier_forward.1} parent=0
    _
  %s9 = ssub.s32 1, %s7
  %s10 = scalar_select 0, %s9, %s7
  loop: start=0, step=1, limit=4
  $region2: #{dg_classifier_forward.1} parent=0 // loop_pre_header
    _
  $region3: #{dg_classifier_forward.1} parent=0 // loop_header
    %s12 = sphi 0, %s16
    %p13 = scmp.ge.s32.totalorder %s12, 4
    %s19 = sphi 0, %s31
    %s20 = sphi 0, %s27
    %s21 = sphi 0, %s19
    %s22 = sphi 0, %s20
    %s23 = sphi 0, %s21
    %s24 = sphi 0, %s22
    %s36 = sphi 0, %s38
    %s39 = sphi 0, %s36
    %s40 = sphi 0, %s39
    %s56 = sphi 0, %s40
    %s60 = sphi 0, %s60
    %s62 = sphi 0, %s60
    %s63 = sphi 0, %s62
    %s77 = sphi 0, %s63
    %s81 = sphi 0, %s81
    %s83 = sphi 0, %s81
    %s84 = sphi 0, %s83
    %s98 = sphi 0, %s84
    %s102 = sphi 0, %s102
    %s104 = sphi 0, %s102
    %s105 = sphi 0, %s104
    %s119 = sphi 0, %s105
    %s123 = sphi 0, %s123
    %s125 = sphi 0, %s123
    %s126 = sphi 0, %s125
    %s140 = sphi 0, %s126
    %s144 = sphi 0, %s144
    %s146 = sphi 0, %s144
    %s147 = sphi 0, %s146
    %s161 = sphi 0, %s147
    %s167 = sphi 0, %s169
    %s170 = sphi 0, %s167
    %s171 = sphi 0, %s170
    %s187 = sphi 0, %s171
  $region4: #{dg_classifier_forward.1} parent=0 // loop_header_branch
    %15 = sbr.rel (%p13) target = $region8
  $region5: #{dg_classifier_forward.1} parent=0 // loop_body
    %s17 = ssub.s32 %s12, 1
    %s18 = ssub.s32 %s12, 2
    %s25 = sadd.s32 1, %s20
    %p26 = scmp.ge.s32.totalorder %s25, 1
    %s27 = scalar_select %p26, 0, %s25
    %s28 = sadd.s32 1, %s19
    %s29 = scalar_select %p26, %s28, %s19
    %p30 = scmp.ge.s32.totalorder %s29, 2
    %s31 = scalar_select %p30, 0, %s29
    %s32 = ssub.s32 %s19, %s31
    %s33 = ssub.s32 %s20, %s27
    %s34 = sor.u32 %s32, %s33
    %p35 = scmp.eq.s32.totalorder %s34, 0
    %s37 = sadd.s32 %s36, 1
    %s38 = scalar_select %p35, %s36, %s37
    %p41 = pneg %p35
    %p42 = scmp.eq.s32.totalorder %s12, 1
    %p43 = por %p41, %p42
    %p44 = scmp.ne.s32.totalorder %s36, %s39
    %p45 = scmp.eq.s32.totalorder %s12, 0
    %p46 = por %p44, %p45
    %p47 = scmp.ne.s32.totalorder %s36, %s39
    %p48 = scmp.eq.s32.totalorder %s17, 1
    %p49 = por %p47, %p48
    %p50 = scmp.ne.s32.totalorder %s39, %s40
    %p51 = scmp.eq.s32.totalorder %s17, 0
    %p52 = por %p50, %p51
    %p53 = scmp.ne.s32.totalorder %s39, %s40
    %p54 = scmp.eq.s32.totalorder %s18, 1
    %p55 = por %p53, %p54
    %p57 = scmp.ne.s32.totalorder %s40, %s56
    %p58 = scmp.eq.s32.totalorder %s18, 0
    %p59 = por %p57, %p58
    %s61 = sadd.s32 %s60, 1
    %p64 = scmp.eq.s32.totalorder %s12, 1
    %p65 = scmp.ne.s32.totalorder %s60, %s62
    %p66 = scmp.eq.s32.totalorder %s12, 0
    %p67 = por %p65, %p66
    %p68 = scmp.ne.s32.totalorder %s60, %s62
    %p69 = scmp.eq.s32.totalorder %s17, 1
    %p70 = por %p68, %p69
    %p71 = scmp.ne.s32.totalorder %s62, %s63
    %p72 = scmp.eq.s32.totalorder %s17, 0
    %p73 = por %p71, %p72
    %p74 = scmp.ne.s32.totalorder %s62, %s63
    %p75 = scmp.eq.s32.totalorder %s18, 1
    %p76 = por %p74, %p75
    %p78 = scmp.ne.s32.totalorder %s63, %s77
    %p79 = scmp.eq.s32.totalorder %s18, 0
    %p80 = por %p78, %p79
    %s82 = sadd.s32 %s81, 1
    %p85 = scmp.eq.s32.totalorder %s12, 1
    %p86 = scmp.ne.s32.totalorder %s81, %s83
    %p87 = scmp.eq.s32.totalorder %s12, 0
    %p88 = por %p86, %p87
    %p89 = scmp.ne.s32.totalorder %s81, %s83
    %p90 = scmp.eq.s32.totalorder %s17, 1
    %p91 = por %p89, %p90
    %p92 = scmp.ne.s32.totalorder %s83, %s84
    %p93 = scmp.eq.s32.totalorder %s17, 0
    %p94 = por %p92, %p93
    %p95 = scmp.ne.s32.totalorder %s83, %s84
    %p96 = scmp.eq.s32.totalorder %s18, 1
    %p97 = por %p95, %p96
    %p99 = scmp.ne.s32.totalorder %s84, %s98
    %p100 = scmp.eq.s32.totalorder %s18, 0
    %p101 = por %p99, %p100
    %s103 = sadd.s32 %s102, 1
    %p106 = scmp.eq.s32.totalorder %s12, 1
    %p107 = scmp.ne.s32.totalorder %s102, %s104
    %p108 = scmp.eq.s32.totalorder %s12, 0
    %p109 = por %p107, %p108
    %p110 = scmp.ne.s32.totalorder %s102, %s104
    %p111 = scmp.eq.s32.totalorder %s17, 1
    %p112 = por %p110, %p111
    %p113 = scmp.ne.s32.totalorder %s104, %s105
    %p114 = scmp.eq.s32.totalorder %s17, 0
    %p115 = por %p113, %p114
    %p116 = scmp.ne.s32.totalorder %s104, %s105
    %p117 = scmp.eq.s32.totalorder %s18, 1
    %p118 = por %p116, %p117
    %p120 = scmp.ne.s32.totalorder %s105, %s119
    %p121 = scmp.eq.s32.totalorder %s18, 0
    %p122 = por %p120, %p121
    %s124 = sadd.s32 %s123, 1
    %p127 = scmp.eq.s32.totalorder %s12, 1
    %p128 = scmp.ne.s32.totalorder %s123, %s125
    %p129 = scmp.eq.s32.totalorder %s12, 0
    %p130 = por %p128, %p129
    %p131 = scmp.ne.s32.totalorder %s123, %s125
    %p132 = scmp.eq.s32.totalorder %s17, 1
    %p133 = por %p131, %p132
    %p134 = scmp.ne.s32.totalorder %s125, %s126
    %p135 = scmp.eq.s32.totalorder %s17, 0
    %p136 = por %p134, %p135
    %p137 = scmp.ne.s32.totalorder %s125, %s126
    %p138 = scmp.eq.s32.totalorder %s18, 1
    %p139 = por %p137, %p138
    %p141 = scmp.ne.s32.totalorder %s126, %s140
    %p142 = scmp.eq.s32.totalorder %s18, 0
    %p143 = por %p141, %p142
    %s145 = sadd.s32 %s144, 1
    %p148 = scmp.eq.s32.totalorder %s12, 1
    %p149 = scmp.ne.s32.totalorder %s144, %s146
    %p150 = scmp.eq.s32.totalorder %s12, 0
    %p151 = por %p149, %p150
    %p152 = scmp.ne.s32.totalorder %s144, %s146
    %p153 = scmp.eq.s32.totalorder %s17, 1
    %p154 = por %p152, %p153
    %p155 = scmp.ne.s32.totalorder %s146, %s147
    %p156 = scmp.eq.s32.totalorder %s17, 0
    %p157 = por %p155, %p156
    %p158 = scmp.ne.s32.totalorder %s146, %s147
    %p159 = scmp.eq.s32.totalorder %s18, 1
    %p160 = por %p158, %p159
    %p162 = scmp.ne.s32.totalorder %s147, %s161
    %p163 = scmp.eq.s32.totalorder %s18, 0
    %p164 = por %p162, %p163
    %s165 = ssub.s32 %s19, %s31
    %p166 = scmp.eq.s32.totalorder %s165, 0
    %s168 = sadd.s32 %s167, 1
    %s169 = scalar_select %p166, %s167, %s168
    %p172 = pneg %p166
    %p173 = scmp.eq.s32.totalorder %s12, 1
    %p174 = por %p172, %p173
    %p175 = scmp.ne.s32.totalorder %s167, %s170
    %p176 = scmp.eq.s32.totalorder %s12, 0
    %p177 = por %p175, %p176
    %p178 = scmp.ne.s32.totalorder %s167, %s170
    %p179 = scmp.eq.s32.totalorder %s17, 1
    %p180 = por %p178, %p179
    %p181 = scmp.ne.s32.totalorder %s170, %s171
    %p182 = scmp.eq.s32.totalorder %s17, 0
    %p183 = por %p181, %p182
    %p184 = scmp.ne.s32.totalorder %s170, %s171
    %p185 = scmp.eq.s32.totalorder %s18, 1
    %p186 = por %p184, %p185
    %p188 = scmp.ne.s32.totalorder %s171, %s187
    %p189 = scmp.eq.s32.totalorder %s18, 0
    %p190 = por %p188, %p189
    %p191 = scmp.le.s32.totalorder 1, %s12
    %p192 = scmp.lt.s32.totalorder %s12, 3
    %p193 = pnand %p191, %p192
    %p194 = pneg %p193
    // Predicated region
    $region9: #{dg_classifier_forward.1} parent=5 // pred_check
      _
    $region10: #{dg_classifier_forward.1} parent=5 // pred_check_branch
      %196 = sbr.rel (%p193) target = $region12
    $region11: #{dg_classifier_forward.1} parent=5 // pred_region
      %s197 = ssub.s32 %s12, 1
      // Predicated region
      $region13: #{dg_classifier_forward.1} parent=11 // pred_check
        %p198 = pneg %p73
      $region14: #{dg_classifier_forward.1} parent=11 // pred_check_branch
        %200 = sbr.rel (%p198) target = $region16
      $region15: #{dg_classifier_forward.1} parent=11 // pred_region
        _
      $region16: #{dg_classifier_forward.1} parent=11 // pred_fallthru
        _
      // Predicated region
      $region17: #{dg_classifier_forward.1} parent=11 // pred_check
        %p201 = pneg %p94
      $region18: #{dg_classifier_forward.1} parent=11 // pred_check_branch
        %203 = sbr.rel (%p201) target = $region20
      $region19: #{dg_classifier_forward.1} parent=11 // pred_region
        _
      $region20: #{dg_classifier_forward.1} parent=11 // pred_fallthru
        _
      // Predicated region
      $region21: #{dg_classifier_forward.1} parent=11 // pred_check
        %p204 = pneg %p115
      $region22: #{dg_classifier_forward.1} parent=11 // pred_check_branch
        %206 = sbr.rel (%p204) target = $region24
      $region23: #{dg_classifier_forward.1} parent=11 // pred_region
        _
      $region24: #{dg_classifier_forward.1} parent=11 // pred_fallthru
        _
      // Predicated region
      $region25: #{dg_classifier_forward.1} parent=11 // pred_check
        %p207 = pneg %p136
      $region26: #{dg_classifier_forward.1} parent=11 // pred_check_branch
        %209 = sbr.rel (%p207) target = $region28
      $region27: #{dg_classifier_forward.1} parent=11 // pred_region
        _
      $region28: #{dg_classifier_forward.1} parent=11 // pred_fallthru
        _
      // Predicated region
      $region29: #{dg_classifier_forward.1} parent=11 // pred_check
        %p210 = pneg %p157
      $region30: #{dg_classifier_forward.1} parent=11 // pred_check_branch
        %212 = sbr.rel (%p210) target = $region32
      $region31: #{dg_classifier_forward.1} parent=11 // pred_region
        _
      $region32: #{dg_classifier_forward.1} parent=11 // pred_fallthru
        _
    $region12: #{dg_classifier_forward.1} parent=5 // pred_fallthru
      _
    %p213 = scmp.lt.s32.totalorder %s12, 2
    // Predicated region
    $region33: #{dg_classifier_forward.1} parent=5 // pred_check
      %p214 = pneg %p213
    $region34: #{dg_classifier_forward.1} parent=5 // pred_check_branch
      %216 = sbr.rel (%p214) target = $region36
    $region35: #{dg_classifier_forward.1} parent=5 // pred_region
      // Predicated region
      $region37: #{dg_classifier_forward.1} parent=35 // pred_check
        %p217 = pneg %p46
      $region38: #{dg_classifier_forward.1} parent=35 // pred_check_branch
        %219 = sbr.rel (%p217) target = $region40
      $region39: #{dg_classifier_forward.1} parent=35 // pred_region
        %s220 = smul.u32 8, %s19
        %s221 = smul.u32 32, %s20
        %p222 = scmp.lt.s32.totalorder %s220, 15
        %s223 = scalar_select %p222, %s220, 15
        %p224 = scmp.lt.s32.totalorder %s221, 31
        %s225 = scalar_select %p224, %s221, 31
        %s226 = smul.addr %s223, 32
        %s227 = sadd.s32 %s225, %s226
        %s228 = smul.addr %s227, 4
        %s229 = scalar_lea.vmem %s0, %s228
        %s230 = smul.u32 8, %s19
        %s231 = smul.u32 32, %s20
      $region40: #{dg_classifier_forward.1} parent=35 // pred_fallthru
        _
    $region36: #{dg_classifier_forward.1} parent=5 // pred_fallthru
      _
    %p232 = scmp.le.s32.totalorder 1, %s12
    %p233 = scmp.lt.s32.totalorder %s12, 3
    %p234 = pnand %p232, %p233
    %p235 = pneg %p234
    // Predicated region
    $region41: #{dg_classifier_forward.1} parent=5 // pred_check
      _
    $region42: #{dg_classifier_forward.1} parent=5 // pred_check_branch
      %237 = sbr.rel (%p234) target = $region44
    $region43: #{dg_classifier_forward.1} parent=5 // pred_region
      %s238 = ssub.s32 %s12, 1
      %s239 = smul.u32 8, %s21
      %s240 = smul.u32 32, %s22
      %p241 = scmp.lt.s32.totalorder %s239, 15
      %s242 = scalar_select %p241, %s239, 15
      %p243 = scmp.lt.s32.totalorder %s240, 31
      %s244 = scalar_select %p243, %s240, 31
      %s245 = smul.addr %s242, 32
      %s246 = sadd.s32 %s244, %s245
      %s247 = smul.addr %s246, 4
      %s248 = scalar_lea.vmem %s0, %s247
      %p249 = pneg %p52
      %p250 = pneg %p49
      %p251 = pneg %p73
      %p252 = pneg %p70
      %p253 = pneg %p94
      %p254 = pneg %p91
      %p255 = pneg %p115
      %p256 = pneg %p112
      %p257 = pneg %p136
      %p258 = pneg %p133
      %p259 = pneg %p157
      %p260 = pneg %p154
      %p261 = pneg %p183
      %p262 = pneg %p180
      %p263 = scmp.lt.s32.totalorder %s21, 1
      %s264 = scalar_select %p263, %s21, 1
      %s265 = smul.addr %s264, 8
      %s266 = scalar_lea.vmem %s6, %s265
      %s267 = smul.u32 8, %s21
      %s268 = smul.u32 32, %s22
      %p269 = scmp.lt.s32.totalorder %s267, 15
      %s270 = scalar_select %p269, %s267, 15
      %p271 = scmp.lt.s32.totalorder %s268, 31
      %s272 = scalar_select %p271, %s268, 31
      %s273 = smul.addr %s270, 32
      %s274 = sadd.s32 %s272, %s273
      %s275 = smul.addr %s274, 4
      %s276 = scalar_lea.vmem %s0, %s275
      %s277 = smul.u32 8, %s21
      %s278 = smul.u32 32, %s22
      %p279 = scmp.lt.s32.totalorder %s21, 1
      %s280 = scalar_select %p279, %s21, 1
      %s281 = smul.addr %s280, 8
      %s282 = scalar_lea.vmem %s6, %s281
      %p284 = scmp.eq.s32.totalorder %s22, 0
      // Predicated region
      $region45: #{dg_classifier_forward.1} parent=43 // pred_check
        %p285 = pneg %p284
      $region46: #{dg_classifier_forward.1} parent=43 // pred_check_branch
        %287 = sbr.rel (%p285) target = $region48
      $region47: #{dg_classifier_forward.1} parent=43 // pred_region
        %288 = vst [vmem:[#allocation2] sm:$0xff] 0.0
      $region48: #{dg_classifier_forward.1} parent=43 // pred_fallthru
        _
      %v289 = vld [vmem:[%s276] sm:$0xf]
      %v290 = vld [vmem:[%s276 + $0x4] sm:$0xf]
      %v291 = vld [vmem:[%s276 + $0x8] sm:$0xf]
      %v292 = vld [vmem:[%s276 + $0xc] sm:$0xf]
      %v293 = vld [vmem:[%s276 + $0x80] sm:$0xf]
      %v294 = vld [vmem:[%s276 + $0x84] sm:$0xf]
      %v295 = vld [vmem:[%s276 + $0x88] sm:$0xf]
      %v296 = vld [vmem:[%s276 + $0x8c] sm:$0xf]
      %v297 = vld [vmem:[%s276 + $0x100] sm:$0xf]
      %v298 = vld [vmem:[%s276 + $0x104] sm:$0xf]
      %v299 = vld [vmem:[%s276 + $0x108] sm:$0xf]
      %v300 = vld [vmem:[%s276 + $0x10c] sm:$0xf]
      %v301 = vld [vmem:[%s276 + $0x180] sm:$0xf]
      %v302 = vld [vmem:[%s276 + $0x184] sm:$0xf]
      %v303 = vld [vmem:[%s276 + $0x188] sm:$0xf]
      %v304 = vld [vmem:[%s276 + $0x18c] sm:$0xf]
      %v305 = vld [vmem:[%s276 + $0x200] sm:$0xf]
      %v306 = vld [vmem:[%s276 + $0x204] sm:$0xf]
      %v307 = vld [vmem:[%s276 + $0x208] sm:$0xf]
      %v308 = vld [vmem:[%s276 + $0x20c] sm:$0xf]
      %v309 = vld [vmem:[%s276 + $0x280] sm:$0xf]
      %v310 = vld [vmem:[%s276 + $0x284] sm:$0xf]
      %v311 = vld [vmem:[%s276 + $0x288] sm:$0xf]
      %v312 = vld [vmem:[%s276 + $0x28c] sm:$0xf]
      %v313 = vld [vmem:[%s276 + $0x300] sm:$0xf]
      %v314 = vld [vmem:[%s276 + $0x304] sm:$0xf]
      %v315 = vld [vmem:[%s276 + $0x308] sm:$0xf]
      %v316 = vld [vmem:[%s276 + $0x30c] sm:$0xf]
      %v317 = vld [vmem:[%s276 + $0x380] sm:$0xf]
      %v318 = vld [vmem:[%s276 + $0x384] sm:$0xf]
      %v319 = vld [vmem:[%s276 + $0x388] sm:$0xf]
      %v320 = vld [vmem:[%s276 + $0x38c] sm:$0xf]
      %v321 = vld [vmem:[%s1] sm:$0xf]
      %v322 = vld [vmem:[%s1 + $0x4] sm:$0xf]
      %v323 = vld [vmem:[%s1 + $0x8] sm:$0xf]
      %v324 = vld [vmem:[%s1 + $0xc] sm:$0xf]
      %v325 = vld [vmem:[%s1 + $0x10] sm:$0x7]
      %v358 = vunpack.c.l.b16 %v289
      %v359 = vunpack.c.l.b16 %v290
      %v360 = vunpack.c.l.b16 %v291
      %v361 = vunpack.c.l.b16 %v292
      %v362 = vunpack.c.l.b16 %v293
      %v363 = vunpack.c.l.b16 %v294
      %v364 = vunpack.c.l.b16 %v295
      %v365 = vunpack.c.l.b16 %v296
      %v366 = vunpack.c.l.b16 %v297
      %v367 = vunpack.c.l.b16 %v298
      %v368 = vunpack.c.l.b16 %v299
      %v369 = vunpack.c.l.b16 %v300
      %v370 = vunpack.c.l.b16 %v301
      %v371 = vunpack.c.l.b16 %v302
      %v372 = vunpack.c.l.b16 %v303
      %v373 = vunpack.c.l.b16 %v304
      %v374 = vunpack.c.l.b16 %v305
      %v375 = vunpack.c.l.b16 %v306
      %v376 = vunpack.c.l.b16 %v307
      %v377 = vunpack.c.l.b16 %v308
      %v378 = vunpack.c.l.b16 %v309
      %v379 = vunpack.c.l.b16 %v310
      %v380 = vunpack.c.l.b16 %v311
      %v381 = vunpack.c.l.b16 %v312
      %v382 = vunpack.c.l.b16 %v313
      %v383 = vunpack.c.l.b16 %v314
      %v384 = vunpack.c.l.b16 %v315
      %v385 = vunpack.c.l.b16 %v316
      %v386 = vunpack.c.l.b16 %v317
      %v387 = vunpack.c.l.b16 %v318
      %v388 = vunpack.c.l.b16 %v319
      %v389 = vunpack.c.l.b16 %v320
      %v390 = vpack.c.b16 %v359, %v358
      %v391 = vpack.c.b16 %v361, %v360
      %v392 = vpack.c.b16 %v363, %v362
      %v393 = vpack.c.b16 %v365, %v364
      %v394 = vpack.c.b16 %v367, %v366
      %v395 = vpack.c.b16 %v369, %v368
      %v396 = vpack.c.b16 %v371, %v370
      %v397 = vpack.c.b16 %v373, %v372
      %v398 = vpack.c.b16 %v375, %v374
      %v399 = vpack.c.b16 %v377, %v376
      %v400 = vpack.c.b16 %v379, %v378
      %v401 = vpack.c.b16 %v381, %v380
      %v402 = vpack.c.b16 %v383, %v382
      %v403 = vpack.c.b16 %v385, %v384
      %v404 = vpack.c.b16 %v387, %v386
      %v405 = vpack.c.b16 %v389, %v388
      %v411 = vunpack.c.l.b16 %v321
      %v412 = vunpack.c.l.b16 %v322
      %v413 = vunpack.c.l.b16 %v323
      %v414 = vunpack.c.l.b16 %v324
      %v415 = vunpack.c.l.b16 %v325
      %v416 = vpack.c.b16 %v412, %v411
      %v417 = vpack.c.b16 %v414, %v413
      %v418 = vpack.c.b16 %v415, %v415
      %vm421 = vcmask 302080
      %v423 = vsel %vm421, %v390, 0
      %v426 = vsel %vm421, %v391, 0
      %v429 = vsel %vm421, %v392, 0
      %v432 = vsel %vm421, %v393, 0
      %v435 = vsel %vm421, %v394, 0
      %v438 = vsel %vm421, %v395, 0
      %v441 = vsel %vm421, %v396, 0
      %v444 = vsel %vm421, %v397, 0
      %v447 = vsel %vm421, %v398, 0
      %v450 = vsel %vm421, %v399, 0
      %v453 = vsel %vm421, %v400, 0
      %v456 = vsel %vm421, %v401, 0
      %v459 = vsel %vm421, %v402, 0
      %v462 = vsel %vm421, %v403, 0
      %v465 = vsel %vm421, %v404, 0
      %v468 = vsel %vm421, %v405, 0
      %vm470 = vcmask 1041408
      %vm471 = vcmask 1042432
      %v472 = vsel %vm470, 4294967295, 65535
      %v473 = vsel %vm471, %v472, 0
      %v475 = vand.u32 %v418, %v473
      %477 = vmatprep.subr.bf16.mxu0 0
      %478 = vmatpush1.bf16.msra.mxu0 0
      %479 = vmatprep.subr.bf16.mxu0 0
      %480 = vmatpush1.bf16.msra.mxu0 0
      %481 = vmatprep.subr.bf16.mxu0 0
      %482 = vmatpush1.bf16.msra.mxu0 0
      %483 = vmatprep.subr.bf16.mxu0 0
      %484 = vmatpush1.bf16.msra.mxu0 0
      %485 = vmatprep.subr.bf16.mxu0 0
      %486 = vmatpush1.bf16.msra.mxu0 0
      %487 = vmatprep.subr.bf16.mxu0 0
      %488 = vmatpush1.bf16.msra.mxu0 %v475
      %489 = vmatprep.subr.bf16.mxu0 0
      %490 = vmatpush1.bf16.msra.mxu0 %v417
      %491 = vmatprep.subr.bf16.mxu0 0
      %492 = vmatpush1.bf16.msra.mxu0 %v416
      %493 = vmatprep.subr.bf16.mxu0 0
      %494 = vmatpush2.bf16.msra.mxu0 0
      %495 = vmatprep.subr.bf16.mxu0 0
      %496 = vmatpush2.bf16.msra.mxu0 0
      %497 = vmatprep.subr.bf16.mxu0 0
      %498 = vmatpush2.bf16.msra.mxu0 0
      %499 = vmatprep.subr.bf16.mxu0 0
      %500 = vmatpush2.bf16.msra.mxu0 0
      %501 = vmatprep.subr.bf16.mxu0 0
      %502 = vmatpush2.bf16.msra.mxu0 0
      %503 = vmatprep.subr.bf16.mxu0 0
      %504 = vmatpush2.bf16.msra.mxu0 0
      %505 = vmatprep.subr.bf16.mxu0 0
      %506 = vmatpush2.bf16.msra.mxu0 0
      %507 = vmatprep.subr.bf16.mxu0 0
      %508 = vmatpush2.bf16.msra.mxu0 0
      %509 = vmatprep.mubr.bf16.mxu0 0
      %510 = vmatmul.mubr.bf16.gmra.mxu0 %v423
      %v511 = vpop.f32.mrf.mxu0
      %v512 = vadd.f32 0.0, %v511
      %v513 = vpop.f32.mrf.mxu0
      %v514 = vpop.f32.mrf.mxu0
      %v515 = vadd.f32 0.0, %v514
      %v516 = vpop.f32.mrf.mxu0
      %517 = vmatprep.mubr.bf16.mxu0 0
      %518 = vmatmul.mubr.bf16.gmra.mxu0 %v426
      %v519 = vpop.f32.mrf.mxu0
      %v520 = vadd.f32 0.0, %v519
      %v521 = vpop.f32.mrf.mxu0
      %v522 = vpop.f32.mrf.mxu0
      %v523 = vadd.f32 0.0, %v522
      %v524 = vpop.f32.mrf.mxu0
      %525 = vmatprep.mubr.bf16.mxu0 0
      %526 = vmatmul.mubr.bf16.gmra.mxu0 %v429
      %v527 = vpop.f32.mrf.mxu0
      %v528 = vadd.f32 0.0, %v527
      %v529 = vpop.f32.mrf.mxu0
      %v530 = vpop.f32.mrf.mxu0
      %v531 = vadd.f32 0.0, %v530
      %v532 = vpop.f32.mrf.mxu0
      %533 = vmatprep.mubr.bf16.mxu0 0
      %534 = vmatmul.mubr.bf16.gmra.mxu0 %v432
      %v535 = vpop.f32.mrf.mxu0
      %v536 = vadd.f32 0.0, %v535
      %v537 = vpop.f32.mrf.mxu0
      %v538 = vpop.f32.mrf.mxu0
      %v539 = vadd.f32 0.0, %v538
      %v540 = vpop.f32.mrf.mxu0
      %541 = vmatprep.mubr.bf16.mxu0 0
      %542 = vmatmul.mubr.bf16.gmra.mxu0 %v435
      %v543 = vpop.f32.mrf.mxu0
      %v544 = vadd.f32 0.0, %v543
      %v545 = vpop.f32.mrf.mxu0
      %v546 = vpop.f32.mrf.mxu0
      %v547 = vadd.f32 0.0, %v546
      %v548 = vpop.f32.mrf.mxu0
      %549 = vmatprep.mubr.bf16.mxu0 0
      %550 = vmatmul.mubr.bf16.gmra.mxu0 %v438
      %v551 = vpop.f32.mrf.mxu0
      %v552 = vadd.f32 0.0, %v551
      %v553 = vpop.f32.mrf.mxu0
      %v554 = vpop.f32.mrf.mxu0
      %v555 = vadd.f32 0.0, %v554
      %v556 = vpop.f32.mrf.mxu0
      %557 = vmatprep.mubr.bf16.mxu0 0
      %558 = vmatmul.mubr.bf16.gmra.mxu0 %v441
      %v559 = vpop.f32.mrf.mxu0
      %v560 = vadd.f32 0.0, %v559
      %v561 = vpop.f32.mrf.mxu0
      %v562 = vpop.f32.mrf.mxu0
      %v563 = vadd.f32 0.0, %v562
      %v564 = vpop.f32.mrf.mxu0
      %565 = vmatprep.mubr.bf16.mxu0 0
      %566 = vmatmul.mubr.bf16.gmra.mxu0 %v444
      %v567 = vpop.f32.mrf.mxu0
      %v568 = vadd.f32 0.0, %v567
      %v569 = vpop.f32.mrf.mxu0
      %v570 = vpop.f32.mrf.mxu0
      %v571 = vadd.f32 0.0, %v570
      %v572 = vpop.f32.mrf.mxu0
      %573 = vmatprep.mubr.bf16.mxu0 0
      %574 = vmatmul.mubr.bf16.gmra.mxu0 %v447
      %v575 = vpop.f32.mrf.mxu0
      %v576 = vadd.f32 0.0, %v575
      %v577 = vpop.f32.mrf.mxu0
      %v578 = vpop.f32.mrf.mxu0
      %v579 = vadd.f32 0.0, %v578
      %v580 = vpop.f32.mrf.mxu0
      %581 = vmatprep.mubr.bf16.mxu0 0
      %582 = vmatmul.mubr.bf16.gmra.mxu0 %v450
      %v583 = vpop.f32.mrf.mxu0
      %v584 = vadd.f32 0.0, %v583
      %v585 = vpop.f32.mrf.mxu0
      %v586 = vpop.f32.mrf.mxu0
      %v587 = vadd.f32 0.0, %v586
      %v588 = vpop.f32.mrf.mxu0
      %589 = vmatprep.mubr.bf16.mxu0 0
      %590 = vmatmul.mubr.bf16.gmra.mxu0 %v453
      %v591 = vpop.f32.mrf.mxu0
      %v592 = vadd.f32 0.0, %v591
      %v593 = vpop.f32.mrf.mxu0
      %v594 = vpop.f32.mrf.mxu0
      %v595 = vadd.f32 0.0, %v594
      %v596 = vpop.f32.mrf.mxu0
      %597 = vmatprep.mubr.bf16.mxu0 0
      %598 = vmatmul.mubr.bf16.gmra.mxu0 %v456
      %v599 = vpop.f32.mrf.mxu0
      %v600 = vadd.f32 0.0, %v599
      %v601 = vpop.f32.mrf.mxu0
      %v602 = vpop.f32.mrf.mxu0
      %v603 = vadd.f32 0.0, %v602
      %v604 = vpop.f32.mrf.mxu0
      %605 = vmatprep.mubr.bf16.mxu0 0
      %606 = vmatmul.mubr.bf16.gmra.mxu0 %v459
      %v607 = vpop.f32.mrf.mxu0
      %v608 = vadd.f32 0.0, %v607
      %v609 = vpop.f32.mrf.mxu0
      %v610 = vpop.f32.mrf.mxu0
      %v611 = vadd.f32 0.0, %v610
      %v612 = vpop.f32.mrf.mxu0
      %613 = vmatprep.mubr.bf16.mxu0 0
      %614 = vmatmul.mubr.bf16.gmra.mxu0 %v462
      %v615 = vpop.f32.mrf.mxu0
      %v616 = vadd.f32 0.0, %v615
      %v617 = vpop.f32.mrf.mxu0
      %v618 = vpop.f32.mrf.mxu0
      %v619 = vadd.f32 0.0, %v618
      %v620 = vpop.f32.mrf.mxu0
      %621 = vmatprep.mubr.bf16.mxu0 0
      %622 = vmatmul.mubr.bf16.gmra.mxu0 %v465
      %v623 = vpop.f32.mrf.mxu0
      %v624 = vadd.f32 0.0, %v623
      %v625 = vpop.f32.mrf.mxu0
      %v626 = vpop.f32.mrf.mxu0
      %v627 = vadd.f32 0.0, %v626
      %v628 = vpop.f32.mrf.mxu0
      %629 = vmatprep.mubr.bf16.mxu0 0
      %630 = vmatmul.mubr.bf16.gmra.mxu0 %v468
      %v631 = vpop.f32.mrf.mxu0
      %v632 = vadd.f32 0.0, %v631
      %v633 = vpop.f32.mrf.mxu0
      %v634 = vpop.f32.mrf.mxu0
      %v635 = vadd.f32 0.0, %v634
      %v636 = vpop.f32.mrf.mxu0
      %637 = vdwg.mxu0
      %v638 = vmax.f32 %v512, 0.0
      %v639 = vmax.f32 %v515, 0.0
      %v640 = vmax.f32 %v520, 0.0
      %v641 = vmax.f32 %v523, 0.0
      %v642 = vmax.f32 %v528, 0.0
      %v643 = vmax.f32 %v531, 0.0
      %v644 = vmax.f32 %v536, 0.0
      %v645 = vmax.f32 %v539, 0.0
      %v646 = vmax.f32 %v544, 0.0
      %v647 = vmax.f32 %v547, 0.0
      %v648 = vmax.f32 %v552, 0.0
      %v649 = vmax.f32 %v555, 0.0
      %v650 = vmax.f32 %v560, 0.0
      %v651 = vmax.f32 %v563, 0.0
      %v652 = vmax.f32 %v568, 0.0
      %v653 = vmax.f32 %v571, 0.0
      %v654 = vmax.f32 %v576, 0.0
      %v655 = vmax.f32 %v579, 0.0
      %v656 = vmax.f32 %v584, 0.0
      %v657 = vmax.f32 %v587, 0.0
      %v658 = vmax.f32 %v592, 0.0
      %v659 = vmax.f32 %v595, 0.0
      %v660 = vmax.f32 %v600, 0.0
      %v661 = vmax.f32 %v603, 0.0
      %v662 = vmax.f32 %v608, 0.0
      %v663 = vmax.f32 %v611, 0.0
      %v664 = vmax.f32 %v616, 0.0
      %v665 = vmax.f32 %v619, 0.0
      %v666 = vmax.f32 %v624, 0.0
      %v667 = vmax.f32 %v627, 0.0
      %v668 = vmax.f32 %v632, 0.0
      %v669 = vmax.f32 %v635, 0.0
      %v670 = vadd.f32 %v638, %v639
      %v671 = vadd.f32 %v670, %v640
      %v672 = vadd.f32 %v671, %v641
      %v673 = vrot.slane %v672, 4
      %v674 = vadd.f32 %v672, %v673
      %v675 = vrot.slane %v674, 2
      %v676 = vadd.f32 %v674, %v675
      %v677 = vrot.slane %v676, 1
      %v678 = vadd.f32 %v676, %v677
      %v679 = vadd.f32 %v642, %v643
      %v680 = vadd.f32 %v679, %v644
      %v681 = vadd.f32 %v680, %v645
      %v682 = vrot.slane %v681, 4
      %v683 = vadd.f32 %v681, %v682
      %v684 = vrot.slane %v683, 2
      %v685 = vadd.f32 %v683, %v684
      %v686 = vrot.slane %v685, 1
      %v687 = vadd.f32 %v685, %v686
      %v688 = vadd.f32 %v646, %v647
      %v689 = vadd.f32 %v688, %v648
      %v690 = vadd.f32 %v689, %v649
      %v691 = vrot.slane %v690, 4
      %v692 = vadd.f32 %v690, %v691
      %v693 = vrot.slane %v692, 2
      %v694 = vadd.f32 %v692, %v693
      %v695 = vrot.slane %v694, 1
      %v696 = vadd.f32 %v694, %v695
      %v697 = vadd.f32 %v650, %v651
      %v698 = vadd.f32 %v697, %v652
      %v699 = vadd.f32 %v698, %v653
      %v700 = vrot.slane %v699, 4
      %v701 = vadd.f32 %v699, %v700
      %v702 = vrot.slane %v701, 2
      %v703 = vadd.f32 %v701, %v702
      %v704 = vrot.slane %v703, 1
      %v705 = vadd.f32 %v703, %v704
      %v706 = vadd.f32 %v654, %v655
      %v707 = vadd.f32 %v706, %v656
      %v708 = vadd.f32 %v707, %v657
      %v709 = vrot.slane %v708, 4
      %v710 = vadd.f32 %v708, %v709
      %v711 = vrot.slane %v710, 2
      %v712 = vadd.f32 %v710, %v711
      %v713 = vrot.slane %v712, 1
      %v714 = vadd.f32 %v712, %v713
      %v715 = vadd.f32 %v658, %v659
      %v716 = vadd.f32 %v715, %v660
      %v717 = vadd.f32 %v716, %v661
      %v718 = vrot.slane %v717, 4
      %v719 = vadd.f32 %v717, %v718
      %v720 = vrot.slane %v719, 2
      %v721 = vadd.f32 %v719, %v720
      %v722 = vrot.slane %v721, 1
      %v723 = vadd.f32 %v721, %v722
      %v724 = vadd.f32 %v662, %v663
      %v725 = vadd.f32 %v724, %v664
      %v726 = vadd.f32 %v725, %v665
      %v727 = vrot.slane %v726, 4
      %v728 = vadd.f32 %v726, %v727
      %v729 = vrot.slane %v728, 2
      %v730 = vadd.f32 %v728, %v729
      %v731 = vrot.slane %v730, 1
      %v732 = vadd.f32 %v730, %v731
      %v733 = vadd.f32 %v666, %v667
      %v734 = vadd.f32 %v733, %v668
      %v735 = vadd.f32 %v734, %v669
      %v736 = vrot.slane %v735, 4
      %v737 = vadd.f32 %v735, %v736
      %v738 = vrot.slane %v737, 2
      %v739 = vadd.f32 %v737, %v738
      %v740 = vrot.slane %v739, 1
      %v741 = vadd.f32 %v739, %v740
      %v742 = vadd.f32 %v678, 0.0
      %v743 = vadd.f32 %v687, 0.0
      %v744 = vadd.f32 %v696, 0.0
      %v745 = vadd.f32 %v705, 0.0
      %v746 = vadd.f32 %v714, 0.0
      %v747 = vadd.f32 %v723, 0.0
      %v748 = vadd.f32 %v732, 0.0
      %v749 = vadd.f32 %v741, 0.0
      %s750 = scalar_lea.vmem %s276, 16
      %v751 = vld [vmem:[%s750] sm:$0xf]
      %v752 = vld [vmem:[%s750 + $0x4] sm:$0xf]
      %v753 = vld [vmem:[%s750 + $0x8] sm:$0xf]
      %v754 = vld [vmem:[%s750 + $0xc] sm:$0xf]
      %v755 = vld [vmem:[%s750 + $0x80] sm:$0xf]
      %v756 = vld [vmem:[%s750 + $0x84] sm:$0xf]
      %v757 = vld [vmem:[%s750 + $0x88] sm:$0xf]
      %v758 = vld [vmem:[%s750 + $0x8c] sm:$0xf]
      %v759 = vld [vmem:[%s750 + $0x100] sm:$0xf]
      %v760 = vld [vmem:[%s750 + $0x104] sm:$0xf]
      %v761 = vld [vmem:[%s750 + $0x108] sm:$0xf]
      %v762 = vld [vmem:[%s750 + $0x10c] sm:$0xf]
      %v763 = vld [vmem:[%s750 + $0x180] sm:$0xf]
      %v764 = vld [vmem:[%s750 + $0x184] sm:$0xf]
      %v765 = vld [vmem:[%s750 + $0x188] sm:$0xf]
      %v766 = vld [vmem:[%s750 + $0x18c] sm:$0xf]
      %v767 = vld [vmem:[%s750 + $0x200] sm:$0xf]
      %v768 = vld [vmem:[%s750 + $0x204] sm:$0xf]
      %v769 = vld [vmem:[%s750 + $0x208] sm:$0xf]
      %v770 = vld [vmem:[%s750 + $0x20c] sm:$0xf]
      %v771 = vld [vmem:[%s750 + $0x280] sm:$0xf]
      %v772 = vld [vmem:[%s750 + $0x284] sm:$0xf]
      %v773 = vld [vmem:[%s750 + $0x288] sm:$0xf]
      %v774 = vld [vmem:[%s750 + $0x28c] sm:$0xf]
      %v775 = vld [vmem:[%s750 + $0x300] sm:$0xf]
      %v776 = vld [vmem:[%s750 + $0x304] sm:$0xf]
      %v777 = vld [vmem:[%s750 + $0x308] sm:$0xf]
      %v778 = vld [vmem:[%s750 + $0x30c] sm:$0xf]
      %v779 = vld [vmem:[%s750 + $0x380] sm:$0xf]
      %v780 = vld [vmem:[%s750 + $0x384] sm:$0xf]
      %v781 = vld [vmem:[%s750 + $0x388] sm:$0xf]
      %v782 = vld [vmem:[%s750 + $0x38c] sm:$0xf]
      %v815 = vunpack.c.l.b16 %v751
      %v816 = vunpack.c.l.b16 %v752
      %v817 = vunpack.c.l.b16 %v753
      %v818 = vunpack.c.l.b16 %v754
      %v819 = vunpack.c.l.b16 %v755
      %v820 = vunpack.c.l.b16 %v756
      %v821 = vunpack.c.l.b16 %v757
      %v822 = vunpack.c.l.b16 %v758
      %v823 = vunpack.c.l.b16 %v759
      %v824 = vunpack.c.l.b16 %v760
      %v825 = vunpack.c.l.b16 %v761
      %v826 = vunpack.c.l.b16 %v762
      %v827 = vunpack.c.l.b16 %v763
      %v828 = vunpack.c.l.b16 %v764
      %v829 = vunpack.c.l.b16 %v765
      %v830 = vunpack.c.l.b16 %v766
      %v831 = vunpack.c.l.b16 %v767
      %v832 = vunpack.c.l.b16 %v768
      %v833 = vunpack.c.l.b16 %v769
      %v834 = vunpack.c.l.b16 %v770
      %v835 = vunpack.c.l.b16 %v771
      %v836 = vunpack.c.l.b16 %v772
      %v837 = vunpack.c.l.b16 %v773
      %v838 = vunpack.c.l.b16 %v774
      %v839 = vunpack.c.l.b16 %v775
      %v840 = vunpack.c.l.b16 %v776
      %v841 = vunpack.c.l.b16 %v777
      %v842 = vunpack.c.l.b16 %v778
      %v843 = vunpack.c.l.b16 %v779
      %v844 = vunpack.c.l.b16 %v780
      %v845 = vunpack.c.l.b16 %v781
      %v846 = vunpack.c.l.b16 %v782
      %v847 = vpack.c.b16 %v816, %v815
      %v848 = vpack.c.b16 %v818, %v817
      %v849 = vpack.c.b16 %v820, %v819
      %v850 = vpack.c.b16 %v822, %v821
      %v851 = vpack.c.b16 %v824, %v823
      %v852 = vpack.c.b16 %v826, %v825
      %v853 = vpack.c.b16 %v828, %v827
      %v854 = vpack.c.b16 %v830, %v829
      %v855 = vpack.c.b16 %v832, %v831
      %v856 = vpack.c.b16 %v834, %v833
      %v857 = vpack.c.b16 %v836, %v835
      %v858 = vpack.c.b16 %v838, %v837
      %v859 = vpack.c.b16 %v840, %v839
      %v860 = vpack.c.b16 %v842, %v841
      %v861 = vpack.c.b16 %v844, %v843
      %v862 = vpack.c.b16 %v846, %v845
      %v864 = vsel %vm421, %v847, 0
      %v867 = vsel %vm421, %v848, 0
      %v870 = vsel %vm421, %v849, 0
      %v873 = vsel %vm421, %v850, 0
      %v876 = vsel %vm421, %v851, 0
      %v879 = vsel %vm421, %v852, 0
      %v882 = vsel %vm421, %v853, 0
      %v885 = vsel %vm421, %v854, 0
      %v888 = vsel %vm421, %v855, 0
      %v891 = vsel %vm421, %v856, 0
      %v894 = vsel %vm421, %v857, 0
      %v897 = vsel %vm421, %v858, 0
      %v900 = vsel %vm421, %v859, 0
      %v903 = vsel %vm421, %v860, 0
      %v906 = vsel %vm421, %v861, 0
      %v909 = vsel %vm421, %v862, 0
      %911 = vmatprep.subr.bf16.mxu0 0
      %912 = vmatpush1.bf16.msra.mxu0 0
      %913 = vmatprep.subr.bf16.mxu0 0
      %914 = vmatpush1.bf16.msra.mxu0 0
      %915 = vmatprep.subr.bf16.mxu0 0
      %916 = vmatpush1.bf16.msra.mxu0 0
      %917 = vmatprep.subr.bf16.mxu0 0
      %918 = vmatpush1.bf16.msra.mxu0 0
      %919 = vmatprep.subr.bf16.mxu0 0
      %920 = vmatpush1.bf16.msra.mxu0 0
      %921 = vmatprep.subr.bf16.mxu0 0
      %922 = vmatpush1.bf16.msra.mxu0 %v475
      %923 = vmatprep.subr.bf16.mxu0 0
      %924 = vmatpush1.bf16.msra.mxu0 %v417
      %925 = vmatprep.subr.bf16.mxu0 0
      %926 = vmatpush1.bf16.msra.mxu0 %v416
      %927 = vmatprep.subr.bf16.mxu0 0
      %928 = vmatpush2.bf16.msra.mxu0 0
      %929 = vmatprep.subr.bf16.mxu0 0
      %930 = vmatpush2.bf16.msra.mxu0 0
      %931 = vmatprep.subr.bf16.mxu0 0
      %932 = vmatpush2.bf16.msra.mxu0 0
      %933 = vmatprep.subr.bf16.mxu0 0
      %934 = vmatpush2.bf16.msra.mxu0 0
      %935 = vmatprep.subr.bf16.mxu0 0
      %936 = vmatpush2.bf16.msra.mxu0 0
      %937 = vmatprep.subr.bf16.mxu0 0
      %938 = vmatpush2.bf16.msra.mxu0 0
      %939 = vmatprep.subr.bf16.mxu0 0
      %940 = vmatpush2.bf16.msra.mxu0 0
      %941 = vmatprep.subr.bf16.mxu0 0
      %942 = vmatpush2.bf16.msra.mxu0 0
      %943 = vmatprep.mubr.bf16.mxu0 0
      %944 = vmatmul.mubr.bf16.gmra.mxu0 %v864
      %v945 = vpop.f32.mrf.mxu0
      %v946 = vadd.f32 0.0, %v945
      %v947 = vpop.f32.mrf.mxu0
      %v948 = vpop.f32.mrf.mxu0
      %v949 = vadd.f32 0.0, %v948
      %v950 = vpop.f32.mrf.mxu0
      %951 = vmatprep.mubr.bf16.mxu0 0
      %952 = vmatmul.mubr.bf16.gmra.mxu0 %v867
      %v953 = vpop.f32.mrf.mxu0
      %v954 = vadd.f32 0.0, %v953
      %v955 = vpop.f32.mrf.mxu0
      %v956 = vpop.f32.mrf.mxu0
      %v957 = vadd.f32 0.0, %v956
      %v958 = vpop.f32.mrf.mxu0
      %959 = vmatprep.mubr.bf16.mxu0 0
      %960 = vmatmul.mubr.bf16.gmra.mxu0 %v870
      %v961 = vpop.f32.mrf.mxu0
      %v962 = vadd.f32 0.0, %v961
      %v963 = vpop.f32.mrf.mxu0
      %v964 = vpop.f32.mrf.mxu0
      %v965 = vadd.f32 0.0, %v964
      %v966 = vpop.f32.mrf.mxu0
      %967 = vmatprep.mubr.bf16.mxu0 0
      %968 = vmatmul.mubr.bf16.gmra.mxu0 %v873
      %v969 = vpop.f32.mrf.mxu0
      %v970 = vadd.f32 0.0, %v969
      %v971 = vpop.f32.mrf.mxu0
      %v972 = vpop.f32.mrf.mxu0
      %v973 = vadd.f32 0.0, %v972
      %v974 = vpop.f32.mrf.mxu0
      %975 = vmatprep.mubr.bf16.mxu0 0
      %976 = vmatmul.mubr.bf16.gmra.mxu0 %v876
      %v977 = vpop.f32.mrf.mxu0
      %v978 = vadd.f32 0.0, %v977
      %v979 = vpop.f32.mrf.mxu0
      %v980 = vpop.f32.mrf.mxu0
      %v981 = vadd.f32 0.0, %v980
      %v982 = vpop.f32.mrf.mxu0
      %983 = vmatprep.mubr.bf16.mxu0 0
      %984 = vmatmul.mubr.bf16.gmra.mxu0 %v879
      %v985 = vpop.f32.mrf.mxu0
      %v986 = vadd.f32 0.0, %v985
      %v987 = vpop.f32.mrf.mxu0
      %v988 = vpop.f32.mrf.mxu0
      %v989 = vadd.f32 0.0, %v988
      %v990 = vpop.f32.mrf.mxu0
      %991 = vmatprep.mubr.bf16.mxu0 0
      %992 = vmatmul.mubr.bf16.gmra.mxu0 %v882
      %v993 = vpop.f32.mrf.mxu0
      %v994 = vadd.f32 0.0, %v993
      %v995 = vpop.f32.mrf.mxu0
      %v996 = vpop.f32.mrf.mxu0
      %v997 = vadd.f32 0.0, %v996
      %v998 = vpop.f32.mrf.mxu0
      %999 = vmatprep.mubr.bf16.mxu0 0
      %1000 = vmatmul.mubr.bf16.gmra.mxu0 %v885
      %v1001 = vpop.f32.mrf.mxu0
      %v1002 = vadd.f32 0.0, %v1001
      %v1003 = vpop.f32.mrf.mxu0
      %v1004 = vpop.f32.mrf.mxu0
      %v1005 = vadd.f32 0.0, %v1004
      %v1006 = vpop.f32.mrf.mxu0
      %1007 = vmatprep.mubr.bf16.mxu0 0
      %1008 = vmatmul.mubr.bf16.gmra.mxu0 %v888
      %v1009 = vpop.f32.mrf.mxu0
      %v1010 = vadd.f32 0.0, %v1009
      %v1011 = vpop.f32.mrf.mxu0
      %v1012 = vpop.f32.mrf.mxu0
      %v1013 = vadd.f32 0.0, %v1012
      %v1014 = vpop.f32.mrf.mxu0
      %1015 = vmatprep.mubr.bf16.mxu0 0
      %1016 = vmatmul.mubr.bf16.gmra.mxu0 %v891
      %v1017 = vpop.f32.mrf.mxu0
      %v1018 = vadd.f32 0.0, %v1017
      %v1019 = vpop.f32.mrf.mxu0
      %v1020 = vpop.f32.mrf.mxu0
      %v1021 = vadd.f32 0.0, %v1020
      %v1022 = vpop.f32.mrf.mxu0
      %1023 = vmatprep.mubr.bf16.mxu0 0
      %1024 = vmatmul.mubr.bf16.gmra.mxu0 %v894
      %v1025 = vpop.f32.mrf.mxu0
      %v1026 = vadd.f32 0.0, %v1025
      %v1027 = vpop.f32.mrf.mxu0
      %v1028 = vpop.f32.mrf.mxu0
      %v1029 = vadd.f32 0.0, %v1028
      %v1030 = vpop.f32.mrf.mxu0
      %1031 = vmatprep.mubr.bf16.mxu0 0
      %1032 = vmatmul.mubr.bf16.gmra.mxu0 %v897
      %v1033 = vpop.f32.mrf.mxu0
      %v1034 = vadd.f32 0.0, %v1033
      %v1035 = vpop.f32.mrf.mxu0
      %v1036 = vpop.f32.mrf.mxu0
      %v1037 = vadd.f32 0.0, %v1036
      %v1038 = vpop.f32.mrf.mxu0
      %1039 = vmatprep.mubr.bf16.mxu0 0
      %1040 = vmatmul.mubr.bf16.gmra.mxu0 %v900
      %v1041 = vpop.f32.mrf.mxu0
      %v1042 = vadd.f32 0.0, %v1041
      %v1043 = vpop.f32.mrf.mxu0
      %v1044 = vpop.f32.mrf.mxu0
      %v1045 = vadd.f32 0.0, %v1044
      %v1046 = vpop.f32.mrf.mxu0
      %1047 = vmatprep.mubr.bf16.mxu0 0
      %1048 = vmatmul.mubr.bf16.gmra.mxu0 %v903
      %v1049 = vpop.f32.mrf.mxu0
      %v1050 = vadd.f32 0.0, %v1049
      %v1051 = vpop.f32.mrf.mxu0
      %v1052 = vpop.f32.mrf.mxu0
      %v1053 = vadd.f32 0.0, %v1052
      %v1054 = vpop.f32.mrf.mxu0
      %1055 = vmatprep.mubr.bf16.mxu0 0
      %1056 = vmatmul.mubr.bf16.gmra.mxu0 %v906
      %v1057 = vpop.f32.mrf.mxu0
      %v1058 = vadd.f32 0.0, %v1057
      %v1059 = vpop.f32.mrf.mxu0
      %v1060 = vpop.f32.mrf.mxu0
      %v1061 = vadd.f32 0.0, %v1060
      %v1062 = vpop.f32.mrf.mxu0
      %1063 = vmatprep.mubr.bf16.mxu0 0
      %1064 = vmatmul.mubr.bf16.gmra.mxu0 %v909
      %v1065 = vpop.f32.mrf.mxu0
      %v1066 = vadd.f32 0.0, %v1065
      %v1067 = vpop.f32.mrf.mxu0
      %v1068 = vpop.f32.mrf.mxu0
      %v1069 = vadd.f32 0.0, %v1068
      %v1070 = vpop.f32.mrf.mxu0
      %1071 = vdwg.mxu0
      %v1072 = vmax.f32 %v946, 0.0
      %v1073 = vmax.f32 %v949, 0.0
      %v1074 = vmax.f32 %v954, 0.0
      %v1075 = vmax.f32 %v957, 0.0
      %v1076 = vmax.f32 %v962, 0.0
      %v1077 = vmax.f32 %v965, 0.0
      %v1078 = vmax.f32 %v970, 0.0
      %v1079 = vmax.f32 %v973, 0.0
      %v1080 = vmax.f32 %v978, 0.0
      %v1081 = vmax.f32 %v981, 0.0
      %v1082 = vmax.f32 %v986, 0.0
      %v1083 = vmax.f32 %v989, 0.0
      %v1084 = vmax.f32 %v994, 0.0
      %v1085 = vmax.f32 %v997, 0.0
      %v1086 = vmax.f32 %v1002, 0.0
      %v1087 = vmax.f32 %v1005, 0.0
      %v1088 = vmax.f32 %v1010, 0.0
      %v1089 = vmax.f32 %v1013, 0.0
      %v1090 = vmax.f32 %v1018, 0.0
      %v1091 = vmax.f32 %v1021, 0.0
      %v1092 = vmax.f32 %v1026, 0.0
      %v1093 = vmax.f32 %v1029, 0.0
      %v1094 = vmax.f32 %v1034, 0.0
      %v1095 = vmax.f32 %v1037, 0.0
      %v1096 = vmax.f32 %v1042, 0.0
      %v1097 = vmax.f32 %v1045, 0.0
      %v1098 = vmax.f32 %v1050, 0.0
      %v1099 = vmax.f32 %v1053, 0.0
      %v1100 = vmax.f32 %v1058, 0.0
      %v1101 = vmax.f32 %v1061, 0.0
      %v1102 = vmax.f32 %v1066, 0.0
      %v1103 = vmax.f32 %v1069, 0.0
      %v1104 = vadd.f32 %v1072, %v1073
      %v1105 = vadd.f32 %v1104, %v1074
      %v1106 = vadd.f32 %v1105, %v1075
      %v1107 = vrot.slane %v1106, 4
      %v1108 = vadd.f32 %v1106, %v1107
      %v1109 = vrot.slane %v1108, 2
      %v1110 = vadd.f32 %v1108, %v1109
      %v1111 = vrot.slane %v1110, 1
      %v1112 = vadd.f32 %v1110, %v1111
      %v1113 = vadd.f32 %v1076, %v1077
      %v1114 = vadd.f32 %v1113, %v1078
      %v1115 = vadd.f32 %v1114, %v1079
      %v1116 = vrot.slane %v1115, 4
      %v1117 = vadd.f32 %v1115, %v1116
      %v1118 = vrot.slane %v1117, 2
      %v1119 = vadd.f32 %v1117, %v1118
      %v1120 = vrot.slane %v1119, 1
      %v1121 = vadd.f32 %v1119, %v1120
      %v1122 = vadd.f32 %v1080, %v1081
      %v1123 = vadd.f32 %v1122, %v1082
      %v1124 = vadd.f32 %v1123, %v1083
      %v1125 = vrot.slane %v1124, 4
      %v1126 = vadd.f32 %v1124, %v1125
      %v1127 = vrot.slane %v1126, 2
      %v1128 = vadd.f32 %v1126, %v1127
      %v1129 = vrot.slane %v1128, 1
      %v1130 = vadd.f32 %v1128, %v1129
      %v1131 = vadd.f32 %v1084, %v1085
      %v1132 = vadd.f32 %v1131, %v1086
      %v1133 = vadd.f32 %v1132, %v1087
      %v1134 = vrot.slane %v1133, 4
      %v1135 = vadd.f32 %v1133, %v1134
      %v1136 = vrot.slane %v1135, 2
      %v1137 = vadd.f32 %v1135, %v1136
      %v1138 = vrot.slane %v1137, 1
      %v1139 = vadd.f32 %v1137, %v1138
      %v1140 = vadd.f32 %v1088, %v1089
      %v1141 = vadd.f32 %v1140, %v1090
      %v1142 = vadd.f32 %v1141, %v1091
      %v1143 = vrot.slane %v1142, 4
      %v1144 = vadd.f32 %v1142, %v1143
      %v1145 = vrot.slane %v1144, 2
      %v1146 = vadd.f32 %v1144, %v1145
      %v1147 = vrot.slane %v1146, 1
      %v1148 = vadd.f32 %v1146, %v1147
      %v1149 = vadd.f32 %v1092, %v1093
      %v1150 = vadd.f32 %v1149, %v1094
      %v1151 = vadd.f32 %v1150, %v1095
      %v1152 = vrot.slane %v1151, 4
      %v1153 = vadd.f32 %v1151, %v1152
      %v1154 = vrot.slane %v1153, 2
      %v1155 = vadd.f32 %v1153, %v1154
      %v1156 = vrot.slane %v1155, 1
      %v1157 = vadd.f32 %v1155, %v1156
      %v1158 = vadd.f32 %v1096, %v1097
      %v1159 = vadd.f32 %v1158, %v1098
      %v1160 = vadd.f32 %v1159, %v1099
      %v1161 = vrot.slane %v1160, 4
      %v1162 = vadd.f32 %v1160, %v1161
      %v1163 = vrot.slane %v1162, 2
      %v1164 = vadd.f32 %v1162, %v1163
      %v1165 = vrot.slane %v1164, 1
      %v1166 = vadd.f32 %v1164, %v1165
      %v1167 = vadd.f32 %v1100, %v1101
      %v1168 = vadd.f32 %v1167, %v1102
      %v1169 = vadd.f32 %v1168, %v1103
      %v1170 = vrot.slane %v1169, 4
      %v1171 = vadd.f32 %v1169, %v1170
      %v1172 = vrot.slane %v1171, 2
      %v1173 = vadd.f32 %v1171, %v1172
      %v1174 = vrot.slane %v1173, 1
      %v1175 = vadd.f32 %v1173, %v1174
      %v1176 = vadd.f32 %v742, %v1112
      %v1177 = vadd.f32 %v743, %v1121
      %v1178 = vadd.f32 %v744, %v1130
      %v1179 = vadd.f32 %v745, %v1139
      %v1180 = vadd.f32 %v746, %v1148
      %v1181 = vadd.f32 %v747, %v1157
      %v1182 = vadd.f32 %v748, %v1166
      %v1183 = vadd.f32 %v749, %v1175
      %s1184 = scalar_lea.vmem %s276, 32
      %v1185 = vld [vmem:[%s1184] sm:$0xf]
      %v1186 = vld [vmem:[%s1184 + $0x4] sm:$0xf]
      %v1187 = vld [vmem:[%s1184 + $0x8] sm:$0xf]
      %v1188 = vld [vmem:[%s1184 + $0xc] sm:$0xf]
      %v1189 = vld [vmem:[%s1184 + $0x80] sm:$0xf]
      %v1190 = vld [vmem:[%s1184 + $0x84] sm:$0xf]
      %v1191 = vld [vmem:[%s1184 + $0x88] sm:$0xf]
      %v1192 = vld [vmem:[%s1184 + $0x8c] sm:$0xf]
      %v1193 = vld [vmem:[%s1184 + $0x100] sm:$0xf]
      %v1194 = vld [vmem:[%s1184 + $0x104] sm:$0xf]
      %v1195 = vld [vmem:[%s1184 + $0x108] sm:$0xf]
      %v1196 = vld [vmem:[%s1184 + $0x10c] sm:$0xf]
      %v1197 = vld [vmem:[%s1184 + $0x180] sm:$0xf]
      %v1198 = vld [vmem:[%s1184 + $0x184] sm:$0xf]
      %v1199 = vld [vmem:[%s1184 + $0x188] sm:$0xf]
      %v1200 = vld [vmem:[%s1184 + $0x18c] sm:$0xf]
      %v1201 = vld [vmem:[%s1184 + $0x200] sm:$0xf]
      %v1202 = vld [vmem:[%s1184 + $0x204] sm:$0xf]
      %v1203 = vld [vmem:[%s1184 + $0x208] sm:$0xf]
      %v1204 = vld [vmem:[%s1184 + $0x20c] sm:$0xf]
      %v1205 = vld [vmem:[%s1184 + $0x280] sm:$0xf]
      %v1206 = vld [vmem:[%s1184 + $0x284] sm:$0xf]
      %v1207 = vld [vmem:[%s1184 + $0x288] sm:$0xf]
      %v1208 = vld [vmem:[%s1184 + $0x28c] sm:$0xf]
      %v1209 = vld [vmem:[%s1184 + $0x300] sm:$0xf]
      %v1210 = vld [vmem:[%s1184 + $0x304] sm:$0xf]
      %v1211 = vld [vmem:[%s1184 + $0x308] sm:$0xf]
      %v1212 = vld [vmem:[%s1184 + $0x30c] sm:$0xf]
      %v1213 = vld [vmem:[%s1184 + $0x380] sm:$0xf]
      %v1214 = vld [vmem:[%s1184 + $0x384] sm:$0xf]
      %v1215 = vld [vmem:[%s1184 + $0x388] sm:$0xf]
      %v1216 = vld [vmem:[%s1184 + $0x38c] sm:$0xf]
      %v1249 = vunpack.c.l.b16 %v1185
      %v1250 = vunpack.c.l.b16 %v1186
      %v1251 = vunpack.c.l.b16 %v1187
      %v1252 = vunpack.c.l.b16 %v1188
      %v1253 = vunpack.c.l.b16 %v1189
      %v1254 = vunpack.c.l.b16 %v1190
      %v1255 = vunpack.c.l.b16 %v1191
      %v1256 = vunpack.c.l.b16 %v1192
      %v1257 = vunpack.c.l.b16 %v1193
      %v1258 = vunpack.c.l.b16 %v1194
      %v1259 = vunpack.c.l.b16 %v1195
      %v1260 = vunpack.c.l.b16 %v1196
      %v1261 = vunpack.c.l.b16 %v1197
      %v1262 = vunpack.c.l.b16 %v1198
      %v1263 = vunpack.c.l.b16 %v1199
      %v1264 = vunpack.c.l.b16 %v1200
      %v1265 = vunpack.c.l.b16 %v1201
      %v1266 = vunpack.c.l.b16 %v1202
      %v1267 = vunpack.c.l.b16 %v1203
      %v1268 = vunpack.c.l.b16 %v1204
      %v1269 = vunpack.c.l.b16 %v1205
      %v1270 = vunpack.c.l.b16 %v1206
      %v1271 = vunpack.c.l.b16 %v1207
      %v1272 = vunpack.c.l.b16 %v1208
      %v1273 = vunpack.c.l.b16 %v1209
      %v1274 = vunpack.c.l.b16 %v1210
      %v1275 = vunpack.c.l.b16 %v1211
      %v1276 = vunpack.c.l.b16 %v1212
      %v1277 = vunpack.c.l.b16 %v1213
      %v1278 = vunpack.c.l.b16 %v1214
      %v1279 = vunpack.c.l.b16 %v1215
      %v1280 = vunpack.c.l.b16 %v1216
      %v1281 = vpack.c.b16 %v1250, %v1249
      %v1282 = vpack.c.b16 %v1252, %v1251
      %v1283 = vpack.c.b16 %v1254, %v1253
      %v1284 = vpack.c.b16 %v1256, %v1255
      %v1285 = vpack.c.b16 %v1258, %v1257
      %v1286 = vpack.c.b16 %v1260, %v1259
      %v1287 = vpack.c.b16 %v1262, %v1261
      %v1288 = vpack.c.b16 %v1264, %v1263
      %v1289 = vpack.c.b16 %v1266, %v1265
      %v1290 = vpack.c.b16 %v1268, %v1267
      %v1291 = vpack.c.b16 %v1270, %v1269
      %v1292 = vpack.c.b16 %v1272, %v1271
      %v1293 = vpack.c.b16 %v1274, %v1273
      %v1294 = vpack.c.b16 %v1276, %v1275
      %v1295 = vpack.c.b16 %v1278, %v1277
      %v1296 = vpack.c.b16 %v1280, %v1279
      %v1298 = vsel %vm421, %v1281, 0
      %v1301 = vsel %vm421, %v1282, 0
      %v1304 = vsel %vm421, %v1283, 0
      %v1307 = vsel %vm421, %v1284, 0
      %v1310 = vsel %vm421, %v1285, 0
      %v1313 = vsel %vm421, %v1286, 0
      %v1316 = vsel %vm421, %v1287, 0
      %v1319 = vsel %vm421, %v1288, 0
      %v1322 = vsel %vm421, %v1289, 0
      %v1325 = vsel %vm421, %v1290, 0
      %v1328 = vsel %vm421, %v1291, 0
      %v1331 = vsel %vm421, %v1292, 0
      %v1334 = vsel %vm421, %v1293, 0
      %v1337 = vsel %vm421, %v1294, 0
      %v1340 = vsel %vm421, %v1295, 0
      %v1343 = vsel %vm421, %v1296, 0
      %1345 = vmatprep.subr.bf16.mxu0 0
      %1346 = vmatpush1.bf16.msra.mxu0 0
      %1347 = vmatprep.subr.bf16.mxu0 0
      %1348 = vmatpush1.bf16.msra.mxu0 0
      %1349 = vmatprep.subr.bf16.mxu0 0
      %1350 = vmatpush1.bf16.msra.mxu0 0
      %1351 = vmatprep.subr.bf16.mxu0 0
      %1352 = vmatpush1.bf16.msra.mxu0 0
      %1353 = vmatprep.subr.bf16.mxu0 0
      %1354 = vmatpush1.bf16.msra.mxu0 0
      %1355 = vmatprep.subr.bf16.mxu0 0
      %1356 = vmatpush1.bf16.msra.mxu0 %v475
      %1357 = vmatprep.subr.bf16.mxu0 0
      %1358 = vmatpush1.bf16.msra.mxu0 %v417
      %1359 = vmatprep.subr.bf16.mxu0 0
      %1360 = vmatpush1.bf16.msra.mxu0 %v416
      %1361 = vmatprep.subr.bf16.mxu0 0
      %1362 = vmatpush2.bf16.msra.mxu0 0
      %1363 = vmatprep.subr.bf16.mxu0 0
      %1364 = vmatpush2.bf16.msra.mxu0 0
      %1365 = vmatprep.subr.bf16.mxu0 0
      %1366 = vmatpush2.bf16.msra.mxu0 0
      %1367 = vmatprep.subr.bf16.mxu0 0
      %1368 = vmatpush2.bf16.msra.mxu0 0
      %1369 = vmatprep.subr.bf16.mxu0 0
      %1370 = vmatpush2.bf16.msra.mxu0 0
      %1371 = vmatprep.subr.bf16.mxu0 0
      %1372 = vmatpush2.bf16.msra.mxu0 0
      %1373 = vmatprep.subr.bf16.mxu0 0
      %1374 = vmatpush2.bf16.msra.mxu0 0
      %1375 = vmatprep.subr.bf16.mxu0 0
      %1376 = vmatpush2.bf16.msra.mxu0 0
      %1377 = vmatprep.mubr.bf16.mxu0 0
      %1378 = vmatmul.mubr.bf16.gmra.mxu0 %v1298
      %v1379 = vpop.f32.mrf.mxu0
      %v1380 = vadd.f32 0.0, %v1379
      %v1381 = vpop.f32.mrf.mxu0
      %v1382 = vpop.f32.mrf.mxu0
      %v1383 = vadd.f32 0.0, %v1382
      %v1384 = vpop.f32.mrf.mxu0
      %1385 = vmatprep.mubr.bf16.mxu0 0
      %1386 = vmatmul.mubr.bf16.gmra.mxu0 %v1301
      %v1387 = vpop.f32.mrf.mxu0
      %v1388 = vadd.f32 0.0, %v1387
      %v1389 = vpop.f32.mrf.mxu0
      %v1390 = vpop.f32.mrf.mxu0
      %v1391 = vadd.f32 0.0, %v1390
      %v1392 = vpop.f32.mrf.mxu0
      %1393 = vmatprep.mubr.bf16.mxu0 0
      %1394 = vmatmul.mubr.bf16.gmra.mxu0 %v1304
      %v1395 = vpop.f32.mrf.mxu0
      %v1396 = vadd.f32 0.0, %v1395
      %v1397 = vpop.f32.mrf.mxu0
      %v1398 = vpop.f32.mrf.mxu0
      %v1399 = vadd.f32 0.0, %v1398
      %v1400 = vpop.f32.mrf.mxu0
      %1401 = vmatprep.mubr.bf16.mxu0 0
      %1402 = vmatmul.mubr.bf16.gmra.mxu0 %v1307
      %v1403 = vpop.f32.mrf.mxu0
      %v1404 = vadd.f32 0.0, %v1403
      %v1405 = vpop.f32.mrf.mxu0
      %v1406 = vpop.f32.mrf.mxu0
      %v1407 = vadd.f32 0.0, %v1406
      %v1408 = vpop.f32.mrf.mxu0
      %1409 = vmatprep.mubr.bf16.mxu0 0
      %1410 = vmatmul.mubr.bf16.gmra.mxu0 %v1310
      %v1411 = vpop.f32.mrf.mxu0
      %v1412 = vadd.f32 0.0, %v1411
      %v1413 = vpop.f32.mrf.mxu0
      %v1414 = vpop.f32.mrf.mxu0
      %v1415 = vadd.f32 0.0, %v1414
      %v1416 = vpop.f32.mrf.mxu0
      %1417 = vmatprep.mubr.bf16.mxu0 0
      %1418 = vmatmul.mubr.bf16.gmra.mxu0 %v1313
      %v1419 = vpop.f32.mrf.mxu0
      %v1420 = vadd.f32 0.0, %v1419
      %v1421 = vpop.f32.mrf.mxu0
      %v1422 = vpop.f32.mrf.mxu0
      %v1423 = vadd.f32 0.0, %v1422
      %v1424 = vpop.f32.mrf.mxu0
      %1425 = vmatprep.mubr.bf16.mxu0 0
      %1426 = vmatmul.mubr.bf16.gmra.mxu0 %v1316
      %v1427 = vpop.f32.mrf.mxu0
      %v1428 = vadd.f32 0.0, %v1427
      %v1429 = vpop.f32.mrf.mxu0
      %v1430 = vpop.f32.mrf.mxu0
      %v1431 = vadd.f32 0.0, %v1430
      %v1432 = vpop.f32.mrf.mxu0
      %1433 = vmatprep.mubr.bf16.mxu0 0
      %1434 = vmatmul.mubr.bf16.gmra.mxu0 %v1319
      %v1435 = vpop.f32.mrf.mxu0
      %v1436 = vadd.f32 0.0, %v1435
      %v1437 = vpop.f32.mrf.mxu0
      %v1438 = vpop.f32.mrf.mxu0
      %v1439 = vadd.f32 0.0, %v1438
      %v1440 = vpop.f32.mrf.mxu0
      %1441 = vmatprep.mubr.bf16.mxu0 0
      %1442 = vmatmul.mubr.bf16.gmra.mxu0 %v1322
      %v1443 = vpop.f32.mrf.mxu0
      %v1444 = vadd.f32 0.0, %v1443
      %v1445 = vpop.f32.mrf.mxu0
      %v1446 = vpop.f32.mrf.mxu0
      %v1447 = vadd.f32 0.0, %v1446
      %v1448 = vpop.f32.mrf.mxu0
      %1449 = vmatprep.mubr.bf16.mxu0 0
      %1450 = vmatmul.mubr.bf16.gmra.mxu0 %v1325
      %v1451 = vpop.f32.mrf.mxu0
      %v1452 = vadd.f32 0.0, %v1451
      %v1453 = vpop.f32.mrf.mxu0
      %v1454 = vpop.f32.mrf.mxu0
      %v1455 = vadd.f32 0.0, %v1454
      %v1456 = vpop.f32.mrf.mxu0
      %1457 = vmatprep.mubr.bf16.mxu0 0
      %1458 = vmatmul.mubr.bf16.gmra.mxu0 %v1328
      %v1459 = vpop.f32.mrf.mxu0
      %v1460 = vadd.f32 0.0, %v1459
      %v1461 = vpop.f32.mrf.mxu0
      %v1462 = vpop.f32.mrf.mxu0
      %v1463 = vadd.f32 0.0, %v1462
      %v1464 = vpop.f32.mrf.mxu0
      %1465 = vmatprep.mubr.bf16.mxu0 0
      %1466 = vmatmul.mubr.bf16.gmra.mxu0 %v1331
      %v1467 = vpop.f32.mrf.mxu0
      %v1468 = vadd.f32 0.0, %v1467
      %v1469 = vpop.f32.mrf.mxu0
      %v1470 = vpop.f32.mrf.mxu0
      %v1471 = vadd.f32 0.0, %v1470
      %v1472 = vpop.f32.mrf.mxu0
      %1473 = vmatprep.mubr.bf16.mxu0 0
      %1474 = vmatmul.mubr.bf16.gmra.mxu0 %v1334
      %v1475 = vpop.f32.mrf.mxu0
      %v1476 = vadd.f32 0.0, %v1475
      %v1477 = vpop.f32.mrf.mxu0
      %v1478 = vpop.f32.mrf.mxu0
      %v1479 = vadd.f32 0.0, %v1478
      %v1480 = vpop.f32.mrf.mxu0
      %1481 = vmatprep.mubr.bf16.mxu0 0
      %1482 = vmatmul.mubr.bf16.gmra.mxu0 %v1337
      %v1483 = vpop.f32.mrf.mxu0
      %v1484 = vadd.f32 0.0, %v1483
      %v1485 = vpop.f32.mrf.mxu0
      %v1486 = vpop.f32.mrf.mxu0
      %v1487 = vadd.f32 0.0, %v1486
      %v1488 = vpop.f32.mrf.mxu0
      %1489 = vmatprep.mubr.bf16.mxu0 0
      %1490 = vmatmul.mubr.bf16.gmra.mxu0 %v1340
      %v1491 = vpop.f32.mrf.mxu0
      %v1492 = vadd.f32 0.0, %v1491
      %v1493 = vpop.f32.mrf.mxu0
      %v1494 = vpop.f32.mrf.mxu0
      %v1495 = vadd.f32 0.0, %v1494
      %v1496 = vpop.f32.mrf.mxu0
      %1497 = vmatprep.mubr.bf16.mxu0 0
      %1498 = vmatmul.mubr.bf16.gmra.mxu0 %v1343
      %v1499 = vpop.f32.mrf.mxu0
      %v1500 = vadd.f32 0.0, %v1499
      %v1501 = vpop.f32.mrf.mxu0
      %v1502 = vpop.f32.mrf.mxu0
      %v1503 = vadd.f32 0.0, %v1502
      %v1504 = vpop.f32.mrf.mxu0
      %1505 = vdwg.mxu0
      %v1506 = vmax.f32 %v1380, 0.0
      %v1507 = vmax.f32 %v1383, 0.0
      %v1508 = vmax.f32 %v1388, 0.0
      %v1509 = vmax.f32 %v1391, 0.0
      %v1510 = vmax.f32 %v1396, 0.0
      %v1511 = vmax.f32 %v1399, 0.0
      %v1512 = vmax.f32 %v1404, 0.0
      %v1513 = vmax.f32 %v1407, 0.0
      %v1514 = vmax.f32 %v1412, 0.0
      %v1515 = vmax.f32 %v1415, 0.0
      %v1516 = vmax.f32 %v1420, 0.0
      %v1517 = vmax.f32 %v1423, 0.0
      %v1518 = vmax.f32 %v1428, 0.0
      %v1519 = vmax.f32 %v1431, 0.0
      %v1520 = vmax.f32 %v1436, 0.0
      %v1521 = vmax.f32 %v1439, 0.0
      %v1522 = vmax.f32 %v1444, 0.0
      %v1523 = vmax.f32 %v1447, 0.0
      %v1524 = vmax.f32 %v1452, 0.0
      %v1525 = vmax.f32 %v1455, 0.0
      %v1526 = vmax.f32 %v1460, 0.0
      %v1527 = vmax.f32 %v1463, 0.0
      %v1528 = vmax.f32 %v1468, 0.0
      %v1529 = vmax.f32 %v1471, 0.0
      %v1530 = vmax.f32 %v1476, 0.0
      %v1531 = vmax.f32 %v1479, 0.0
      %v1532 = vmax.f32 %v1484, 0.0
      %v1533 = vmax.f32 %v1487, 0.0
      %v1534 = vmax.f32 %v1492, 0.0
      %v1535 = vmax.f32 %v1495, 0.0
      %v1536 = vmax.f32 %v1500, 0.0
      %v1537 = vmax.f32 %v1503, 0.0
      %v1538 = vadd.f32 %v1506, %v1507
      %v1539 = vadd.f32 %v1538, %v1508
      %v1540 = vadd.f32 %v1539, %v1509
      %v1541 = vrot.slane %v1540, 4
      %v1542 = vadd.f32 %v1540, %v1541
      %v1543 = vrot.slane %v1542, 2
      %v1544 = vadd.f32 %v1542, %v1543
      %v1545 = vrot.slane %v1544, 1
      %v1546 = vadd.f32 %v1544, %v1545
      %v1547 = vadd.f32 %v1510, %v1511
      %v1548 = vadd.f32 %v1547, %v1512
      %v1549 = vadd.f32 %v1548, %v1513
      %v1550 = vrot.slane %v1549, 4
      %v1551 = vadd.f32 %v1549, %v1550
      %v1552 = vrot.slane %v1551, 2
      %v1553 = vadd.f32 %v1551, %v1552
      %v1554 = vrot.slane %v1553, 1
      %v1555 = vadd.f32 %v1553, %v1554
      %v1556 = vadd.f32 %v1514, %v1515
      %v1557 = vadd.f32 %v1556, %v1516
      %v1558 = vadd.f32 %v1557, %v1517
      %v1559 = vrot.slane %v1558, 4
      %v1560 = vadd.f32 %v1558, %v1559
      %v1561 = vrot.slane %v1560, 2
      %v1562 = vadd.f32 %v1560, %v1561
      %v1563 = vrot.slane %v1562, 1
      %v1564 = vadd.f32 %v1562, %v1563
      %v1565 = vadd.f32 %v1518, %v1519
      %v1566 = vadd.f32 %v1565, %v1520
      %v1567 = vadd.f32 %v1566, %v1521
      %v1568 = vrot.slane %v1567, 4
      %v1569 = vadd.f32 %v1567, %v1568
      %v1570 = vrot.slane %v1569, 2
      %v1571 = vadd.f32 %v1569, %v1570
      %v1572 = vrot.slane %v1571, 1
      %v1573 = vadd.f32 %v1571, %v1572
      %v1574 = vadd.f32 %v1522, %v1523
      %v1575 = vadd.f32 %v1574, %v1524
      %v1576 = vadd.f32 %v1575, %v1525
      %v1577 = vrot.slane %v1576, 4
      %v1578 = vadd.f32 %v1576, %v1577
      %v1579 = vrot.slane %v1578, 2
      %v1580 = vadd.f32 %v1578, %v1579
      %v1581 = vrot.slane %v1580, 1
      %v1582 = vadd.f32 %v1580, %v1581
      %v1583 = vadd.f32 %v1526, %v1527
      %v1584 = vadd.f32 %v1583, %v1528
      %v1585 = vadd.f32 %v1584, %v1529
      %v1586 = vrot.slane %v1585, 4
      %v1587 = vadd.f32 %v1585, %v1586
      %v1588 = vrot.slane %v1587, 2
      %v1589 = vadd.f32 %v1587, %v1588
      %v1590 = vrot.slane %v1589, 1
      %v1591 = vadd.f32 %v1589, %v1590
      %v1592 = vadd.f32 %v1530, %v1531
      %v1593 = vadd.f32 %v1592, %v1532
      %v1594 = vadd.f32 %v1593, %v1533
      %v1595 = vrot.slane %v1594, 4
      %v1596 = vadd.f32 %v1594, %v1595
      %v1597 = vrot.slane %v1596, 2
      %v1598 = vadd.f32 %v1596, %v1597
      %v1599 = vrot.slane %v1598, 1
      %v1600 = vadd.f32 %v1598, %v1599
      %v1601 = vadd.f32 %v1534, %v1535
      %v1602 = vadd.f32 %v1601, %v1536
      %v1603 = vadd.f32 %v1602, %v1537
      %v1604 = vrot.slane %v1603, 4
      %v1605 = vadd.f32 %v1603, %v1604
      %v1606 = vrot.slane %v1605, 2
      %v1607 = vadd.f32 %v1605, %v1606
      %v1608 = vrot.slane %v1607, 1
      %v1609 = vadd.f32 %v1607, %v1608
      %v1610 = vadd.f32 %v1176, %v1546
      %v1611 = vadd.f32 %v1177, %v1555
      %v1612 = vadd.f32 %v1178, %v1564
      %v1613 = vadd.f32 %v1179, %v1573
      %v1614 = vadd.f32 %v1180, %v1582
      %v1615 = vadd.f32 %v1181, %v1591
      %v1616 = vadd.f32 %v1182, %v1600
      %v1617 = vadd.f32 %v1183, %v1609
      %s1618 = scalar_lea.vmem %s276, 48
      %v1619 = vld [vmem:[%s1618] sm:$0xf]
      %v1620 = vld [vmem:[%s1618 + $0x4] sm:$0xf]
      %v1621 = vld [vmem:[%s1618 + $0x8] sm:$0xf]
      %v1622 = vld [vmem:[%s1618 + $0xc] sm:$0xf]
      %v1623 = vld [vmem:[%s1618 + $0x80] sm:$0xf]
      %v1624 = vld [vmem:[%s1618 + $0x84] sm:$0xf]
      %v1625 = vld [vmem:[%s1618 + $0x88] sm:$0xf]
      %v1626 = vld [vmem:[%s1618 + $0x8c] sm:$0xf]
      %v1627 = vld [vmem:[%s1618 + $0x100] sm:$0xf]
      %v1628 = vld [vmem:[%s1618 + $0x104] sm:$0xf]
      %v1629 = vld [vmem:[%s1618 + $0x108] sm:$0xf]
      %v1630 = vld [vmem:[%s1618 + $0x10c] sm:$0xf]
      %v1631 = vld [vmem:[%s1618 + $0x180] sm:$0xf]
      %v1632 = vld [vmem:[%s1618 + $0x184] sm:$0xf]
      %v1633 = vld [vmem:[%s1618 + $0x188] sm:$0xf]
      %v1634 = vld [vmem:[%s1618 + $0x18c] sm:$0xf]
      %v1635 = vld [vmem:[%s1618 + $0x200] sm:$0xf]
      %v1636 = vld [vmem:[%s1618 + $0x204] sm:$0xf]
      %v1637 = vld [vmem:[%s1618 + $0x208] sm:$0xf]
      %v1638 = vld [vmem:[%s1618 + $0x20c] sm:$0xf]
      %v1639 = vld [vmem:[%s1618 + $0x280] sm:$0xf]
      %v1640 = vld [vmem:[%s1618 + $0x284] sm:$0xf]
      %v1641 = vld [vmem:[%s1618 + $0x288] sm:$0xf]
      %v1642 = vld [vmem:[%s1618 + $0x28c] sm:$0xf]
      %v1643 = vld [vmem:[%s1618 + $0x300] sm:$0xf]
      %v1644 = vld [vmem:[%s1618 + $0x304] sm:$0xf]
      %v1645 = vld [vmem:[%s1618 + $0x308] sm:$0xf]
      %v1646 = vld [vmem:[%s1618 + $0x30c] sm:$0xf]
      %v1647 = vld [vmem:[%s1618 + $0x380] sm:$0xf]
      %v1648 = vld [vmem:[%s1618 + $0x384] sm:$0xf]
      %v1649 = vld [vmem:[%s1618 + $0x388] sm:$0xf]
      %v1650 = vld [vmem:[%s1618 + $0x38c] sm:$0xf]
      %v1683 = vunpack.c.l.b16 %v1619
      %v1684 = vunpack.c.l.b16 %v1620
      %v1685 = vunpack.c.l.b16 %v1621
      %v1686 = vunpack.c.l.b16 %v1622
      %v1687 = vunpack.c.l.b16 %v1623
      %v1688 = vunpack.c.l.b16 %v1624
      %v1689 = vunpack.c.l.b16 %v1625
      %v1690 = vunpack.c.l.b16 %v1626
      %v1691 = vunpack.c.l.b16 %v1627
      %v1692 = vunpack.c.l.b16 %v1628
      %v1693 = vunpack.c.l.b16 %v1629
      %v1694 = vunpack.c.l.b16 %v1630
      %v1695 = vunpack.c.l.b16 %v1631
      %v1696 = vunpack.c.l.b16 %v1632
      %v1697 = vunpack.c.l.b16 %v1633
      %v1698 = vunpack.c.l.b16 %v1634
      %v1699 = vunpack.c.l.b16 %v1635
      %v1700 = vunpack.c.l.b16 %v1636
      %v1701 = vunpack.c.l.b16 %v1637
      %v1702 = vunpack.c.l.b16 %v1638
      %v1703 = vunpack.c.l.b16 %v1639
      %v1704 = vunpack.c.l.b16 %v1640
      %v1705 = vunpack.c.l.b16 %v1641
      %v1706 = vunpack.c.l.b16 %v1642
      %v1707 = vunpack.c.l.b16 %v1643
      %v1708 = vunpack.c.l.b16 %v1644
      %v1709 = vunpack.c.l.b16 %v1645
      %v1710 = vunpack.c.l.b16 %v1646
      %v1711 = vunpack.c.l.b16 %v1647
      %v1712 = vunpack.c.l.b16 %v1648
      %v1713 = vunpack.c.l.b16 %v1649
      %v1714 = vunpack.c.l.b16 %v1650
      %v1715 = vpack.c.b16 %v1684, %v1683
      %v1716 = vpack.c.b16 %v1686, %v1685
      %v1717 = vpack.c.b16 %v1688, %v1687
      %v1718 = vpack.c.b16 %v1690, %v1689
      %v1719 = vpack.c.b16 %v1692, %v1691
      %v1720 = vpack.c.b16 %v1694, %v1693
      %v1721 = vpack.c.b16 %v1696, %v1695
      %v1722 = vpack.c.b16 %v1698, %v1697
      %v1723 = vpack.c.b16 %v1700, %v1699
      %v1724 = vpack.c.b16 %v1702, %v1701
      %v1725 = vpack.c.b16 %v1704, %v1703
      %v1726 = vpack.c.b16 %v1706, %v1705
      %v1727 = vpack.c.b16 %v1708, %v1707
      %v1728 = vpack.c.b16 %v1710, %v1709
      %v1729 = vpack.c.b16 %v1712, %v1711
      %v1730 = vpack.c.b16 %v1714, %v1713
      %v1732 = vsel %vm421, %v1715, 0
      %v1735 = vsel %vm421, %v1716, 0
      %v1738 = vsel %vm421, %v1717, 0
      %v1741 = vsel %vm421, %v1718, 0
      %v1744 = vsel %vm421, %v1719, 0
      %v1747 = vsel %vm421, %v1720, 0
      %v1750 = vsel %vm421, %v1721, 0
      %v1753 = vsel %vm421, %v1722, 0
      %v1756 = vsel %vm421, %v1723, 0
      %v1759 = vsel %vm421, %v1724, 0
      %v1762 = vsel %vm421, %v1725, 0
      %v1765 = vsel %vm421, %v1726, 0
      %v1768 = vsel %vm421, %v1727, 0
      %v1771 = vsel %vm421, %v1728, 0
      %v1774 = vsel %vm421, %v1729, 0
      %v1777 = vsel %vm421, %v1730, 0
      %1779 = vmatprep.subr.bf16.mxu0 0
      %1780 = vmatpush1.bf16.msra.mxu0 0
      %1781 = vmatprep.subr.bf16.mxu0 0
      %1782 = vmatpush1.bf16.msra.mxu0 0
      %1783 = vmatprep.subr.bf16.mxu0 0
      %1784 = vmatpush1.bf16.msra.mxu0 0
      %1785 = vmatprep.subr.bf16.mxu0 0
      %1786 = vmatpush1.bf16.msra.mxu0 0
      %1787 = vmatprep.subr.bf16.mxu0 0
      %1788 = vmatpush1.bf16.msra.mxu0 0
      %1789 = vmatprep.subr.bf16.mxu0 0
      %1790 = vmatpush1.bf16.msra.mxu0 %v475
      %1791 = vmatprep.subr.bf16.mxu0 0
      %1792 = vmatpush1.bf16.msra.mxu0 %v417
      %1793 = vmatprep.subr.bf16.mxu0 0
      %1794 = vmatpush1.bf16.msra.mxu0 %v416
      %1795 = vmatprep.subr.bf16.mxu0 0
      %1796 = vmatpush2.bf16.msra.mxu0 0
      %1797 = vmatprep.subr.bf16.mxu0 0
      %1798 = vmatpush2.bf16.msra.mxu0 0
      %1799 = vmatprep.subr.bf16.mxu0 0
      %1800 = vmatpush2.bf16.msra.mxu0 0
      %1801 = vmatprep.subr.bf16.mxu0 0
      %1802 = vmatpush2.bf16.msra.mxu0 0
      %1803 = vmatprep.subr.bf16.mxu0 0
      %1804 = vmatpush2.bf16.msra.mxu0 0
      %1805 = vmatprep.subr.bf16.mxu0 0
      %1806 = vmatpush2.bf16.msra.mxu0 0
      %1807 = vmatprep.subr.bf16.mxu0 0
      %1808 = vmatpush2.bf16.msra.mxu0 0
      %1809 = vmatprep.subr.bf16.mxu0 0
      %1810 = vmatpush2.bf16.msra.mxu0 0
      %1811 = vmatprep.mubr.bf16.mxu0 0
      %1812 = vmatmul.mubr.bf16.gmra.mxu0 %v1732
      %v1813 = vpop.f32.mrf.mxu0
      %v1814 = vadd.f32 0.0, %v1813
      %v1815 = vpop.f32.mrf.mxu0
      %v1816 = vpop.f32.mrf.mxu0
      %v1817 = vadd.f32 0.0, %v1816
      %v1818 = vpop.f32.mrf.mxu0
      %1819 = vmatprep.mubr.bf16.mxu0 0
      %1820 = vmatmul.mubr.bf16.gmra.mxu0 %v1735
      %v1821 = vpop.f32.mrf.mxu0
      %v1822 = vadd.f32 0.0, %v1821
      %v1823 = vpop.f32.mrf.mxu0
      %v1824 = vpop.f32.mrf.mxu0
      %v1825 = vadd.f32 0.0, %v1824
      %v1826 = vpop.f32.mrf.mxu0
      %1827 = vmatprep.mubr.bf16.mxu0 0
      %1828 = vmatmul.mubr.bf16.gmra.mxu0 %v1738
      %v1829 = vpop.f32.mrf.mxu0
      %v1830 = vadd.f32 0.0, %v1829
      %v1831 = vpop.f32.mrf.mxu0
      %v1832 = vpop.f32.mrf.mxu0
      %v1833 = vadd.f32 0.0, %v1832
      %v1834 = vpop.f32.mrf.mxu0
      %1835 = vmatprep.mubr.bf16.mxu0 0
      %1836 = vmatmul.mubr.bf16.gmra.mxu0 %v1741
      %v1837 = vpop.f32.mrf.mxu0
      %v1838 = vadd.f32 0.0, %v1837
      %v1839 = vpop.f32.mrf.mxu0
      %v1840 = vpop.f32.mrf.mxu0
      %v1841 = vadd.f32 0.0, %v1840
      %v1842 = vpop.f32.mrf.mxu0
      %1843 = vmatprep.mubr.bf16.mxu0 0
      %1844 = vmatmul.mubr.bf16.gmra.mxu0 %v1744
      %v1845 = vpop.f32.mrf.mxu0
      %v1846 = vadd.f32 0.0, %v1845
      %v1847 = vpop.f32.mrf.mxu0
      %v1848 = vpop.f32.mrf.mxu0
      %v1849 = vadd.f32 0.0, %v1848
      %v1850 = vpop.f32.mrf.mxu0
      %1851 = vmatprep.mubr.bf16.mxu0 0
      %1852 = vmatmul.mubr.bf16.gmra.mxu0 %v1747
      %v1853 = vpop.f32.mrf.mxu0
      %v1854 = vadd.f32 0.0, %v1853
      %v1855 = vpop.f32.mrf.mxu0
      %v1856 = vpop.f32.mrf.mxu0
      %v1857 = vadd.f32 0.0, %v1856
      %v1858 = vpop.f32.mrf.mxu0
      %1859 = vmatprep.mubr.bf16.mxu0 0
      %1860 = vmatmul.mubr.bf16.gmra.mxu0 %v1750
      %v1861 = vpop.f32.mrf.mxu0
      %v1862 = vadd.f32 0.0, %v1861
      %v1863 = vpop.f32.mrf.mxu0
      %v1864 = vpop.f32.mrf.mxu0
      %v1865 = vadd.f32 0.0, %v1864
      %v1866 = vpop.f32.mrf.mxu0
      %1867 = vmatprep.mubr.bf16.mxu0 0
      %1868 = vmatmul.mubr.bf16.gmra.mxu0 %v1753
      %v1869 = vpop.f32.mrf.mxu0
      %v1870 = vadd.f32 0.0, %v1869
      %v1871 = vpop.f32.mrf.mxu0
      %v1872 = vpop.f32.mrf.mxu0
      %v1873 = vadd.f32 0.0, %v1872
      %v1874 = vpop.f32.mrf.mxu0
      %1875 = vmatprep.mubr.bf16.mxu0 0
      %1876 = vmatmul.mubr.bf16.gmra.mxu0 %v1756
      %v1877 = vpop.f32.mrf.mxu0
      %v1878 = vadd.f32 0.0, %v1877
      %v1879 = vpop.f32.mrf.mxu0
      %v1880 = vpop.f32.mrf.mxu0
      %v1881 = vadd.f32 0.0, %v1880
      %v1882 = vpop.f32.mrf.mxu0
      %1883 = vmatprep.mubr.bf16.mxu0 0
      %1884 = vmatmul.mubr.bf16.gmra.mxu0 %v1759
      %v1885 = vpop.f32.mrf.mxu0
      %v1886 = vadd.f32 0.0, %v1885
      %v1887 = vpop.f32.mrf.mxu0
      %v1888 = vpop.f32.mrf.mxu0
      %v1889 = vadd.f32 0.0, %v1888
      %v1890 = vpop.f32.mrf.mxu0
      %1891 = vmatprep.mubr.bf16.mxu0 0
      %1892 = vmatmul.mubr.bf16.gmra.mxu0 %v1762
      %v1893 = vpop.f32.mrf.mxu0
      %v1894 = vadd.f32 0.0, %v1893
      %v1895 = vpop.f32.mrf.mxu0
      %v1896 = vpop.f32.mrf.mxu0
      %v1897 = vadd.f32 0.0, %v1896
      %v1898 = vpop.f32.mrf.mxu0
      %1899 = vmatprep.mubr.bf16.mxu0 0
      %1900 = vmatmul.mubr.bf16.gmra.mxu0 %v1765
      %v1901 = vpop.f32.mrf.mxu0
      %v1902 = vadd.f32 0.0, %v1901
      %v1903 = vpop.f32.mrf.mxu0
      %v1904 = vpop.f32.mrf.mxu0
      %v1905 = vadd.f32 0.0, %v1904
      %v1906 = vpop.f32.mrf.mxu0
      %1907 = vmatprep.mubr.bf16.mxu0 0
      %1908 = vmatmul.mubr.bf16.gmra.mxu0 %v1768
      %v1909 = vpop.f32.mrf.mxu0
      %v1910 = vadd.f32 0.0, %v1909
      %v1911 = vpop.f32.mrf.mxu0
      %v1912 = vpop.f32.mrf.mxu0
      %v1913 = vadd.f32 0.0, %v1912
      %v1914 = vpop.f32.mrf.mxu0
      %1915 = vmatprep.mubr.bf16.mxu0 0
      %1916 = vmatmul.mubr.bf16.gmra.mxu0 %v1771
      %v1917 = vpop.f32.mrf.mxu0
      %v1918 = vadd.f32 0.0, %v1917
      %v1919 = vpop.f32.mrf.mxu0
      %v1920 = vpop.f32.mrf.mxu0
      %v1921 = vadd.f32 0.0, %v1920
      %v1922 = vpop.f32.mrf.mxu0
      %1923 = vmatprep.mubr.bf16.mxu0 0
      %1924 = vmatmul.mubr.bf16.gmra.mxu0 %v1774
      %v1925 = vpop.f32.mrf.mxu0
      %v1926 = vadd.f32 0.0, %v1925
      %v1927 = vpop.f32.mrf.mxu0
      %v1928 = vpop.f32.mrf.mxu0
      %v1929 = vadd.f32 0.0, %v1928
      %v1930 = vpop.f32.mrf.mxu0
      %1931 = vmatprep.mubr.bf16.mxu0 0
      %1932 = vmatmul.mubr.bf16.gmra.mxu0 %v1777
      %v1933 = vpop.f32.mrf.mxu0
      %v1934 = vadd.f32 0.0, %v1933
      %v1935 = vpop.f32.mrf.mxu0
      %v1936 = vpop.f32.mrf.mxu0
      %v1937 = vadd.f32 0.0, %v1936
      %v1938 = vpop.f32.mrf.mxu0
      %1939 = vdwg.mxu0
      %v1940 = vmax.f32 %v1814, 0.0
      %v1941 = vmax.f32 %v1817, 0.0
      %v1942 = vmax.f32 %v1822, 0.0
      %v1943 = vmax.f32 %v1825, 0.0
      %v1944 = vmax.f32 %v1830, 0.0
      %v1945 = vmax.f32 %v1833, 0.0
      %v1946 = vmax.f32 %v1838, 0.0
      %v1947 = vmax.f32 %v1841, 0.0
      %v1948 = vmax.f32 %v1846, 0.0
      %v1949 = vmax.f32 %v1849, 0.0
      %v1950 = vmax.f32 %v1854, 0.0
      %v1951 = vmax.f32 %v1857, 0.0
      %v1952 = vmax.f32 %v1862, 0.0
      %v1953 = vmax.f32 %v1865, 0.0
      %v1954 = vmax.f32 %v1870, 0.0
      %v1955 = vmax.f32 %v1873, 0.0
      %v1956 = vmax.f32 %v1878, 0.0
      %v1957 = vmax.f32 %v1881, 0.0
      %v1958 = vmax.f32 %v1886, 0.0
      %v1959 = vmax.f32 %v1889, 0.0
      %v1960 = vmax.f32 %v1894, 0.0
      %v1961 = vmax.f32 %v1897, 0.0
      %v1962 = vmax.f32 %v1902, 0.0
      %v1963 = vmax.f32 %v1905, 0.0
      %v1964 = vmax.f32 %v1910, 0.0
      %v1965 = vmax.f32 %v1913, 0.0
      %v1966 = vmax.f32 %v1918, 0.0
      %v1967 = vmax.f32 %v1921, 0.0
      %v1968 = vmax.f32 %v1926, 0.0
      %v1969 = vmax.f32 %v1929, 0.0
      %v1970 = vmax.f32 %v1934, 0.0
      %v1971 = vmax.f32 %v1937, 0.0
      %v1972 = vadd.f32 %v1940, %v1941
      %v1973 = vadd.f32 %v1972, %v1942
      %v1974 = vadd.f32 %v1973, %v1943
      %v1975 = vrot.slane %v1974, 4
      %v1976 = vadd.f32 %v1974, %v1975
      %v1977 = vrot.slane %v1976, 2
      %v1978 = vadd.f32 %v1976, %v1977
      %v1979 = vrot.slane %v1978, 1
      %v1980 = vadd.f32 %v1978, %v1979
      %v1981 = vadd.f32 %v1944, %v1945
      %v1982 = vadd.f32 %v1981, %v1946
      %v1983 = vadd.f32 %v1982, %v1947
      %v1984 = vrot.slane %v1983, 4
      %v1985 = vadd.f32 %v1983, %v1984
      %v1986 = vrot.slane %v1985, 2
      %v1987 = vadd.f32 %v1985, %v1986
      %v1988 = vrot.slane %v1987, 1
      %v1989 = vadd.f32 %v1987, %v1988
      %v1990 = vadd.f32 %v1948, %v1949
      %v1991 = vadd.f32 %v1990, %v1950
      %v1992 = vadd.f32 %v1991, %v1951
      %v1993 = vrot.slane %v1992, 4
      %v1994 = vadd.f32 %v1992, %v1993
      %v1995 = vrot.slane %v1994, 2
      %v1996 = vadd.f32 %v1994, %v1995
      %v1997 = vrot.slane %v1996, 1
      %v1998 = vadd.f32 %v1996, %v1997
      %v1999 = vadd.f32 %v1952, %v1953
      %v2000 = vadd.f32 %v1999, %v1954
      %v2001 = vadd.f32 %v2000, %v1955
      %v2002 = vrot.slane %v2001, 4
      %v2003 = vadd.f32 %v2001, %v2002
      %v2004 = vrot.slane %v2003, 2
      %v2005 = vadd.f32 %v2003, %v2004
      %v2006 = vrot.slane %v2005, 1
      %v2007 = vadd.f32 %v2005, %v2006
      %v2008 = vadd.f32 %v1956, %v1957
      %v2009 = vadd.f32 %v2008, %v1958
      %v2010 = vadd.f32 %v2009, %v1959
      %v2011 = vrot.slane %v2010, 4
      %v2012 = vadd.f32 %v2010, %v2011
      %v2013 = vrot.slane %v2012, 2
      %v2014 = vadd.f32 %v2012, %v2013
      %v2015 = vrot.slane %v2014, 1
      %v2016 = vadd.f32 %v2014, %v2015
      %v2017 = vadd.f32 %v1960, %v1961
      %v2018 = vadd.f32 %v2017, %v1962
      %v2019 = vadd.f32 %v2018, %v1963
      %v2020 = vrot.slane %v2019, 4
      %v2021 = vadd.f32 %v2019, %v2020
      %v2022 = vrot.slane %v2021, 2
      %v2023 = vadd.f32 %v2021, %v2022
      %v2024 = vrot.slane %v2023, 1
      %v2025 = vadd.f32 %v2023, %v2024
      %v2026 = vadd.f32 %v1964, %v1965
      %v2027 = vadd.f32 %v2026, %v1966
      %v2028 = vadd.f32 %v2027, %v1967
      %v2029 = vrot.slane %v2028, 4
      %v2030 = vadd.f32 %v2028, %v2029
      %v2031 = vrot.slane %v2030, 2
      %v2032 = vadd.f32 %v2030, %v2031
      %v2033 = vrot.slane %v2032, 1
      %v2034 = vadd.f32 %v2032, %v2033
      %v2035 = vadd.f32 %v1968, %v1969
      %v2036 = vadd.f32 %v2035, %v1970
      %v2037 = vadd.f32 %v2036, %v1971
      %v2038 = vrot.slane %v2037, 4
      %v2039 = vadd.f32 %v2037, %v2038
      %v2040 = vrot.slane %v2039, 2
      %v2041 = vadd.f32 %v2039, %v2040
      %v2042 = vrot.slane %v2041, 1
      %v2043 = vadd.f32 %v2041, %v2042
      %v2044 = vadd.f32 %v1610, %v1980
      %v2045 = vadd.f32 %v1611, %v1989
      %v2046 = vadd.f32 %v1612, %v1998
      %v2047 = vadd.f32 %v1613, %v2007
      %v2048 = vadd.f32 %v1614, %v2016
      %v2049 = vadd.f32 %v1615, %v2025
      %v2050 = vadd.f32 %v1616, %v2034
      %v2051 = vadd.f32 %v1617, %v2043
      %s2052 = scalar_lea.vmem %s276, 64
      %v2053 = vld [vmem:[%s2052] sm:$0xf]
      %v2054 = vld [vmem:[%s2052 + $0x4] sm:$0xf]
      %v2055 = vld [vmem:[%s2052 + $0x8] sm:$0xf]
      %v2056 = vld [vmem:[%s2052 + $0xc] sm:$0xf]
      %v2057 = vld [vmem:[%s2052 + $0x80] sm:$0xf]
      %v2058 = vld [vmem:[%s2052 + $0x84] sm:$0xf]
      %v2059 = vld [vmem:[%s2052 + $0x88] sm:$0xf]
      %v2060 = vld [vmem:[%s2052 + $0x8c] sm:$0xf]
      %v2061 = vld [vmem:[%s2052 + $0x100] sm:$0xf]
      %v2062 = vld [vmem:[%s2052 + $0x104] sm:$0xf]
      %v2063 = vld [vmem:[%s2052 + $0x108] sm:$0xf]
      %v2064 = vld [vmem:[%s2052 + $0x10c] sm:$0xf]
      %v2065 = vld [vmem:[%s2052 + $0x180] sm:$0xf]
      %v2066 = vld [vmem:[%s2052 + $0x184] sm:$0xf]
      %v2067 = vld [vmem:[%s2052 + $0x188] sm:$0xf]
      %v2068 = vld [vmem:[%s2052 + $0x18c] sm:$0xf]
      %v2069 = vld [vmem:[%s2052 + $0x200] sm:$0xf]
      %v2070 = vld [vmem:[%s2052 + $0x204] sm:$0xf]
      %v2071 = vld [vmem:[%s2052 + $0x208] sm:$0xf]
      %v2072 = vld [vmem:[%s2052 + $0x20c] sm:$0xf]
      %v2073 = vld [vmem:[%s2052 + $0x280] sm:$0xf]
      %v2074 = vld [vmem:[%s2052 + $0x284] sm:$0xf]
      %v2075 = vld [vmem:[%s2052 + $0x288] sm:$0xf]
      %v2076 = vld [vmem:[%s2052 + $0x28c] sm:$0xf]
      %v2077 = vld [vmem:[%s2052 + $0x300] sm:$0xf]
      %v2078 = vld [vmem:[%s2052 + $0x304] sm:$0xf]
      %v2079 = vld [vmem:[%s2052 + $0x308] sm:$0xf]
      %v2080 = vld [vmem:[%s2052 + $0x30c] sm:$0xf]
      %v2081 = vld [vmem:[%s2052 + $0x380] sm:$0xf]
      %v2082 = vld [vmem:[%s2052 + $0x384] sm:$0xf]
      %v2083 = vld [vmem:[%s2052 + $0x388] sm:$0xf]
      %v2084 = vld [vmem:[%s2052 + $0x38c] sm:$0xf]
      %v2117 = vunpack.c.l.b16 %v2053
      %v2118 = vunpack.c.l.b16 %v2054
      %v2119 = vunpack.c.l.b16 %v2055
      %v2120 = vunpack.c.l.b16 %v2056
      %v2121 = vunpack.c.l.b16 %v2057
      %v2122 = vunpack.c.l.b16 %v2058
      %v2123 = vunpack.c.l.b16 %v2059
      %v2124 = vunpack.c.l.b16 %v2060
      %v2125 = vunpack.c.l.b16 %v2061
      %v2126 = vunpack.c.l.b16 %v2062
      %v2127 = vunpack.c.l.b16 %v2063
      %v2128 = vunpack.c.l.b16 %v2064
      %v2129 = vunpack.c.l.b16 %v2065
      %v2130 = vunpack.c.l.b16 %v2066
      %v2131 = vunpack.c.l.b16 %v2067
      %v2132 = vunpack.c.l.b16 %v2068
      %v2133 = vunpack.c.l.b16 %v2069
      %v2134 = vunpack.c.l.b16 %v2070
      %v2135 = vunpack.c.l.b16 %v2071
      %v2136 = vunpack.c.l.b16 %v2072
      %v2137 = vunpack.c.l.b16 %v2073
      %v2138 = vunpack.c.l.b16 %v2074
      %v2139 = vunpack.c.l.b16 %v2075
      %v2140 = vunpack.c.l.b16 %v2076
      %v2141 = vunpack.c.l.b16 %v2077
      %v2142 = vunpack.c.l.b16 %v2078
      %v2143 = vunpack.c.l.b16 %v2079
      %v2144 = vunpack.c.l.b16 %v2080
      %v2145 = vunpack.c.l.b16 %v2081
      %v2146 = vunpack.c.l.b16 %v2082
      %v2147 = vunpack.c.l.b16 %v2083
      %v2148 = vunpack.c.l.b16 %v2084
      %v2149 = vpack.c.b16 %v2118, %v2117
      %v2150 = vpack.c.b16 %v2120, %v2119
      %v2151 = vpack.c.b16 %v2122, %v2121
      %v2152 = vpack.c.b16 %v2124, %v2123
      %v2153 = vpack.c.b16 %v2126, %v2125
      %v2154 = vpack.c.b16 %v2128, %v2127
      %v2155 = vpack.c.b16 %v2130, %v2129
      %v2156 = vpack.c.b16 %v2132, %v2131
      %v2157 = vpack.c.b16 %v2134, %v2133
      %v2158 = vpack.c.b16 %v2136, %v2135
      %v2159 = vpack.c.b16 %v2138, %v2137
      %v2160 = vpack.c.b16 %v2140, %v2139
      %v2161 = vpack.c.b16 %v2142, %v2141
      %v2162 = vpack.c.b16 %v2144, %v2143
      %v2163 = vpack.c.b16 %v2146, %v2145
      %v2164 = vpack.c.b16 %v2148, %v2147
      %v2166 = vsel %vm421, %v2149, 0
      %v2169 = vsel %vm421, %v2150, 0
      %v2172 = vsel %vm421, %v2151, 0
      %v2175 = vsel %vm421, %v2152, 0
      %v2178 = vsel %vm421, %v2153, 0
      %v2181 = vsel %vm421, %v2154, 0
      %v2184 = vsel %vm421, %v2155, 0
      %v2187 = vsel %vm421, %v2156, 0
      %v2190 = vsel %vm421, %v2157, 0
      %v2193 = vsel %vm421, %v2158, 0
      %v2196 = vsel %vm421, %v2159, 0
      %v2199 = vsel %vm421, %v2160, 0
      %v2202 = vsel %vm421, %v2161, 0
      %v2205 = vsel %vm421, %v2162, 0
      %v2208 = vsel %vm421, %v2163, 0
      %v2211 = vsel %vm421, %v2164, 0
      %2213 = vmatprep.subr.bf16.mxu0 0
      %2214 = vmatpush1.bf16.msra.mxu0 0
      %2215 = vmatprep.subr.bf16.mxu0 0
      %2216 = vmatpush1.bf16.msra.mxu0 0
      %2217 = vmatprep.subr.bf16.mxu0 0
      %2218 = vmatpush1.bf16.msra.mxu0 0
      %2219 = vmatprep.subr.bf16.mxu0 0
      %2220 = vmatpush1.bf16.msra.mxu0 0
      %2221 = vmatprep.subr.bf16.mxu0 0
      %2222 = vmatpush1.bf16.msra.mxu0 0
      %2223 = vmatprep.subr.bf16.mxu0 0
      %2224 = vmatpush1.bf16.msra.mxu0 %v475
      %2225 = vmatprep.subr.bf16.mxu0 0
      %2226 = vmatpush1.bf16.msra.mxu0 %v417
      %2227 = vmatprep.subr.bf16.mxu0 0
      %2228 = vmatpush1.bf16.msra.mxu0 %v416
      %2229 = vmatprep.subr.bf16.mxu0 0
      %2230 = vmatpush2.bf16.msra.mxu0 0
      %2231 = vmatprep.subr.bf16.mxu0 0
      %2232 = vmatpush2.bf16.msra.mxu0 0
      %2233 = vmatprep.subr.bf16.mxu0 0
      %2234 = vmatpush2.bf16.msra.mxu0 0
      %2235 = vmatprep.subr.bf16.mxu0 0
      %2236 = vmatpush2.bf16.msra.mxu0 0
      %2237 = vmatprep.subr.bf16.mxu0 0
      %2238 = vmatpush2.bf16.msra.mxu0 0
      %2239 = vmatprep.subr.bf16.mxu0 0
      %2240 = vmatpush2.bf16.msra.mxu0 0
      %2241 = vmatprep.subr.bf16.mxu0 0
      %2242 = vmatpush2.bf16.msra.mxu0 0
      %2243 = vmatprep.subr.bf16.mxu0 0
      %2244 = vmatpush2.bf16.msra.mxu0 0
      %2245 = vmatprep.mubr.bf16.mxu0 0
      %2246 = vmatmul.mubr.bf16.gmra.mxu0 %v2166
      %v2247 = vpop.f32.mrf.mxu0
      %v2248 = vadd.f32 0.0, %v2247
      %v2249 = vpop.f32.mrf.mxu0
      %v2250 = vpop.f32.mrf.mxu0
      %v2251 = vadd.f32 0.0, %v2250
      %v2252 = vpop.f32.mrf.mxu0
      %2253 = vmatprep.mubr.bf16.mxu0 0
      %2254 = vmatmul.mubr.bf16.gmra.mxu0 %v2169
      %v2255 = vpop.f32.mrf.mxu0
      %v2256 = vadd.f32 0.0, %v2255
      %v2257 = vpop.f32.mrf.mxu0
      %v2258 = vpop.f32.mrf.mxu0
      %v2259 = vadd.f32 0.0, %v2258
      %v2260 = vpop.f32.mrf.mxu0
      %2261 = vmatprep.mubr.bf16.mxu0 0
      %2262 = vmatmul.mubr.bf16.gmra.mxu0 %v2172
      %v2263 = vpop.f32.mrf.mxu0
      %v2264 = vadd.f32 0.0, %v2263
      %v2265 = vpop.f32.mrf.mxu0
      %v2266 = vpop.f32.mrf.mxu0
      %v2267 = vadd.f32 0.0, %v2266
      %v2268 = vpop.f32.mrf.mxu0
      %2269 = vmatprep.mubr.bf16.mxu0 0
      %2270 = vmatmul.mubr.bf16.gmra.mxu0 %v2175
      %v2271 = vpop.f32.mrf.mxu0
      %v2272 = vadd.f32 0.0, %v2271
      %v2273 = vpop.f32.mrf.mxu0
      %v2274 = vpop.f32.mrf.mxu0
      %v2275 = vadd.f32 0.0, %v2274
      %v2276 = vpop.f32.mrf.mxu0
      %2277 = vmatprep.mubr.bf16.mxu0 0
      %2278 = vmatmul.mubr.bf16.gmra.mxu0 %v2178
      %v2279 = vpop.f32.mrf.mxu0
      %v2280 = vadd.f32 0.0, %v2279
      %v2281 = vpop.f32.mrf.mxu0
      %v2282 = vpop.f32.mrf.mxu0
      %v2283 = vadd.f32 0.0, %v2282
      %v2284 = vpop.f32.mrf.mxu0
      %2285 = vmatprep.mubr.bf16.mxu0 0
      %2286 = vmatmul.mubr.bf16.gmra.mxu0 %v2181
      %v2287 = vpop.f32.mrf.mxu0
      %v2288 = vadd.f32 0.0, %v2287
      %v2289 = vpop.f32.mrf.mxu0
      %v2290 = vpop.f32.mrf.mxu0
      %v2291 = vadd.f32 0.0, %v2290
      %v2292 = vpop.f32.mrf.mxu0
      %2293 = vmatprep.mubr.bf16.mxu0 0
      %2294 = vmatmul.mubr.bf16.gmra.mxu0 %v2184
      %v2295 = vpop.f32.mrf.mxu0
      %v2296 = vadd.f32 0.0, %v2295
      %v2297 = vpop.f32.mrf.mxu0
      %v2298 = vpop.f32.mrf.mxu0
      %v2299 = vadd.f32 0.0, %v2298
      %v2300 = vpop.f32.mrf.mxu0
      %2301 = vmatprep.mubr.bf16.mxu0 0
      %2302 = vmatmul.mubr.bf16.gmra.mxu0 %v2187
      %v2303 = vpop.f32.mrf.mxu0
      %v2304 = vadd.f32 0.0, %v2303
      %v2305 = vpop.f32.mrf.mxu0
      %v2306 = vpop.f32.mrf.mxu0
      %v2307 = vadd.f32 0.0, %v2306
      %v2308 = vpop.f32.mrf.mxu0
      %2309 = vmatprep.mubr.bf16.mxu0 0
      %2310 = vmatmul.mubr.bf16.gmra.mxu0 %v2190
      %v2311 = vpop.f32.mrf.mxu0
      %v2312 = vadd.f32 0.0, %v2311
      %v2313 = vpop.f32.mrf.mxu0
      %v2314 = vpop.f32.mrf.mxu0
      %v2315 = vadd.f32 0.0, %v2314
      %v2316 = vpop.f32.mrf.mxu0
      %2317 = vmatprep.mubr.bf16.mxu0 0
      %2318 = vmatmul.mubr.bf16.gmra.mxu0 %v2193
      %v2319 = vpop.f32.mrf.mxu0
      %v2320 = vadd.f32 0.0, %v2319
      %v2321 = vpop.f32.mrf.mxu0
      %v2322 = vpop.f32.mrf.mxu0
      %v2323 = vadd.f32 0.0, %v2322
      %v2324 = vpop.f32.mrf.mxu0
      %2325 = vmatprep.mubr.bf16.mxu0 0
      %2326 = vmatmul.mubr.bf16.gmra.mxu0 %v2196
      %v2327 = vpop.f32.mrf.mxu0
      %v2328 = vadd.f32 0.0, %v2327
      %v2329 = vpop.f32.mrf.mxu0
      %v2330 = vpop.f32.mrf.mxu0
      %v2331 = vadd.f32 0.0, %v2330
      %v2332 = vpop.f32.mrf.mxu0
      %2333 = vmatprep.mubr.bf16.mxu0 0
      %2334 = vmatmul.mubr.bf16.gmra.mxu0 %v2199
      %v2335 = vpop.f32.mrf.mxu0
      %v2336 = vadd.f32 0.0, %v2335
      %v2337 = vpop.f32.mrf.mxu0
      %v2338 = vpop.f32.mrf.mxu0
      %v2339 = vadd.f32 0.0, %v2338
      %v2340 = vpop.f32.mrf.mxu0
      %2341 = vmatprep.mubr.bf16.mxu0 0
      %2342 = vmatmul.mubr.bf16.gmra.mxu0 %v2202
      %v2343 = vpop.f32.mrf.mxu0
      %v2344 = vadd.f32 0.0, %v2343
      %v2345 = vpop.f32.mrf.mxu0
      %v2346 = vpop.f32.mrf.mxu0
      %v2347 = vadd.f32 0.0, %v2346
      %v2348 = vpop.f32.mrf.mxu0
      %2349 = vmatprep.mubr.bf16.mxu0 0
      %2350 = vmatmul.mubr.bf16.gmra.mxu0 %v2205
      %v2351 = vpop.f32.mrf.mxu0
      %v2352 = vadd.f32 0.0, %v2351
      %v2353 = vpop.f32.mrf.mxu0
      %v2354 = vpop.f32.mrf.mxu0
      %v2355 = vadd.f32 0.0, %v2354
      %v2356 = vpop.f32.mrf.mxu0
      %2357 = vmatprep.mubr.bf16.mxu0 0
      %2358 = vmatmul.mubr.bf16.gmra.mxu0 %v2208
      %v2359 = vpop.f32.mrf.mxu0
      %v2360 = vadd.f32 0.0, %v2359
      %v2361 = vpop.f32.mrf.mxu0
      %v2362 = vpop.f32.mrf.mxu0
      %v2363 = vadd.f32 0.0, %v2362
      %v2364 = vpop.f32.mrf.mxu0
      %2365 = vmatprep.mubr.bf16.mxu0 0
      %2366 = vmatmul.mubr.bf16.gmra.mxu0 %v2211
      %v2367 = vpop.f32.mrf.mxu0
      %v2368 = vadd.f32 0.0, %v2367
      %v2369 = vpop.f32.mrf.mxu0
      %v2370 = vpop.f32.mrf.mxu0
      %v2371 = vadd.f32 0.0, %v2370
      %v2372 = vpop.f32.mrf.mxu0
      %2373 = vdwg.mxu0
      %v2374 = vmax.f32 %v2248, 0.0
      %v2375 = vmax.f32 %v2251, 0.0
      %v2376 = vmax.f32 %v2256, 0.0
      %v2377 = vmax.f32 %v2259, 0.0
      %v2378 = vmax.f32 %v2264, 0.0
      %v2379 = vmax.f32 %v2267, 0.0
      %v2380 = vmax.f32 %v2272, 0.0
      %v2381 = vmax.f32 %v2275, 0.0
      %v2382 = vmax.f32 %v2280, 0.0
      %v2383 = vmax.f32 %v2283, 0.0
      %v2384 = vmax.f32 %v2288, 0.0
      %v2385 = vmax.f32 %v2291, 0.0
      %v2386 = vmax.f32 %v2296, 0.0
      %v2387 = vmax.f32 %v2299, 0.0
      %v2388 = vmax.f32 %v2304, 0.0
      %v2389 = vmax.f32 %v2307, 0.0
      %v2390 = vmax.f32 %v2312, 0.0
      %v2391 = vmax.f32 %v2315, 0.0
      %v2392 = vmax.f32 %v2320, 0.0
      %v2393 = vmax.f32 %v2323, 0.0
      %v2394 = vmax.f32 %v2328, 0.0
      %v2395 = vmax.f32 %v2331, 0.0
      %v2396 = vmax.f32 %v2336, 0.0
      %v2397 = vmax.f32 %v2339, 0.0
      %v2398 = vmax.f32 %v2344, 0.0
      %v2399 = vmax.f32 %v2347, 0.0
      %v2400 = vmax.f32 %v2352, 0.0
      %v2401 = vmax.f32 %v2355, 0.0
      %v2402 = vmax.f32 %v2360, 0.0
      %v2403 = vmax.f32 %v2363, 0.0
      %v2404 = vmax.f32 %v2368, 0.0
      %v2405 = vmax.f32 %v2371, 0.0
      %v2406 = vadd.f32 %v2374, %v2375
      %v2407 = vadd.f32 %v2406, %v2376
      %v2408 = vadd.f32 %v2407, %v2377
      %v2409 = vrot.slane %v2408, 4
      %v2410 = vadd.f32 %v2408, %v2409
      %v2411 = vrot.slane %v2410, 2
      %v2412 = vadd.f32 %v2410, %v2411
      %v2413 = vrot.slane %v2412, 1
      %v2414 = vadd.f32 %v2412, %v2413
      %v2415 = vadd.f32 %v2378, %v2379
      %v2416 = vadd.f32 %v2415, %v2380
      %v2417 = vadd.f32 %v2416, %v2381
      %v2418 = vrot.slane %v2417, 4
      %v2419 = vadd.f32 %v2417, %v2418
      %v2420 = vrot.slane %v2419, 2
      %v2421 = vadd.f32 %v2419, %v2420
      %v2422 = vrot.slane %v2421, 1
      %v2423 = vadd.f32 %v2421, %v2422
      %v2424 = vadd.f32 %v2382, %v2383
      %v2425 = vadd.f32 %v2424, %v2384
      %v2426 = vadd.f32 %v2425, %v2385
      %v2427 = vrot.slane %v2426, 4
      %v2428 = vadd.f32 %v2426, %v2427
      %v2429 = vrot.slane %v2428, 2
      %v2430 = vadd.f32 %v2428, %v2429
      %v2431 = vrot.slane %v2430, 1
      %v2432 = vadd.f32 %v2430, %v2431
      %v2433 = vadd.f32 %v2386, %v2387
      %v2434 = vadd.f32 %v2433, %v2388
      %v2435 = vadd.f32 %v2434, %v2389
      %v2436 = vrot.slane %v2435, 4
      %v2437 = vadd.f32 %v2435, %v2436
      %v2438 = vrot.slane %v2437, 2
      %v2439 = vadd.f32 %v2437, %v2438
      %v2440 = vrot.slane %v2439, 1
      %v2441 = vadd.f32 %v2439, %v2440
      %v2442 = vadd.f32 %v2390, %v2391
      %v2443 = vadd.f32 %v2442, %v2392
      %v2444 = vadd.f32 %v2443, %v2393
      %v2445 = vrot.slane %v2444, 4
      %v2446 = vadd.f32 %v2444, %v2445
      %v2447 = vrot.slane %v2446, 2
      %v2448 = vadd.f32 %v2446, %v2447
      %v2449 = vrot.slane %v2448, 1
      %v2450 = vadd.f32 %v2448, %v2449
      %v2451 = vadd.f32 %v2394, %v2395
      %v2452 = vadd.f32 %v2451, %v2396
      %v2453 = vadd.f32 %v2452, %v2397
      %v2454 = vrot.slane %v2453, 4
      %v2455 = vadd.f32 %v2453, %v2454
      %v2456 = vrot.slane %v2455, 2
      %v2457 = vadd.f32 %v2455, %v2456
      %v2458 = vrot.slane %v2457, 1
      %v2459 = vadd.f32 %v2457, %v2458
      %v2460 = vadd.f32 %v2398, %v2399
      %v2461 = vadd.f32 %v2460, %v2400
      %v2462 = vadd.f32 %v2461, %v2401
      %v2463 = vrot.slane %v2462, 4
      %v2464 = vadd.f32 %v2462, %v2463
      %v2465 = vrot.slane %v2464, 2
      %v2466 = vadd.f32 %v2464, %v2465
      %v2467 = vrot.slane %v2466, 1
      %v2468 = vadd.f32 %v2466, %v2467
      %v2469 = vadd.f32 %v2402, %v2403
      %v2470 = vadd.f32 %v2469, %v2404
      %v2471 = vadd.f32 %v2470, %v2405
      %v2472 = vrot.slane %v2471, 4
      %v2473 = vadd.f32 %v2471, %v2472
      %v2474 = vrot.slane %v2473, 2
      %v2475 = vadd.f32 %v2473, %v2474
      %v2476 = vrot.slane %v2475, 1
      %v2477 = vadd.f32 %v2475, %v2476
      %v2478 = vadd.f32 %v2044, %v2414
      %v2479 = vadd.f32 %v2045, %v2423
      %v2480 = vadd.f32 %v2046, %v2432
      %v2481 = vadd.f32 %v2047, %v2441
      %v2482 = vadd.f32 %v2048, %v2450
      %v2483 = vadd.f32 %v2049, %v2459
      %v2484 = vadd.f32 %v2050, %v2468
      %v2485 = vadd.f32 %v2051, %v2477
      %s2486 = scalar_lea.vmem %s276, 80
      %v2487 = vld [vmem:[%s2486] sm:$0xf]
      %v2488 = vld [vmem:[%s2486 + $0x4] sm:$0xf]
      %v2489 = vld [vmem:[%s2486 + $0x8] sm:$0xf]
      %v2490 = vld [vmem:[%s2486 + $0xc] sm:$0xf]
      %v2491 = vld [vmem:[%s2486 + $0x80] sm:$0xf]
      %v2492 = vld [vmem:[%s2486 + $0x84] sm:$0xf]
      %v2493 = vld [vmem:[%s2486 + $0x88] sm:$0xf]
      %v2494 = vld [vmem:[%s2486 + $0x8c] sm:$0xf]
      %v2495 = vld [vmem:[%s2486 + $0x100] sm:$0xf]
      %v2496 = vld [vmem:[%s2486 + $0x104] sm:$0xf]
      %v2497 = vld [vmem:[%s2486 + $0x108] sm:$0xf]
      %v2498 = vld [vmem:[%s2486 + $0x10c] sm:$0xf]
      %v2499 = vld [vmem:[%s2486 + $0x180] sm:$0xf]
      %v2500 = vld [vmem:[%s2486 + $0x184] sm:$0xf]
      %v2501 = vld [vmem:[%s2486 + $0x188] sm:$0xf]
      %v2502 = vld [vmem:[%s2486 + $0x18c] sm:$0xf]
      %v2503 = vld [vmem:[%s2486 + $0x200] sm:$0xf]
      %v2504 = vld [vmem:[%s2486 + $0x204] sm:$0xf]
      %v2505 = vld [vmem:[%s2486 + $0x208] sm:$0xf]
      %v2506 = vld [vmem:[%s2486 + $0x20c] sm:$0xf]
      %v2507 = vld [vmem:[%s2486 + $0x280] sm:$0xf]
      %v2508 = vld [vmem:[%s2486 + $0x284] sm:$0xf]
      %v2509 = vld [vmem:[%s2486 + $0x288] sm:$0xf]
      %v2510 = vld [vmem:[%s2486 + $0x28c] sm:$0xf]
      %v2511 = vld [vmem:[%s2486 + $0x300] sm:$0xf]
      %v2512 = vld [vmem:[%s2486 + $0x304] sm:$0xf]
      %v2513 = vld [vmem:[%s2486 + $0x308] sm:$0xf]
      %v2514 = vld [vmem:[%s2486 + $0x30c] sm:$0xf]
      %v2515 = vld [vmem:[%s2486 + $0x380] sm:$0xf]
      %v2516 = vld [vmem:[%s2486 + $0x384] sm:$0xf]
      %v2517 = vld [vmem:[%s2486 + $0x388] sm:$0xf]
      %v2518 = vld [vmem:[%s2486 + $0x38c] sm:$0xf]
      %v2551 = vunpack.c.l.b16 %v2487
      %v2552 = vunpack.c.l.b16 %v2488
      %v2553 = vunpack.c.l.b16 %v2489
      %v2554 = vunpack.c.l.b16 %v2490
      %v2555 = vunpack.c.l.b16 %v2491
      %v2556 = vunpack.c.l.b16 %v2492
      %v2557 = vunpack.c.l.b16 %v2493
      %v2558 = vunpack.c.l.b16 %v2494
      %v2559 = vunpack.c.l.b16 %v2495
      %v2560 = vunpack.c.l.b16 %v2496
      %v2561 = vunpack.c.l.b16 %v2497
      %v2562 = vunpack.c.l.b16 %v2498
      %v2563 = vunpack.c.l.b16 %v2499
      %v2564 = vunpack.c.l.b16 %v2500
      %v2565 = vunpack.c.l.b16 %v2501
      %v2566 = vunpack.c.l.b16 %v2502
      %v2567 = vunpack.c.l.b16 %v2503
      %v2568 = vunpack.c.l.b16 %v2504
      %v2569 = vunpack.c.l.b16 %v2505
      %v2570 = vunpack.c.l.b16 %v2506
      %v2571 = vunpack.c.l.b16 %v2507
      %v2572 = vunpack.c.l.b16 %v2508
      %v2573 = vunpack.c.l.b16 %v2509
      %v2574 = vunpack.c.l.b16 %v2510
      %v2575 = vunpack.c.l.b16 %v2511
      %v2576 = vunpack.c.l.b16 %v2512
      %v2577 = vunpack.c.l.b16 %v2513
      %v2578 = vunpack.c.l.b16 %v2514
      %v2579 = vunpack.c.l.b16 %v2515
      %v2580 = vunpack.c.l.b16 %v2516
      %v2581 = vunpack.c.l.b16 %v2517
      %v2582 = vunpack.c.l.b16 %v2518
      %v2583 = vpack.c.b16 %v2552, %v2551
      %v2584 = vpack.c.b16 %v2554, %v2553
      %v2585 = vpack.c.b16 %v2556, %v2555
      %v2586 = vpack.c.b16 %v2558, %v2557
      %v2587 = vpack.c.b16 %v2560, %v2559
      %v2588 = vpack.c.b16 %v2562, %v2561
      %v2589 = vpack.c.b16 %v2564, %v2563
      %v2590 = vpack.c.b16 %v2566, %v2565
      %v2591 = vpack.c.b16 %v2568, %v2567
      %v2592 = vpack.c.b16 %v2570, %v2569
      %v2593 = vpack.c.b16 %v2572, %v2571
      %v2594 = vpack.c.b16 %v2574, %v2573
      %v2595 = vpack.c.b16 %v2576, %v2575
      %v2596 = vpack.c.b16 %v2578, %v2577
      %v2597 = vpack.c.b16 %v2580, %v2579
      %v2598 = vpack.c.b16 %v2582, %v2581
      %v2600 = vsel %vm421, %v2583, 0
      %v2603 = vsel %vm421, %v2584, 0
      %v2606 = vsel %vm421, %v2585, 0
      %v2609 = vsel %vm421, %v2586, 0
      %v2612 = vsel %vm421, %v2587, 0
      %v2615 = vsel %vm421, %v2588, 0
      %v2618 = vsel %vm421, %v2589, 0
      %v2621 = vsel %vm421, %v2590, 0
      %v2624 = vsel %vm421, %v2591, 0
      %v2627 = vsel %vm421, %v2592, 0
      %v2630 = vsel %vm421, %v2593, 0
      %v2633 = vsel %vm421, %v2594, 0
      %v2636 = vsel %vm421, %v2595, 0
      %v2639 = vsel %vm421, %v2596, 0
      %v2642 = vsel %vm421, %v2597, 0
      %v2645 = vsel %vm421, %v2598, 0
      %2647 = vmatprep.subr.bf16.mxu0 0
      %2648 = vmatpush1.bf16.msra.mxu0 0
      %2649 = vmatprep.subr.bf16.mxu0 0
      %2650 = vmatpush1.bf16.msra.mxu0 0
      %2651 = vmatprep.subr.bf16.mxu0 0
      %2652 = vmatpush1.bf16.msra.mxu0 0
      %2653 = vmatprep.subr.bf16.mxu0 0
      %2654 = vmatpush1.bf16.msra.mxu0 0
      %2655 = vmatprep.subr.bf16.mxu0 0
      %2656 = vmatpush1.bf16.msra.mxu0 0
      %2657 = vmatprep.subr.bf16.mxu0 0
      %2658 = vmatpush1.bf16.msra.mxu0 %v475
      %2659 = vmatprep.subr.bf16.mxu0 0
      %2660 = vmatpush1.bf16.msra.mxu0 %v417
      %2661 = vmatprep.subr.bf16.mxu0 0
      %2662 = vmatpush1.bf16.msra.mxu0 %v416
      %2663 = vmatprep.subr.bf16.mxu0 0
      %2664 = vmatpush2.bf16.msra.mxu0 0
      %2665 = vmatprep.subr.bf16.mxu0 0
      %2666 = vmatpush2.bf16.msra.mxu0 0
      %2667 = vmatprep.subr.bf16.mxu0 0
      %2668 = vmatpush2.bf16.msra.mxu0 0
      %2669 = vmatprep.subr.bf16.mxu0 0
      %2670 = vmatpush2.bf16.msra.mxu0 0
      %2671 = vmatprep.subr.bf16.mxu0 0
      %2672 = vmatpush2.bf16.msra.mxu0 0
      %2673 = vmatprep.subr.bf16.mxu0 0
      %2674 = vmatpush2.bf16.msra.mxu0 0
      %2675 = vmatprep.subr.bf16.mxu0 0
      %2676 = vmatpush2.bf16.msra.mxu0 0
      %2677 = vmatprep.subr.bf16.mxu0 0
      %2678 = vmatpush2.bf16.msra.mxu0 0
      %2679 = vmatprep.mubr.bf16.mxu0 0
      %2680 = vmatmul.mubr.bf16.gmra.mxu0 %v2600
      %v2681 = vpop.f32.mrf.mxu0
      %v2682 = vadd.f32 0.0, %v2681
      %v2683 = vpop.f32.mrf.mxu0
      %v2684 = vpop.f32.mrf.mxu0
      %v2685 = vadd.f32 0.0, %v2684
      %v2686 = vpop.f32.mrf.mxu0
      %2687 = vmatprep.mubr.bf16.mxu0 0
      %2688 = vmatmul.mubr.bf16.gmra.mxu0 %v2603
      %v2689 = vpop.f32.mrf.mxu0
      %v2690 = vadd.f32 0.0, %v2689
      %v2691 = vpop.f32.mrf.mxu0
      %v2692 = vpop.f32.mrf.mxu0
      %v2693 = vadd.f32 0.0, %v2692
      %v2694 = vpop.f32.mrf.mxu0
      %2695 = vmatprep.mubr.bf16.mxu0 0
      %2696 = vmatmul.mubr.bf16.gmra.mxu0 %v2606
      %v2697 = vpop.f32.mrf.mxu0
      %v2698 = vadd.f32 0.0, %v2697
      %v2699 = vpop.f32.mrf.mxu0
      %v2700 = vpop.f32.mrf.mxu0
      %v2701 = vadd.f32 0.0, %v2700
      %v2702 = vpop.f32.mrf.mxu0
      %2703 = vmatprep.mubr.bf16.mxu0 0
      %2704 = vmatmul.mubr.bf16.gmra.mxu0 %v2609
      %v2705 = vpop.f32.mrf.mxu0
      %v2706 = vadd.f32 0.0, %v2705
      %v2707 = vpop.f32.mrf.mxu0
      %v2708 = vpop.f32.mrf.mxu0
      %v2709 = vadd.f32 0.0, %v2708
      %v2710 = vpop.f32.mrf.mxu0
      %2711 = vmatprep.mubr.bf16.mxu0 0
      %2712 = vmatmul.mubr.bf16.gmra.mxu0 %v2612
      %v2713 = vpop.f32.mrf.mxu0
      %v2714 = vadd.f32 0.0, %v2713
      %v2715 = vpop.f32.mrf.mxu0
      %v2716 = vpop.f32.mrf.mxu0
      %v2717 = vadd.f32 0.0, %v2716
      %v2718 = vpop.f32.mrf.mxu0
      %2719 = vmatprep.mubr.bf16.mxu0 0
      %2720 = vmatmul.mubr.bf16.gmra.mxu0 %v2615
      %v2721 = vpop.f32.mrf.mxu0
      %v2722 = vadd.f32 0.0, %v2721
      %v2723 = vpop.f32.mrf.mxu0
      %v2724 = vpop.f32.mrf.mxu0
      %v2725 = vadd.f32 0.0, %v2724
      %v2726 = vpop.f32.mrf.mxu0
      %2727 = vmatprep.mubr.bf16.mxu0 0
      %2728 = vmatmul.mubr.bf16.gmra.mxu0 %v2618
      %v2729 = vpop.f32.mrf.mxu0
      %v2730 = vadd.f32 0.0, %v2729
      %v2731 = vpop.f32.mrf.mxu0
      %v2732 = vpop.f32.mrf.mxu0
      %v2733 = vadd.f32 0.0, %v2732
      %v2734 = vpop.f32.mrf.mxu0
      %2735 = vmatprep.mubr.bf16.mxu0 0
      %2736 = vmatmul.mubr.bf16.gmra.mxu0 %v2621
      %v2737 = vpop.f32.mrf.mxu0
      %v2738 = vadd.f32 0.0, %v2737
      %v2739 = vpop.f32.mrf.mxu0
      %v2740 = vpop.f32.mrf.mxu0
      %v2741 = vadd.f32 0.0, %v2740
      %v2742 = vpop.f32.mrf.mxu0
      %2743 = vmatprep.mubr.bf16.mxu0 0
      %2744 = vmatmul.mubr.bf16.gmra.mxu0 %v2624
      %v2745 = vpop.f32.mrf.mxu0
      %v2746 = vadd.f32 0.0, %v2745
      %v2747 = vpop.f32.mrf.mxu0
      %v2748 = vpop.f32.mrf.mxu0
      %v2749 = vadd.f32 0.0, %v2748
      %v2750 = vpop.f32.mrf.mxu0
      %2751 = vmatprep.mubr.bf16.mxu0 0
      %2752 = vmatmul.mubr.bf16.gmra.mxu0 %v2627
      %v2753 = vpop.f32.mrf.mxu0
      %v2754 = vadd.f32 0.0, %v2753
      %v2755 = vpop.f32.mrf.mxu0
      %v2756 = vpop.f32.mrf.mxu0
      %v2757 = vadd.f32 0.0, %v2756
      %v2758 = vpop.f32.mrf.mxu0
      %2759 = vmatprep.mubr.bf16.mxu0 0
      %2760 = vmatmul.mubr.bf16.gmra.mxu0 %v2630
      %v2761 = vpop.f32.mrf.mxu0
      %v2762 = vadd.f32 0.0, %v2761
      %v2763 = vpop.f32.mrf.mxu0
      %v2764 = vpop.f32.mrf.mxu0
      %v2765 = vadd.f32 0.0, %v2764
      %v2766 = vpop.f32.mrf.mxu0
      %2767 = vmatprep.mubr.bf16.mxu0 0
      %2768 = vmatmul.mubr.bf16.gmra.mxu0 %v2633
      %v2769 = vpop.f32.mrf.mxu0
      %v2770 = vadd.f32 0.0, %v2769
      %v2771 = vpop.f32.mrf.mxu0
      %v2772 = vpop.f32.mrf.mxu0
      %v2773 = vadd.f32 0.0, %v2772
      %v2774 = vpop.f32.mrf.mxu0
      %2775 = vmatprep.mubr.bf16.mxu0 0
      %2776 = vmatmul.mubr.bf16.gmra.mxu0 %v2636
      %v2777 = vpop.f32.mrf.mxu0
      %v2778 = vadd.f32 0.0, %v2777
      %v2779 = vpop.f32.mrf.mxu0
      %v2780 = vpop.f32.mrf.mxu0
      %v2781 = vadd.f32 0.0, %v2780
      %v2782 = vpop.f32.mrf.mxu0
      %2783 = vmatprep.mubr.bf16.mxu0 0
      %2784 = vmatmul.mubr.bf16.gmra.mxu0 %v2639
      %v2785 = vpop.f32.mrf.mxu0
      %v2786 = vadd.f32 0.0, %v2785
      %v2787 = vpop.f32.mrf.mxu0
      %v2788 = vpop.f32.mrf.mxu0
      %v2789 = vadd.f32 0.0, %v2788
      %v2790 = vpop.f32.mrf.mxu0
      %2791 = vmatprep.mubr.bf16.mxu0 0
      %2792 = vmatmul.mubr.bf16.gmra.mxu0 %v2642
      %v2793 = vpop.f32.mrf.mxu0
      %v2794 = vadd.f32 0.0, %v2793
      %v2795 = vpop.f32.mrf.mxu0
      %v2796 = vpop.f32.mrf.mxu0
      %v2797 = vadd.f32 0.0, %v2796
      %v2798 = vpop.f32.mrf.mxu0
      %2799 = vmatprep.mubr.bf16.mxu0 0
      %2800 = vmatmul.mubr.bf16.gmra.mxu0 %v2645
      %v2801 = vpop.f32.mrf.mxu0
      %v2802 = vadd.f32 0.0, %v2801
      %v2803 = vpop.f32.mrf.mxu0
      %v2804 = vpop.f32.mrf.mxu0
      %v2805 = vadd.f32 0.0, %v2804
      %v2806 = vpop.f32.mrf.mxu0
      %2807 = vdwg.mxu0
      %v2808 = vmax.f32 %v2682, 0.0
      %v2809 = vmax.f32 %v2685, 0.0
      %v2810 = vmax.f32 %v2690, 0.0
      %v2811 = vmax.f32 %v2693, 0.0
      %v2812 = vmax.f32 %v2698, 0.0
      %v2813 = vmax.f32 %v2701, 0.0
      %v2814 = vmax.f32 %v2706, 0.0
      %v2815 = vmax.f32 %v2709, 0.0
      %v2816 = vmax.f32 %v2714, 0.0
      %v2817 = vmax.f32 %v2717, 0.0
      %v2818 = vmax.f32 %v2722, 0.0
      %v2819 = vmax.f32 %v2725, 0.0
      %v2820 = vmax.f32 %v2730, 0.0
      %v2821 = vmax.f32 %v2733, 0.0
      %v2822 = vmax.f32 %v2738, 0.0
      %v2823 = vmax.f32 %v2741, 0.0
      %v2824 = vmax.f32 %v2746, 0.0
      %v2825 = vmax.f32 %v2749, 0.0
      %v2826 = vmax.f32 %v2754, 0.0
      %v2827 = vmax.f32 %v2757, 0.0
      %v2828 = vmax.f32 %v2762, 0.0
      %v2829 = vmax.f32 %v2765, 0.0
      %v2830 = vmax.f32 %v2770, 0.0
      %v2831 = vmax.f32 %v2773, 0.0
      %v2832 = vmax.f32 %v2778, 0.0
      %v2833 = vmax.f32 %v2781, 0.0
      %v2834 = vmax.f32 %v2786, 0.0
      %v2835 = vmax.f32 %v2789, 0.0
      %v2836 = vmax.f32 %v2794, 0.0
      %v2837 = vmax.f32 %v2797, 0.0
      %v2838 = vmax.f32 %v2802, 0.0
      %v2839 = vmax.f32 %v2805, 0.0
      %v2840 = vadd.f32 %v2808, %v2809
      %v2841 = vadd.f32 %v2840, %v2810
      %v2842 = vadd.f32 %v2841, %v2811
      %v2843 = vrot.slane %v2842, 4
      %v2844 = vadd.f32 %v2842, %v2843
      %v2845 = vrot.slane %v2844, 2
      %v2846 = vadd.f32 %v2844, %v2845
      %v2847 = vrot.slane %v2846, 1
      %v2848 = vadd.f32 %v2846, %v2847
      %v2849 = vadd.f32 %v2812, %v2813
      %v2850 = vadd.f32 %v2849, %v2814
      %v2851 = vadd.f32 %v2850, %v2815
      %v2852 = vrot.slane %v2851, 4
      %v2853 = vadd.f32 %v2851, %v2852
      %v2854 = vrot.slane %v2853, 2
      %v2855 = vadd.f32 %v2853, %v2854
      %v2856 = vrot.slane %v2855, 1
      %v2857 = vadd.f32 %v2855, %v2856
      %v2858 = vadd.f32 %v2816, %v2817
      %v2859 = vadd.f32 %v2858, %v2818
      %v2860 = vadd.f32 %v2859, %v2819
      %v2861 = vrot.slane %v2860, 4
      %v2862 = vadd.f32 %v2860, %v2861
      %v2863 = vrot.slane %v2862, 2
      %v2864 = vadd.f32 %v2862, %v2863
      %v2865 = vrot.slane %v2864, 1
      %v2866 = vadd.f32 %v2864, %v2865
      %v2867 = vadd.f32 %v2820, %v2821
      %v2868 = vadd.f32 %v2867, %v2822
      %v2869 = vadd.f32 %v2868, %v2823
      %v2870 = vrot.slane %v2869, 4
      %v2871 = vadd.f32 %v2869, %v2870
      %v2872 = vrot.slane %v2871, 2
      %v2873 = vadd.f32 %v2871, %v2872
      %v2874 = vrot.slane %v2873, 1
      %v2875 = vadd.f32 %v2873, %v2874
      %v2876 = vadd.f32 %v2824, %v2825
      %v2877 = vadd.f32 %v2876, %v2826
      %v2878 = vadd.f32 %v2877, %v2827
      %v2879 = vrot.slane %v2878, 4
      %v2880 = vadd.f32 %v2878, %v2879
      %v2881 = vrot.slane %v2880, 2
      %v2882 = vadd.f32 %v2880, %v2881
      %v2883 = vrot.slane %v2882, 1
      %v2884 = vadd.f32 %v2882, %v2883
      %v2885 = vadd.f32 %v2828, %v2829
      %v2886 = vadd.f32 %v2885, %v2830
      %v2887 = vadd.f32 %v2886, %v2831
      %v2888 = vrot.slane %v2887, 4
      %v2889 = vadd.f32 %v2887, %v2888
      %v2890 = vrot.slane %v2889, 2
      %v2891 = vadd.f32 %v2889, %v2890
      %v2892 = vrot.slane %v2891, 1
      %v2893 = vadd.f32 %v2891, %v2892
      %v2894 = vadd.f32 %v2832, %v2833
      %v2895 = vadd.f32 %v2894, %v2834
      %v2896 = vadd.f32 %v2895, %v2835
      %v2897 = vrot.slane %v2896, 4
      %v2898 = vadd.f32 %v2896, %v2897
      %v2899 = vrot.slane %v2898, 2
      %v2900 = vadd.f32 %v2898, %v2899
      %v2901 = vrot.slane %v2900, 1
      %v2902 = vadd.f32 %v2900, %v2901
      %v2903 = vadd.f32 %v2836, %v2837
      %v2904 = vadd.f32 %v2903, %v2838
      %v2905 = vadd.f32 %v2904, %v2839
      %v2906 = vrot.slane %v2905, 4
      %v2907 = vadd.f32 %v2905, %v2906
      %v2908 = vrot.slane %v2907, 2
      %v2909 = vadd.f32 %v2907, %v2908
      %v2910 = vrot.slane %v2909, 1
      %v2911 = vadd.f32 %v2909, %v2910
      %v2912 = vadd.f32 %v2478, %v2848
      %v2913 = vadd.f32 %v2479, %v2857
      %v2914 = vadd.f32 %v2480, %v2866
      %v2915 = vadd.f32 %v2481, %v2875
      %v2916 = vadd.f32 %v2482, %v2884
      %v2917 = vadd.f32 %v2483, %v2893
      %v2918 = vadd.f32 %v2484, %v2902
      %v2919 = vadd.f32 %v2485, %v2911
      %s2920 = scalar_lea.vmem %s276, 96
      %v2921 = vld [vmem:[%s2920] sm:$0xf]
      %v2922 = vld [vmem:[%s2920 + $0x4] sm:$0xf]
      %v2923 = vld [vmem:[%s2920 + $0x8] sm:$0xf]
      %v2924 = vld [vmem:[%s2920 + $0xc] sm:$0xf]
      %v2925 = vld [vmem:[%s2920 + $0x80] sm:$0xf]
      %v2926 = vld [vmem:[%s2920 + $0x84] sm:$0xf]
      %v2927 = vld [vmem:[%s2920 + $0x88] sm:$0xf]
      %v2928 = vld [vmem:[%s2920 + $0x8c] sm:$0xf]
      %v2929 = vld [vmem:[%s2920 + $0x100] sm:$0xf]
      %v2930 = vld [vmem:[%s2920 + $0x104] sm:$0xf]
      %v2931 = vld [vmem:[%s2920 + $0x108] sm:$0xf]
      %v2932 = vld [vmem:[%s2920 + $0x10c] sm:$0xf]
      %v2933 = vld [vmem:[%s2920 + $0x180] sm:$0xf]
      %v2934 = vld [vmem:[%s2920 + $0x184] sm:$0xf]
      %v2935 = vld [vmem:[%s2920 + $0x188] sm:$0xf]
      %v2936 = vld [vmem:[%s2920 + $0x18c] sm:$0xf]
      %v2937 = vld [vmem:[%s2920 + $0x200] sm:$0xf]
      %v2938 = vld [vmem:[%s2920 + $0x204] sm:$0xf]
      %v2939 = vld [vmem:[%s2920 + $0x208] sm:$0xf]
      %v2940 = vld [vmem:[%s2920 + $0x20c] sm:$0xf]
      %v2941 = vld [vmem:[%s2920 + $0x280] sm:$0xf]
      %v2942 = vld [vmem:[%s2920 + $0x284] sm:$0xf]
      %v2943 = vld [vmem:[%s2920 + $0x288] sm:$0xf]
      %v2944 = vld [vmem:[%s2920 + $0x28c] sm:$0xf]
      %v2945 = vld [vmem:[%s2920 + $0x300] sm:$0xf]
      %v2946 = vld [vmem:[%s2920 + $0x304] sm:$0xf]
      %v2947 = vld [vmem:[%s2920 + $0x308] sm:$0xf]
      %v2948 = vld [vmem:[%s2920 + $0x30c] sm:$0xf]
      %v2949 = vld [vmem:[%s2920 + $0x380] sm:$0xf]
      %v2950 = vld [vmem:[%s2920 + $0x384] sm:$0xf]
      %v2951 = vld [vmem:[%s2920 + $0x388] sm:$0xf]
      %v2952 = vld [vmem:[%s2920 + $0x38c] sm:$0xf]
      %v2985 = vunpack.c.l.b16 %v2921
      %v2986 = vunpack.c.l.b16 %v2922
      %v2987 = vunpack.c.l.b16 %v2923
      %v2988 = vunpack.c.l.b16 %v2924
      %v2989 = vunpack.c.l.b16 %v2925
      %v2990 = vunpack.c.l.b16 %v2926
      %v2991 = vunpack.c.l.b16 %v2927
      %v2992 = vunpack.c.l.b16 %v2928
      %v2993 = vunpack.c.l.b16 %v2929
      %v2994 = vunpack.c.l.b16 %v2930
      %v2995 = vunpack.c.l.b16 %v2931
      %v2996 = vunpack.c.l.b16 %v2932
      %v2997 = vunpack.c.l.b16 %v2933
      %v2998 = vunpack.c.l.b16 %v2934
      %v2999 = vunpack.c.l.b16 %v2935
      %v3000 = vunpack.c.l.b16 %v2936
      %v3001 = vunpack.c.l.b16 %v2937
      %v3002 = vunpack.c.l.b16 %v2938
      %v3003 = vunpack.c.l.b16 %v2939
      %v3004 = vunpack.c.l.b16 %v2940
      %v3005 = vunpack.c.l.b16 %v2941
      %v3006 = vunpack.c.l.b16 %v2942
      %v3007 = vunpack.c.l.b16 %v2943
      %v3008 = vunpack.c.l.b16 %v2944
      %v3009 = vunpack.c.l.b16 %v2945
      %v3010 = vunpack.c.l.b16 %v2946
      %v3011 = vunpack.c.l.b16 %v2947
      %v3012 = vunpack.c.l.b16 %v2948
      %v3013 = vunpack.c.l.b16 %v2949
      %v3014 = vunpack.c.l.b16 %v2950
      %v3015 = vunpack.c.l.b16 %v2951
      %v3016 = vunpack.c.l.b16 %v2952
      %v3017 = vpack.c.b16 %v2986, %v2985
      %v3018 = vpack.c.b16 %v2988, %v2987
      %v3019 = vpack.c.b16 %v2990, %v2989
      %v3020 = vpack.c.b16 %v2992, %v2991
      %v3021 = vpack.c.b16 %v2994, %v2993
      %v3022 = vpack.c.b16 %v2996, %v2995
      %v3023 = vpack.c.b16 %v2998, %v2997
      %v3024 = vpack.c.b16 %v3000, %v2999
      %v3025 = vpack.c.b16 %v3002, %v3001
      %v3026 = vpack.c.b16 %v3004, %v3003
      %v3027 = vpack.c.b16 %v3006, %v3005
      %v3028 = vpack.c.b16 %v3008, %v3007
      %v3029 = vpack.c.b16 %v3010, %v3009
      %v3030 = vpack.c.b16 %v3012, %v3011
      %v3031 = vpack.c.b16 %v3014, %v3013
      %v3032 = vpack.c.b16 %v3016, %v3015
      %v3034 = vsel %vm421, %v3017, 0
      %v3037 = vsel %vm421, %v3018, 0
      %v3040 = vsel %vm421, %v3019, 0
      %v3043 = vsel %vm421, %v3020, 0
      %v3046 = vsel %vm421, %v3021, 0
      %v3049 = vsel %vm421, %v3022, 0
      %v3052 = vsel %vm421, %v3023, 0
      %v3055 = vsel %vm421, %v3024, 0
      %v3058 = vsel %vm421, %v3025, 0
      %v3061 = vsel %vm421, %v3026, 0
      %v3064 = vsel %vm421, %v3027, 0
      %v3067 = vsel %vm421, %v3028, 0
      %v3070 = vsel %vm421, %v3029, 0
      %v3073 = vsel %vm421, %v3030, 0
      %v3076 = vsel %vm421, %v3031, 0
      %v3079 = vsel %vm421, %v3032, 0
      %3081 = vmatprep.subr.bf16.mxu0 0
      %3082 = vmatpush1.bf16.msra.mxu0 0
      %3083 = vmatprep.subr.bf16.mxu0 0
      %3084 = vmatpush1.bf16.msra.mxu0 0
      %3085 = vmatprep.subr.bf16.mxu0 0
      %3086 = vmatpush1.bf16.msra.mxu0 0
      %3087 = vmatprep.subr.bf16.mxu0 0
      %3088 = vmatpush1.bf16.msra.mxu0 0
      %3089 = vmatprep.subr.bf16.mxu0 0
      %3090 = vmatpush1.bf16.msra.mxu0 0
      %3091 = vmatprep.subr.bf16.mxu0 0
      %3092 = vmatpush1.bf16.msra.mxu0 %v475
      %3093 = vmatprep.subr.bf16.mxu0 0
      %3094 = vmatpush1.bf16.msra.mxu0 %v417
      %3095 = vmatprep.subr.bf16.mxu0 0
      %3096 = vmatpush1.bf16.msra.mxu0 %v416
      %3097 = vmatprep.subr.bf16.mxu0 0
      %3098 = vmatpush2.bf16.msra.mxu0 0
      %3099 = vmatprep.subr.bf16.mxu0 0
      %3100 = vmatpush2.bf16.msra.mxu0 0
      %3101 = vmatprep.subr.bf16.mxu0 0
      %3102 = vmatpush2.bf16.msra.mxu0 0
      %3103 = vmatprep.subr.bf16.mxu0 0
      %3104 = vmatpush2.bf16.msra.mxu0 0
      %3105 = vmatprep.subr.bf16.mxu0 0
      %3106 = vmatpush2.bf16.msra.mxu0 0
      %3107 = vmatprep.subr.bf16.mxu0 0
      %3108 = vmatpush2.bf16.msra.mxu0 0
      %3109 = vmatprep.subr.bf16.mxu0 0
      %3110 = vmatpush2.bf16.msra.mxu0 0
      %3111 = vmatprep.subr.bf16.mxu0 0
      %3112 = vmatpush2.bf16.msra.mxu0 0
      %3113 = vmatprep.mubr.bf16.mxu0 0
      %3114 = vmatmul.mubr.bf16.gmra.mxu0 %v3034
      %v3115 = vpop.f32.mrf.mxu0
      %v3116 = vadd.f32 0.0, %v3115
      %v3117 = vpop.f32.mrf.mxu0
      %v3118 = vpop.f32.mrf.mxu0
      %v3119 = vadd.f32 0.0, %v3118
      %v3120 = vpop.f32.mrf.mxu0
      %3121 = vmatprep.mubr.bf16.mxu0 0
      %3122 = vmatmul.mubr.bf16.gmra.mxu0 %v3037
      %v3123 = vpop.f32.mrf.mxu0
      %v3124 = vadd.f32 0.0, %v3123
      %v3125 = vpop.f32.mrf.mxu0
      %v3126 = vpop.f32.mrf.mxu0
      %v3127 = vadd.f32 0.0, %v3126
      %v3128 = vpop.f32.mrf.mxu0
      %3129 = vmatprep.mubr.bf16.mxu0 0
      %3130 = vmatmul.mubr.bf16.gmra.mxu0 %v3040
      %v3131 = vpop.f32.mrf.mxu0
      %v3132 = vadd.f32 0.0, %v3131
      %v3133 = vpop.f32.mrf.mxu0
      %v3134 = vpop.f32.mrf.mxu0
      %v3135 = vadd.f32 0.0, %v3134
      %v3136 = vpop.f32.mrf.mxu0
      %3137 = vmatprep.mubr.bf16.mxu0 0
      %3138 = vmatmul.mubr.bf16.gmra.mxu0 %v3043
      %v3139 = vpop.f32.mrf.mxu0
      %v3140 = vadd.f32 0.0, %v3139
      %v3141 = vpop.f32.mrf.mxu0
      %v3142 = vpop.f32.mrf.mxu0
      %v3143 = vadd.f32 0.0, %v3142
      %v3144 = vpop.f32.mrf.mxu0
      %3145 = vmatprep.mubr.bf16.mxu0 0
      %3146 = vmatmul.mubr.bf16.gmra.mxu0 %v3046
      %v3147 = vpop.f32.mrf.mxu0
      %v3148 = vadd.f32 0.0, %v3147
      %v3149 = vpop.f32.mrf.mxu0
      %v3150 = vpop.f32.mrf.mxu0
      %v3151 = vadd.f32 0.0, %v3150
      %v3152 = vpop.f32.mrf.mxu0
      %3153 = vmatprep.mubr.bf16.mxu0 0
      %3154 = vmatmul.mubr.bf16.gmra.mxu0 %v3049
      %v3155 = vpop.f32.mrf.mxu0
      %v3156 = vadd.f32 0.0, %v3155
      %v3157 = vpop.f32.mrf.mxu0
      %v3158 = vpop.f32.mrf.mxu0
      %v3159 = vadd.f32 0.0, %v3158
      %v3160 = vpop.f32.mrf.mxu0
      %3161 = vmatprep.mubr.bf16.mxu0 0
      %3162 = vmatmul.mubr.bf16.gmra.mxu0 %v3052
      %v3163 = vpop.f32.mrf.mxu0
      %v3164 = vadd.f32 0.0, %v3163
      %v3165 = vpop.f32.mrf.mxu0
      %v3166 = vpop.f32.mrf.mxu0
      %v3167 = vadd.f32 0.0, %v3166
      %v3168 = vpop.f32.mrf.mxu0
      %3169 = vmatprep.mubr.bf16.mxu0 0
      %3170 = vmatmul.mubr.bf16.gmra.mxu0 %v3055
      %v3171 = vpop.f32.mrf.mxu0
      %v3172 = vadd.f32 0.0, %v3171
      %v3173 = vpop.f32.mrf.mxu0
      %v3174 = vpop.f32.mrf.mxu0
      %v3175 = vadd.f32 0.0, %v3174
      %v3176 = vpop.f32.mrf.mxu0
      %3177 = vmatprep.mubr.bf16.mxu0 0
      %3178 = vmatmul.mubr.bf16.gmra.mxu0 %v3058
      %v3179 = vpop.f32.mrf.mxu0
      %v3180 = vadd.f32 0.0, %v3179
      %v3181 = vpop.f32.mrf.mxu0
      %v3182 = vpop.f32.mrf.mxu0
      %v3183 = vadd.f32 0.0, %v3182
      %v3184 = vpop.f32.mrf.mxu0
      %3185 = vmatprep.mubr.bf16.mxu0 0
      %3186 = vmatmul.mubr.bf16.gmra.mxu0 %v3061
      %v3187 = vpop.f32.mrf.mxu0
      %v3188 = vadd.f32 0.0, %v3187
      %v3189 = vpop.f32.mrf.mxu0
      %v3190 = vpop.f32.mrf.mxu0
      %v3191 = vadd.f32 0.0, %v3190
      %v3192 = vpop.f32.mrf.mxu0
      %3193 = vmatprep.mubr.bf16.mxu0 0
      %3194 = vmatmul.mubr.bf16.gmra.mxu0 %v3064
      %v3195 = vpop.f32.mrf.mxu0
      %v3196 = vadd.f32 0.0, %v3195
      %v3197 = vpop.f32.mrf.mxu0
      %v3198 = vpop.f32.mrf.mxu0
      %v3199 = vadd.f32 0.0, %v3198
      %v3200 = vpop.f32.mrf.mxu0
      %3201 = vmatprep.mubr.bf16.mxu0 0
      %3202 = vmatmul.mubr.bf16.gmra.mxu0 %v3067
      %v3203 = vpop.f32.mrf.mxu0
      %v3204 = vadd.f32 0.0, %v3203
      %v3205 = vpop.f32.mrf.mxu0
      %v3206 = vpop.f32.mrf.mxu0
      %v3207 = vadd.f32 0.0, %v3206
      %v3208 = vpop.f32.mrf.mxu0
      %3209 = vmatprep.mubr.bf16.mxu0 0
      %3210 = vmatmul.mubr.bf16.gmra.mxu0 %v3070
      %v3211 = vpop.f32.mrf.mxu0
      %v3212 = vadd.f32 0.0, %v3211
      %v3213 = vpop.f32.mrf.mxu0
      %v3214 = vpop.f32.mrf.mxu0
      %v3215 = vadd.f32 0.0, %v3214
      %v3216 = vpop.f32.mrf.mxu0
      %3217 = vmatprep.mubr.bf16.mxu0 0
      %3218 = vmatmul.mubr.bf16.gmra.mxu0 %v3073
      %v3219 = vpop.f32.mrf.mxu0
      %v3220 = vadd.f32 0.0, %v3219
      %v3221 = vpop.f32.mrf.mxu0
      %v3222 = vpop.f32.mrf.mxu0
      %v3223 = vadd.f32 0.0, %v3222
      %v3224 = vpop.f32.mrf.mxu0
      %3225 = vmatprep.mubr.bf16.mxu0 0
      %3226 = vmatmul.mubr.bf16.gmra.mxu0 %v3076
      %v3227 = vpop.f32.mrf.mxu0
      %v3228 = vadd.f32 0.0, %v3227
      %v3229 = vpop.f32.mrf.mxu0
      %v3230 = vpop.f32.mrf.mxu0
      %v3231 = vadd.f32 0.0, %v3230
      %v3232 = vpop.f32.mrf.mxu0
      %3233 = vmatprep.mubr.bf16.mxu0 0
      %3234 = vmatmul.mubr.bf16.gmra.mxu0 %v3079
      %v3235 = vpop.f32.mrf.mxu0
      %v3236 = vadd.f32 0.0, %v3235
      %v3237 = vpop.f32.mrf.mxu0
      %v3238 = vpop.f32.mrf.mxu0
      %v3239 = vadd.f32 0.0, %v3238
      %v3240 = vpop.f32.mrf.mxu0
      %3241 = vdwg.mxu0
      %v3242 = vmax.f32 %v3116, 0.0
      %v3243 = vmax.f32 %v3119, 0.0
      %v3244 = vmax.f32 %v3124, 0.0
      %v3245 = vmax.f32 %v3127, 0.0
      %v3246 = vmax.f32 %v3132, 0.0
      %v3247 = vmax.f32 %v3135, 0.0
      %v3248 = vmax.f32 %v3140, 0.0
      %v3249 = vmax.f32 %v3143, 0.0
      %v3250 = vmax.f32 %v3148, 0.0
      %v3251 = vmax.f32 %v3151, 0.0
      %v3252 = vmax.f32 %v3156, 0.0
      %v3253 = vmax.f32 %v3159, 0.0
      %v3254 = vmax.f32 %v3164, 0.0
      %v3255 = vmax.f32 %v3167, 0.0
      %v3256 = vmax.f32 %v3172, 0.0
      %v3257 = vmax.f32 %v3175, 0.0
      %v3258 = vmax.f32 %v3180, 0.0
      %v3259 = vmax.f32 %v3183, 0.0
      %v3260 = vmax.f32 %v3188, 0.0
      %v3261 = vmax.f32 %v3191, 0.0
      %v3262 = vmax.f32 %v3196, 0.0
      %v3263 = vmax.f32 %v3199, 0.0
      %v3264 = vmax.f32 %v3204, 0.0
      %v3265 = vmax.f32 %v3207, 0.0
      %v3266 = vmax.f32 %v3212, 0.0
      %v3267 = vmax.f32 %v3215, 0.0
      %v3268 = vmax.f32 %v3220, 0.0
      %v3269 = vmax.f32 %v3223, 0.0
      %v3270 = vmax.f32 %v3228, 0.0
      %v3271 = vmax.f32 %v3231, 0.0
      %v3272 = vmax.f32 %v3236, 0.0
      %v3273 = vmax.f32 %v3239, 0.0
      %v3274 = vadd.f32 %v3242, %v3243
      %v3275 = vadd.f32 %v3274, %v3244
      %v3276 = vadd.f32 %v3275, %v3245
      %v3277 = vrot.slane %v3276, 4
      %v3278 = vadd.f32 %v3276, %v3277
      %v3279 = vrot.slane %v3278, 2
      %v3280 = vadd.f32 %v3278, %v3279
      %v3281 = vrot.slane %v3280, 1
      %v3282 = vadd.f32 %v3280, %v3281
      %v3283 = vadd.f32 %v3246, %v3247
      %v3284 = vadd.f32 %v3283, %v3248
      %v3285 = vadd.f32 %v3284, %v3249
      %v3286 = vrot.slane %v3285, 4
      %v3287 = vadd.f32 %v3285, %v3286
      %v3288 = vrot.slane %v3287, 2
      %v3289 = vadd.f32 %v3287, %v3288
      %v3290 = vrot.slane %v3289, 1
      %v3291 = vadd.f32 %v3289, %v3290
      %v3292 = vadd.f32 %v3250, %v3251
      %v3293 = vadd.f32 %v3292, %v3252
      %v3294 = vadd.f32 %v3293, %v3253
      %v3295 = vrot.slane %v3294, 4
      %v3296 = vadd.f32 %v3294, %v3295
      %v3297 = vrot.slane %v3296, 2
      %v3298 = vadd.f32 %v3296, %v3297
      %v3299 = vrot.slane %v3298, 1
      %v3300 = vadd.f32 %v3298, %v3299
      %v3301 = vadd.f32 %v3254, %v3255
      %v3302 = vadd.f32 %v3301, %v3256
      %v3303 = vadd.f32 %v3302, %v3257
      %v3304 = vrot.slane %v3303, 4
      %v3305 = vadd.f32 %v3303, %v3304
      %v3306 = vrot.slane %v3305, 2
      %v3307 = vadd.f32 %v3305, %v3306
      %v3308 = vrot.slane %v3307, 1
      %v3309 = vadd.f32 %v3307, %v3308
      %v3310 = vadd.f32 %v3258, %v3259
      %v3311 = vadd.f32 %v3310, %v3260
      %v3312 = vadd.f32 %v3311, %v3261
      %v3313 = vrot.slane %v3312, 4
      %v3314 = vadd.f32 %v3312, %v3313
      %v3315 = vrot.slane %v3314, 2
      %v3316 = vadd.f32 %v3314, %v3315
      %v3317 = vrot.slane %v3316, 1
      %v3318 = vadd.f32 %v3316, %v3317
      %v3319 = vadd.f32 %v3262, %v3263
      %v3320 = vadd.f32 %v3319, %v3264
      %v3321 = vadd.f32 %v3320, %v3265
      %v3322 = vrot.slane %v3321, 4
      %v3323 = vadd.f32 %v3321, %v3322
      %v3324 = vrot.slane %v3323, 2
      %v3325 = vadd.f32 %v3323, %v3324
      %v3326 = vrot.slane %v3325, 1
      %v3327 = vadd.f32 %v3325, %v3326
      %v3328 = vadd.f32 %v3266, %v3267
      %v3329 = vadd.f32 %v3328, %v3268
      %v3330 = vadd.f32 %v3329, %v3269
      %v3331 = vrot.slane %v3330, 4
      %v3332 = vadd.f32 %v3330, %v3331
      %v3333 = vrot.slane %v3332, 2
      %v3334 = vadd.f32 %v3332, %v3333
      %v3335 = vrot.slane %v3334, 1
      %v3336 = vadd.f32 %v3334, %v3335
      %v3337 = vadd.f32 %v3270, %v3271
      %v3338 = vadd.f32 %v3337, %v3272
      %v3339 = vadd.f32 %v3338, %v3273
      %v3340 = vrot.slane %v3339, 4
      %v3341 = vadd.f32 %v3339, %v3340
      %v3342 = vrot.slane %v3341, 2
      %v3343 = vadd.f32 %v3341, %v3342
      %v3344 = vrot.slane %v3343, 1
      %v3345 = vadd.f32 %v3343, %v3344
      %v3346 = vadd.f32 %v2912, %v3282
      %v3347 = vadd.f32 %v2913, %v3291
      %v3348 = vadd.f32 %v2914, %v3300
      %v3349 = vadd.f32 %v2915, %v3309
      %v3350 = vadd.f32 %v2916, %v3318
      %v3351 = vadd.f32 %v2917, %v3327
      %v3352 = vadd.f32 %v2918, %v3336
      %v3353 = vadd.f32 %v2919, %v3345
      %s3354 = scalar_lea.vmem %s276, 112
      %v3355 = vld [vmem:[%s3354] sm:$0xf]
      %v3356 = vld [vmem:[%s3354 + $0x4] sm:$0xf]
      %v3357 = vld [vmem:[%s3354 + $0x8] sm:$0xf]
      %v3358 = vld [vmem:[%s3354 + $0xc] sm:$0xf]
      %v3359 = vld [vmem:[%s3354 + $0x80] sm:$0xf]
      %v3360 = vld [vmem:[%s3354 + $0x84] sm:$0xf]
      %v3361 = vld [vmem:[%s3354 + $0x88] sm:$0xf]
      %v3362 = vld [vmem:[%s3354 + $0x8c] sm:$0xf]
      %v3363 = vld [vmem:[%s3354 + $0x100] sm:$0xf]
      %v3364 = vld [vmem:[%s3354 + $0x104] sm:$0xf]
      %v3365 = vld [vmem:[%s3354 + $0x108] sm:$0xf]
      %v3366 = vld [vmem:[%s3354 + $0x10c] sm:$0xf]
      %v3367 = vld [vmem:[%s3354 + $0x180] sm:$0xf]
      %v3368 = vld [vmem:[%s3354 + $0x184] sm:$0xf]
      %v3369 = vld [vmem:[%s3354 + $0x188] sm:$0xf]
      %v3370 = vld [vmem:[%s3354 + $0x18c] sm:$0xf]
      %v3371 = vld [vmem:[%s3354 + $0x200] sm:$0xf]
      %v3372 = vld [vmem:[%s3354 + $0x204] sm:$0xf]
      %v3373 = vld [vmem:[%s3354 + $0x208] sm:$0xf]
      %v3374 = vld [vmem:[%s3354 + $0x20c] sm:$0xf]
      %v3375 = vld [vmem:[%s3354 + $0x280] sm:$0xf]
      %v3376 = vld [vmem:[%s3354 + $0x284] sm:$0xf]
      %v3377 = vld [vmem:[%s3354 + $0x288] sm:$0xf]
      %v3378 = vld [vmem:[%s3354 + $0x28c] sm:$0xf]
      %v3379 = vld [vmem:[%s3354 + $0x300] sm:$0xf]
      %v3380 = vld [vmem:[%s3354 + $0x304] sm:$0xf]
      %v3381 = vld [vmem:[%s3354 + $0x308] sm:$0xf]
      %v3382 = vld [vmem:[%s3354 + $0x30c] sm:$0xf]
      %v3383 = vld [vmem:[%s3354 + $0x380] sm:$0xf]
      %v3384 = vld [vmem:[%s3354 + $0x384] sm:$0xf]
      %v3385 = vld [vmem:[%s3354 + $0x388] sm:$0xf]
      %v3386 = vld [vmem:[%s3354 + $0x38c] sm:$0xf]
      %v3419 = vunpack.c.l.b16 %v3355
      %v3420 = vunpack.c.l.b16 %v3356
      %v3421 = vunpack.c.l.b16 %v3357
      %v3422 = vunpack.c.l.b16 %v3358
      %v3423 = vunpack.c.l.b16 %v3359
      %v3424 = vunpack.c.l.b16 %v3360
      %v3425 = vunpack.c.l.b16 %v3361
      %v3426 = vunpack.c.l.b16 %v3362
      %v3427 = vunpack.c.l.b16 %v3363
      %v3428 = vunpack.c.l.b16 %v3364
      %v3429 = vunpack.c.l.b16 %v3365
      %v3430 = vunpack.c.l.b16 %v3366
      %v3431 = vunpack.c.l.b16 %v3367
      %v3432 = vunpack.c.l.b16 %v3368
      %v3433 = vunpack.c.l.b16 %v3369
      %v3434 = vunpack.c.l.b16 %v3370
      %v3435 = vunpack.c.l.b16 %v3371
      %v3436 = vunpack.c.l.b16 %v3372
      %v3437 = vunpack.c.l.b16 %v3373
      %v3438 = vunpack.c.l.b16 %v3374
      %v3439 = vunpack.c.l.b16 %v3375
      %v3440 = vunpack.c.l.b16 %v3376
      %v3441 = vunpack.c.l.b16 %v3377
      %v3442 = vunpack.c.l.b16 %v3378
      %v3443 = vunpack.c.l.b16 %v3379
      %v3444 = vunpack.c.l.b16 %v3380
      %v3445 = vunpack.c.l.b16 %v3381
      %v3446 = vunpack.c.l.b16 %v3382
      %v3447 = vunpack.c.l.b16 %v3383
      %v3448 = vunpack.c.l.b16 %v3384
      %v3449 = vunpack.c.l.b16 %v3385
      %v3450 = vunpack.c.l.b16 %v3386
      %v3451 = vpack.c.b16 %v3420, %v3419
      %v3452 = vpack.c.b16 %v3422, %v3421
      %v3453 = vpack.c.b16 %v3424, %v3423
      %v3454 = vpack.c.b16 %v3426, %v3425
      %v3455 = vpack.c.b16 %v3428, %v3427
      %v3456 = vpack.c.b16 %v3430, %v3429
      %v3457 = vpack.c.b16 %v3432, %v3431
      %v3458 = vpack.c.b16 %v3434, %v3433
      %v3459 = vpack.c.b16 %v3436, %v3435
      %v3460 = vpack.c.b16 %v3438, %v3437
      %v3461 = vpack.c.b16 %v3440, %v3439
      %v3462 = vpack.c.b16 %v3442, %v3441
      %v3463 = vpack.c.b16 %v3444, %v3443
      %v3464 = vpack.c.b16 %v3446, %v3445
      %v3465 = vpack.c.b16 %v3448, %v3447
      %v3466 = vpack.c.b16 %v3450, %v3449
      %v3468 = vsel %vm421, %v3451, 0
      %v3471 = vsel %vm421, %v3452, 0
      %v3474 = vsel %vm421, %v3453, 0
      %v3477 = vsel %vm421, %v3454, 0
      %v3480 = vsel %vm421, %v3455, 0
      %v3483 = vsel %vm421, %v3456, 0
      %v3486 = vsel %vm421, %v3457, 0
      %v3489 = vsel %vm421, %v3458, 0
      %v3492 = vsel %vm421, %v3459, 0
      %v3495 = vsel %vm421, %v3460, 0
      %v3498 = vsel %vm421, %v3461, 0
      %v3501 = vsel %vm421, %v3462, 0
      %v3504 = vsel %vm421, %v3463, 0
      %v3507 = vsel %vm421, %v3464, 0
      %v3510 = vsel %vm421, %v3465, 0
      %v3513 = vsel %vm421, %v3466, 0
      %3515 = vmatprep.subr.bf16.mxu0 0
      %3516 = vmatpush1.bf16.msra.mxu0 0
      %3517 = vmatprep.subr.bf16.mxu0 0
      %3518 = vmatpush1.bf16.msra.mxu0 0
      %3519 = vmatprep.subr.bf16.mxu0 0
      %3520 = vmatpush1.bf16.msra.mxu0 0
      %3521 = vmatprep.subr.bf16.mxu0 0
      %3522 = vmatpush1.bf16.msra.mxu0 0
      %3523 = vmatprep.subr.bf16.mxu0 0
      %3524 = vmatpush1.bf16.msra.mxu0 0
      %3525 = vmatprep.subr.bf16.mxu0 0
      %3526 = vmatpush1.bf16.msra.mxu0 %v475
      %3527 = vmatprep.subr.bf16.mxu0 0
      %3528 = vmatpush1.bf16.msra.mxu0 %v417
      %3529 = vmatprep.subr.bf16.mxu0 0
      %3530 = vmatpush1.bf16.msra.mxu0 %v416
      %3531 = vmatprep.subr.bf16.mxu0 0
      %3532 = vmatpush2.bf16.msra.mxu0 0
      %3533 = vmatprep.subr.bf16.mxu0 0
      %3534 = vmatpush2.bf16.msra.mxu0 0
      %3535 = vmatprep.subr.bf16.mxu0 0
      %3536 = vmatpush2.bf16.msra.mxu0 0
      %3537 = vmatprep.subr.bf16.mxu0 0
      %3538 = vmatpush2.bf16.msra.mxu0 0
      %3539 = vmatprep.subr.bf16.mxu0 0
      %3540 = vmatpush2.bf16.msra.mxu0 0
      %3541 = vmatprep.subr.bf16.mxu0 0
      %3542 = vmatpush2.bf16.msra.mxu0 0
      %3543 = vmatprep.subr.bf16.mxu0 0
      %3544 = vmatpush2.bf16.msra.mxu0 0
      %3545 = vmatprep.subr.bf16.mxu0 0
      %3546 = vmatpush2.bf16.msra.mxu0 0
      %3547 = vmatprep.mubr.bf16.mxu0 0
      %3548 = vmatmul.mubr.bf16.gmra.mxu0 %v3468
      %v3549 = vpop.f32.mrf.mxu0
      %v3550 = vadd.f32 0.0, %v3549
      %v3551 = vpop.f32.mrf.mxu0
      %v3552 = vpop.f32.mrf.mxu0
      %v3553 = vadd.f32 0.0, %v3552
      %v3554 = vpop.f32.mrf.mxu0
      %3555 = vmatprep.mubr.bf16.mxu0 0
      %3556 = vmatmul.mubr.bf16.gmra.mxu0 %v3471
      %v3557 = vpop.f32.mrf.mxu0
      %v3558 = vadd.f32 0.0, %v3557
      %v3559 = vpop.f32.mrf.mxu0
      %v3560 = vpop.f32.mrf.mxu0
      %v3561 = vadd.f32 0.0, %v3560
      %v3562 = vpop.f32.mrf.mxu0
      %3563 = vmatprep.mubr.bf16.mxu0 0
      %3564 = vmatmul.mubr.bf16.gmra.mxu0 %v3474
      %v3565 = vpop.f32.mrf.mxu0
      %v3566 = vadd.f32 0.0, %v3565
      %v3567 = vpop.f32.mrf.mxu0
      %v3568 = vpop.f32.mrf.mxu0
      %v3569 = vadd.f32 0.0, %v3568
      %v3570 = vpop.f32.mrf.mxu0
      %3571 = vmatprep.mubr.bf16.mxu0 0
      %3572 = vmatmul.mubr.bf16.gmra.mxu0 %v3477
      %v3573 = vpop.f32.mrf.mxu0
      %v3574 = vadd.f32 0.0, %v3573
      %v3575 = vpop.f32.mrf.mxu0
      %v3576 = vpop.f32.mrf.mxu0
      %v3577 = vadd.f32 0.0, %v3576
      %v3578 = vpop.f32.mrf.mxu0
      %3579 = vmatprep.mubr.bf16.mxu0 0
      %3580 = vmatmul.mubr.bf16.gmra.mxu0 %v3480
      %v3581 = vpop.f32.mrf.mxu0
      %v3582 = vadd.f32 0.0, %v3581
      %v3583 = vpop.f32.mrf.mxu0
      %v3584 = vpop.f32.mrf.mxu0
      %v3585 = vadd.f32 0.0, %v3584
      %v3586 = vpop.f32.mrf.mxu0
      %3587 = vmatprep.mubr.bf16.mxu0 0
      %3588 = vmatmul.mubr.bf16.gmra.mxu0 %v3483
      %v3589 = vpop.f32.mrf.mxu0
      %v3590 = vadd.f32 0.0, %v3589
      %v3591 = vpop.f32.mrf.mxu0
      %v3592 = vpop.f32.mrf.mxu0
      %v3593 = vadd.f32 0.0, %v3592
      %v3594 = vpop.f32.mrf.mxu0
      %3595 = vmatprep.mubr.bf16.mxu0 0
      %3596 = vmatmul.mubr.bf16.gmra.mxu0 %v3486
      %v3597 = vpop.f32.mrf.mxu0
      %v3598 = vadd.f32 0.0, %v3597
      %v3599 = vpop.f32.mrf.mxu0
      %v3600 = vpop.f32.mrf.mxu0
      %v3601 = vadd.f32 0.0, %v3600
      %v3602 = vpop.f32.mrf.mxu0
      %3603 = vmatprep.mubr.bf16.mxu0 0
      %3604 = vmatmul.mubr.bf16.gmra.mxu0 %v3489
      %v3605 = vpop.f32.mrf.mxu0
      %v3606 = vadd.f32 0.0, %v3605
      %v3607 = vpop.f32.mrf.mxu0
      %v3608 = vpop.f32.mrf.mxu0
      %v3609 = vadd.f32 0.0, %v3608
      %v3610 = vpop.f32.mrf.mxu0
      %3611 = vmatprep.mubr.bf16.mxu0 0
      %3612 = vmatmul.mubr.bf16.gmra.mxu0 %v3492
      %v3613 = vpop.f32.mrf.mxu0
      %v3614 = vadd.f32 0.0, %v3613
      %v3615 = vpop.f32.mrf.mxu0
      %v3616 = vpop.f32.mrf.mxu0
      %v3617 = vadd.f32 0.0, %v3616
      %v3618 = vpop.f32.mrf.mxu0
      %3619 = vmatprep.mubr.bf16.mxu0 0
      %3620 = vmatmul.mubr.bf16.gmra.mxu0 %v3495
      %v3621 = vpop.f32.mrf.mxu0
      %v3622 = vadd.f32 0.0, %v3621
      %v3623 = vpop.f32.mrf.mxu0
      %v3624 = vpop.f32.mrf.mxu0
      %v3625 = vadd.f32 0.0, %v3624
      %v3626 = vpop.f32.mrf.mxu0
      %3627 = vmatprep.mubr.bf16.mxu0 0
      %3628 = vmatmul.mubr.bf16.gmra.mxu0 %v3498
      %v3629 = vpop.f32.mrf.mxu0
      %v3630 = vadd.f32 0.0, %v3629
      %v3631 = vpop.f32.mrf.mxu0
      %v3632 = vpop.f32.mrf.mxu0
      %v3633 = vadd.f32 0.0, %v3632
      %v3634 = vpop.f32.mrf.mxu0
      %3635 = vmatprep.mubr.bf16.mxu0 0
      %3636 = vmatmul.mubr.bf16.gmra.mxu0 %v3501
      %v3637 = vpop.f32.mrf.mxu0
      %v3638 = vadd.f32 0.0, %v3637
      %v3639 = vpop.f32.mrf.mxu0
      %v3640 = vpop.f32.mrf.mxu0
      %v3641 = vadd.f32 0.0, %v3640
      %v3642 = vpop.f32.mrf.mxu0
      %3643 = vmatprep.mubr.bf16.mxu0 0
      %3644 = vmatmul.mubr.bf16.gmra.mxu0 %v3504
      %v3645 = vpop.f32.mrf.mxu0
      %v3646 = vadd.f32 0.0, %v3645
      %v3647 = vpop.f32.mrf.mxu0
      %v3648 = vpop.f32.mrf.mxu0
      %v3649 = vadd.f32 0.0, %v3648
      %v3650 = vpop.f32.mrf.mxu0
      %3651 = vmatprep.mubr.bf16.mxu0 0
      %3652 = vmatmul.mubr.bf16.gmra.mxu0 %v3507
      %v3653 = vpop.f32.mrf.mxu0
      %v3654 = vadd.f32 0.0, %v3653
      %v3655 = vpop.f32.mrf.mxu0
      %v3656 = vpop.f32.mrf.mxu0
      %v3657 = vadd.f32 0.0, %v3656
      %v3658 = vpop.f32.mrf.mxu0
      %3659 = vmatprep.mubr.bf16.mxu0 0
      %3660 = vmatmul.mubr.bf16.gmra.mxu0 %v3510
      %v3661 = vpop.f32.mrf.mxu0
      %v3662 = vadd.f32 0.0, %v3661
      %v3663 = vpop.f32.mrf.mxu0
      %v3664 = vpop.f32.mrf.mxu0
      %v3665 = vadd.f32 0.0, %v3664
      %v3666 = vpop.f32.mrf.mxu0
      %3667 = vmatprep.mubr.bf16.mxu0 0
      %3668 = vmatmul.mubr.bf16.gmra.mxu0 %v3513
      %v3669 = vpop.f32.mrf.mxu0
      %v3670 = vadd.f32 0.0, %v3669
      %v3671 = vpop.f32.mrf.mxu0
      %v3672 = vpop.f32.mrf.mxu0
      %v3673 = vadd.f32 0.0, %v3672
      %v3674 = vpop.f32.mrf.mxu0
      %3675 = vdwg.mxu0
      %v3676 = vmax.f32 %v3550, 0.0
      %v3677 = vmax.f32 %v3553, 0.0
      %v3678 = vmax.f32 %v3558, 0.0
      %v3679 = vmax.f32 %v3561, 0.0
      %v3680 = vmax.f32 %v3566, 0.0
      %v3681 = vmax.f32 %v3569, 0.0
      %v3682 = vmax.f32 %v3574, 0.0
      %v3683 = vmax.f32 %v3577, 0.0
      %v3684 = vmax.f32 %v3582, 0.0
      %v3685 = vmax.f32 %v3585, 0.0
      %v3686 = vmax.f32 %v3590, 0.0
      %v3687 = vmax.f32 %v3593, 0.0
      %v3688 = vmax.f32 %v3598, 0.0
      %v3689 = vmax.f32 %v3601, 0.0
      %v3690 = vmax.f32 %v3606, 0.0
      %v3691 = vmax.f32 %v3609, 0.0
      %v3692 = vmax.f32 %v3614, 0.0
      %v3693 = vmax.f32 %v3617, 0.0
      %v3694 = vmax.f32 %v3622, 0.0
      %v3695 = vmax.f32 %v3625, 0.0
      %v3696 = vmax.f32 %v3630, 0.0
      %v3697 = vmax.f32 %v3633, 0.0
      %v3698 = vmax.f32 %v3638, 0.0
      %v3699 = vmax.f32 %v3641, 0.0
      %v3700 = vmax.f32 %v3646, 0.0
      %v3701 = vmax.f32 %v3649, 0.0
      %v3702 = vmax.f32 %v3654, 0.0
      %v3703 = vmax.f32 %v3657, 0.0
      %v3704 = vmax.f32 %v3662, 0.0
      %v3705 = vmax.f32 %v3665, 0.0
      %v3706 = vmax.f32 %v3670, 0.0
      %v3707 = vmax.f32 %v3673, 0.0
      %v3708 = vadd.f32 %v3676, %v3677
      %v3709 = vadd.f32 %v3708, %v3678
      %v3710 = vadd.f32 %v3709, %v3679
      %v3711 = vrot.slane %v3710, 4
      %v3712 = vadd.f32 %v3710, %v3711
      %v3713 = vrot.slane %v3712, 2
      %v3714 = vadd.f32 %v3712, %v3713
      %v3715 = vrot.slane %v3714, 1
      %v3716 = vadd.f32 %v3714, %v3715
      %v3717 = vadd.f32 %v3680, %v3681
      %v3718 = vadd.f32 %v3717, %v3682
      %v3719 = vadd.f32 %v3718, %v3683
      %v3720 = vrot.slane %v3719, 4
      %v3721 = vadd.f32 %v3719, %v3720
      %v3722 = vrot.slane %v3721, 2
      %v3723 = vadd.f32 %v3721, %v3722
      %v3724 = vrot.slane %v3723, 1
      %v3725 = vadd.f32 %v3723, %v3724
      %v3726 = vadd.f32 %v3684, %v3685
      %v3727 = vadd.f32 %v3726, %v3686
      %v3728 = vadd.f32 %v3727, %v3687
      %v3729 = vrot.slane %v3728, 4
      %v3730 = vadd.f32 %v3728, %v3729
      %v3731 = vrot.slane %v3730, 2
      %v3732 = vadd.f32 %v3730, %v3731
      %v3733 = vrot.slane %v3732, 1
      %v3734 = vadd.f32 %v3732, %v3733
      %v3735 = vadd.f32 %v3688, %v3689
      %v3736 = vadd.f32 %v3735, %v3690
      %v3737 = vadd.f32 %v3736, %v3691
      %v3738 = vrot.slane %v3737, 4
      %v3739 = vadd.f32 %v3737, %v3738
      %v3740 = vrot.slane %v3739, 2
      %v3741 = vadd.f32 %v3739, %v3740
      %v3742 = vrot.slane %v3741, 1
      %v3743 = vadd.f32 %v3741, %v3742
      %v3744 = vadd.f32 %v3692, %v3693
      %v3745 = vadd.f32 %v3744, %v3694
      %v3746 = vadd.f32 %v3745, %v3695
      %v3747 = vrot.slane %v3746, 4
      %v3748 = vadd.f32 %v3746, %v3747
      %v3749 = vrot.slane %v3748, 2
      %v3750 = vadd.f32 %v3748, %v3749
      %v3751 = vrot.slane %v3750, 1
      %v3752 = vadd.f32 %v3750, %v3751
      %v3753 = vadd.f32 %v3696, %v3697
      %v3754 = vadd.f32 %v3753, %v3698
      %v3755 = vadd.f32 %v3754, %v3699
      %v3756 = vrot.slane %v3755, 4
      %v3757 = vadd.f32 %v3755, %v3756
      %v3758 = vrot.slane %v3757, 2
      %v3759 = vadd.f32 %v3757, %v3758
      %v3760 = vrot.slane %v3759, 1
      %v3761 = vadd.f32 %v3759, %v3760
      %v3762 = vadd.f32 %v3700, %v3701
      %v3763 = vadd.f32 %v3762, %v3702
      %v3764 = vadd.f32 %v3763, %v3703
      %v3765 = vrot.slane %v3764, 4
      %v3766 = vadd.f32 %v3764, %v3765
      %v3767 = vrot.slane %v3766, 2
      %v3768 = vadd.f32 %v3766, %v3767
      %v3769 = vrot.slane %v3768, 1
      %v3770 = vadd.f32 %v3768, %v3769
      %v3771 = vadd.f32 %v3704, %v3705
      %v3772 = vadd.f32 %v3771, %v3706
      %v3773 = vadd.f32 %v3772, %v3707
      %v3774 = vrot.slane %v3773, 4
      %v3775 = vadd.f32 %v3773, %v3774
      %v3776 = vrot.slane %v3775, 2
      %v3777 = vadd.f32 %v3775, %v3776
      %v3778 = vrot.slane %v3777, 1
      %v3779 = vadd.f32 %v3777, %v3778
      %v3780 = vadd.f32 %v3346, %v3716
      %v3781 = vadd.f32 %v3347, %v3725
      %v3782 = vadd.f32 %v3348, %v3734
      %v3783 = vadd.f32 %v3349, %v3743
      %v3784 = vadd.f32 %v3350, %v3752
      %v3785 = vadd.f32 %v3351, %v3761
      %v3786 = vadd.f32 %v3352, %v3770
      %v3787 = vadd.f32 %v3353, %v3779
      %v3788 = vld [vmem:[#allocation2] sm:$0xff]
      %vm3797 = vcmask 1041409
      %v3798 = vsel %vm3797, %v3781, %v3780
      %vm3799 = vcmask 1042434
      %v3800 = vsel %vm3799, %v3782, %v3798
      %vm3801 = vcmask 1043459
      %v3802 = vsel %vm3801, %v3783, %v3800
      %vm3803 = vcmask 1044484
      %v3804 = vsel %vm3803, %v3784, %v3802
      %vm3805 = vcmask 1045509
      %v3806 = vsel %vm3805, %v3785, %v3804
      %vm3807 = vcmask 1046534
      %v3808 = vsel %vm3807, %v3786, %v3806
      %vm3809 = vcmask 1047559
      %v3810 = vsel %vm3809, %v3787, %v3808
      %v3812 = vadd.f32 %v3788, %v3810
      %3813 = vst [vmem:[#allocation2] sm:$0xff] %v3812
      // Predicated region
      $region49: #{dg_classifier_forward.1} parent=43 // pred_check
        %p3814 = pneg %p284
      $region50: #{dg_classifier_forward.1} parent=43 // pred_check_branch
        %3816 = sbr.rel (%p3814) target = $region52
      $region51: #{dg_classifier_forward.1} parent=43 // pred_region
        %v3817 = vld [vmem:[#allocation2] sm:$0xff]
        %v3818 = vmul.f32 %v3817, 0.00390625
        %v3819 = vpack.c.bf16 %v3818, %v3818
        %v3820 = vld [vmem:[%s2] sm:$0xf]
        %v3821 = vld [vmem:[%s2 + $0x4] sm:$0xf]
        %v3822 = vld [vmem:[%s2 + $0x8] sm:$0xf]
        %v3823 = vld [vmem:[%s2 + $0xc] sm:$0xf]
        %v3824 = vld [vmem:[%s2 + $0x10] sm:$0xf]
        %v3825 = vld [vmem:[%s2 + $0x14] sm:$0xf]
        %v3826 = vld [vmem:[%s2 + $0x18] sm:$0xf]
        %v3827 = vld [vmem:[%s2 + $0x1c] sm:$0xf]
        %v3828 = vld [vmem:[%s2 + $0x20] sm:$0xf]
        %v3829 = vld [vmem:[%s2 + $0x24] sm:$0xf]
        %v3830 = vld [vmem:[%s2 + $0x28] sm:$0xf]
        %v3831 = vld [vmem:[%s2 + $0x2c] sm:$0xf]
        %v3832 = vld [vmem:[%s2 + $0x30] sm:$0xf]
        %v3833 = vld [vmem:[%s2 + $0x34] sm:$0xf]
        %v3834 = vld [vmem:[%s2 + $0x38] sm:$0xf]
        %v3835 = vld [vmem:[%s2 + $0x3c] sm:$0xf]
        %v3836 = vld [vmem:[%s3] sm:$0x1]
        %v3838 = vlaneseq
        %v3839 = vshrl.u32 %v3838, 7
        %v3840 = vsub.s32 0, %v3839
        %v3841 = vrot.slane %v3836, %v3840
        %v3859 = vunpack.c.l.b16 %v3820
        %v3860 = vunpack.c.l.b16 %v3821
        %v3861 = vunpack.c.l.b16 %v3822
        %v3862 = vunpack.c.l.b16 %v3823
        %v3863 = vunpack.c.l.b16 %v3824
        %v3864 = vunpack.c.l.b16 %v3825
        %v3865 = vunpack.c.l.b16 %v3826
        %v3866 = vunpack.c.l.b16 %v3827
        %v3867 = vunpack.c.l.b16 %v3828
        %v3868 = vunpack.c.l.b16 %v3829
        %v3869 = vunpack.c.l.b16 %v3830
        %v3870 = vunpack.c.l.b16 %v3831
        %v3871 = vunpack.c.l.b16 %v3832
        %v3872 = vunpack.c.l.b16 %v3833
        %v3873 = vunpack.c.l.b16 %v3834
        %v3874 = vunpack.c.l.b16 %v3835
        %v3875 = vpack.c.b16 %v3860, %v3859
        %v3876 = vpack.c.b16 %v3862, %v3861
        %v3877 = vpack.c.b16 %v3864, %v3863
        %v3878 = vpack.c.b16 %v3866, %v3865
        %v3879 = vpack.c.b16 %v3868, %v3867
        %v3880 = vpack.c.b16 %v3870, %v3869
        %v3881 = vpack.c.b16 %v3872, %v3871
        %v3882 = vpack.c.b16 %v3874, %v3873
        %3891 = vmatprep.subr.bf16.mxu0 0
        %3892 = vmatpush1.bf16.msra.mxu0 %v3882
        %3893 = vmatprep.subr.bf16.mxu0 0
        %3894 = vmatpush1.bf16.msra.mxu0 %v3881
        %3895 = vmatprep.subr.bf16.mxu0 0
        %3896 = vmatpush1.bf16.msra.mxu0 %v3880
        %3897 = vmatprep.subr.bf16.mxu0 0
        %3898 = vmatpush1.bf16.msra.mxu0 %v3879
        %3899 = vmatprep.subr.bf16.mxu0 0
        %3900 = vmatpush1.bf16.msra.mxu0 %v3878
        %3901 = vmatprep.subr.bf16.mxu0 0
        %3902 = vmatpush1.bf16.msra.mxu0 %v3877
        %3903 = vmatprep.subr.bf16.mxu0 0
        %3904 = vmatpush1.bf16.msra.mxu0 %v3876
        %3905 = vmatprep.subr.bf16.mxu0 0
        %3906 = vmatpush1.bf16.msra.mxu0 %v3875
        %3907 = vmatprep.subr.bf16.mxu0 0
        %3908 = vmatpush2.bf16.msra.mxu0 0
        %3909 = vmatprep.subr.bf16.mxu0 0
        %3910 = vmatpush2.bf16.msra.mxu0 0
        %3911 = vmatprep.subr.bf16.mxu0 0
        %3912 = vmatpush2.bf16.msra.mxu0 0
        %3913 = vmatprep.subr.bf16.mxu0 0
        %3914 = vmatpush2.bf16.msra.mxu0 0
        %3915 = vmatprep.subr.bf16.mxu0 0
        %3916 = vmatpush2.bf16.msra.mxu0 0
        %3917 = vmatprep.subr.bf16.mxu0 0
        %3918 = vmatpush2.bf16.msra.mxu0 0
        %3919 = vmatprep.subr.bf16.mxu0 0
        %3920 = vmatpush2.bf16.msra.mxu0 0
        %3921 = vmatprep.subr.bf16.mxu0 0
        %3922 = vmatpush2.bf16.msra.mxu0 0
        %3923 = vmatprep.mubr.bf16.mxu0 0
        %3924 = vmatmul.mubr.bf16.gmra.mxu0 %v3819
        %v3925 = vpop.f32.mrf.mxu0
        %v3926 = vadd.f32 %v3841, %v3925
        %v3927 = vpop.f32.mrf.mxu0
        %v3928 = vpop.f32.mrf.mxu0
        %v3929 = vpop.f32.mrf.mxu0
        %3930 = vdwg.mxu0
        %v3931 = vxor.u32 %v3926, 2147483648
        %v3932 = vmul.f32 %v3931, 1.442695
        %v3933 = vpow.pop %v3932
        %v3934 = vadd.f32 %v3933, 1.0
        %v3935 = vrcp.pop %v3934
        %v3936 = vmul.f32 1.0, %v3935
        %v3937 = vmul.f32 %v3818, %v3936
        %v3938 = vpack.c.bf16 %v3937, %v3937
        %v3939 = vld [vmem:[%s4] sm:$0xf]
        %v3940 = vld [vmem:[%s4 + $0x4] sm:$0xf]
        %v3941 = vld [vmem:[%s4 + $0x8] sm:$0xf]
        %v3942 = vld [vmem:[%s4 + $0xc] sm:$0xf]
        %v3943 = vld [vmem:[%s4 + $0x10] sm:$0xf]
        %v3944 = vld [vmem:[%s4 + $0x14] sm:$0xf]
        %v3945 = vld [vmem:[%s4 + $0x18] sm:$0xf]
        %v3946 = vld [vmem:[%s4 + $0x1c] sm:$0xf]
        %v3947 = vld [vmem:[%s4 + $0x20] sm:$0xf]
        %v3948 = vld [vmem:[%s4 + $0x24] sm:$0xf]
        %v3949 = vld [vmem:[%s4 + $0x28] sm:$0xf]
        %v3950 = vld [vmem:[%s4 + $0x2c] sm:$0xf]
        %v3951 = vld [vmem:[%s4 + $0x30] sm:$0xf]
        %v3952 = vld [vmem:[%s4 + $0x34] sm:$0xf]
        %v3953 = vld [vmem:[%s4 + $0x38] sm:$0xf]
        %v3954 = vld [vmem:[%s4 + $0x3c] sm:$0xf]
        %v3955 = vld [vmem:[%s5] sm:$0x1]
        %v3957 = vlaneseq
        %v3958 = vshrl.u32 %v3957, 7
        %v3959 = vsub.s32 0, %v3958
        %v3960 = vrot.slane %v3955, %v3959
        %v3978 = vunpack.c.l.b16 %v3939
        %v3979 = vunpack.c.l.b16 %v3940
        %v3980 = vunpack.c.l.b16 %v3941
        %v3981 = vunpack.c.l.b16 %v3942
        %v3982 = vunpack.c.l.b16 %v3943
        %v3983 = vunpack.c.l.b16 %v3944
        %v3984 = vunpack.c.l.b16 %v3945
        %v3985 = vunpack.c.l.b16 %v3946
        %v3986 = vunpack.c.l.b16 %v3947
        %v3987 = vunpack.c.l.b16 %v3948
        %v3988 = vunpack.c.l.b16 %v3949
        %v3989 = vunpack.c.l.b16 %v3950
        %v3990 = vunpack.c.l.b16 %v3951
        %v3991 = vunpack.c.l.b16 %v3952
        %v3992 = vunpack.c.l.b16 %v3953
        %v3993 = vunpack.c.l.b16 %v3954
        %v3994 = vpack.c.b16 %v3979, %v3978
        %v3995 = vpack.c.b16 %v3981, %v3980
        %v3996 = vpack.c.b16 %v3983, %v3982
        %v3997 = vpack.c.b16 %v3985, %v3984
        %v3998 = vpack.c.b16 %v3987, %v3986
        %v3999 = vpack.c.b16 %v3989, %v3988
        %v4000 = vpack.c.b16 %v3991, %v3990
        %v4001 = vpack.c.b16 %v3993, %v3992
        %4010 = vmatprep.subr.bf16.mxu0 0
        %4011 = vmatpush1.bf16.msra.mxu0 %v4001
        %4012 = vmatprep.subr.bf16.mxu0 0
        %4013 = vmatpush1.bf16.msra.mxu0 %v4000
        %4014 = vmatprep.subr.bf16.mxu0 0
        %4015 = vmatpush1.bf16.msra.mxu0 %v3999
        %4016 = vmatprep.subr.bf16.mxu0 0
        %4017 = vmatpush1.bf16.msra.mxu0 %v3998
        %4018 = vmatprep.subr.bf16.mxu0 0
        %4019 = vmatpush1.bf16.msra.mxu0 %v3997
        %4020 = vmatprep.subr.bf16.mxu0 0
        %4021 = vmatpush1.bf16.msra.mxu0 %v3996
        %4022 = vmatprep.subr.bf16.mxu0 0
        %4023 = vmatpush1.bf16.msra.mxu0 %v3995
        %4024 = vmatprep.subr.bf16.mxu0 0
        %4025 = vmatpush1.bf16.msra.mxu0 %v3994
        %4026 = vmatprep.subr.bf16.mxu0 0
        %4027 = vmatpush2.bf16.msra.mxu0 0
        %4028 = vmatprep.subr.bf16.mxu0 0
        %4029 = vmatpush2.bf16.msra.mxu0 0
        %4030 = vmatprep.subr.bf16.mxu0 0
        %4031 = vmatpush2.bf16.msra.mxu0 0
        %4032 = vmatprep.subr.bf16.mxu0 0
        %4033 = vmatpush2.bf16.msra.mxu0 0
        %4034 = vmatprep.subr.bf16.mxu0 0
        %4035 = vmatpush2.bf16.msra.mxu0 0
        %4036 = vmatprep.subr.bf16.mxu0 0
        %4037 = vmatpush2.bf16.msra.mxu0 0
        %4038 = vmatprep.subr.bf16.mxu0 0
        %4039 = vmatpush2.bf16.msra.mxu0 0
        %4040 = vmatprep.subr.bf16.mxu0 0
        %4041 = vmatpush2.bf16.msra.mxu0 0
        %4042 = vmatprep.mubr.bf16.mxu0 0
        %4043 = vmatmul.mubr.bf16.gmra.mxu0 %v3938
        %v4044 = vpop.f32.mrf.mxu0
        %v4045 = vadd.f32 %v3960, %v4044
        %v4046 = vpop.f32.mrf.mxu0
        %v4047 = vpop.f32.mrf.mxu0
        %v4048 = vpop.f32.mrf.mxu0
        %4049 = vdwg.mxu0
        %4050 = vst [vmem:[%s282] sm:$0xff] %v4045
      $region52: #{dg_classifier_forward.1} parent=43 // pred_fallthru
        _
      %p4051 = scmp.lt.s32.totalorder %s21, 1
      %s4052 = scalar_select %p4051, %s21, 1
      %s4053 = smul.addr %s4052, 8
      %s4054 = scalar_lea.vmem %s6, %s4053
      // Predicated region
      $region53: #{dg_classifier_forward.1} parent=43 // pred_check
        %p4055 = pneg %p180
      $region54: #{dg_classifier_forward.1} parent=43 // pred_check_branch
        %4057 = sbr.rel (%p4055) target = $region56
      $region55: #{dg_classifier_forward.1} parent=43 // pred_region
        _
      $region56: #{dg_classifier_forward.1} parent=43 // pred_fallthru
        _
    $region44: #{dg_classifier_forward.1} parent=5 // pred_fallthru
      _
    %p4058 = scmp.le.s32.totalorder 2, %s12
    // Predicated region
    $region57: #{dg_classifier_forward.1} parent=5 // pred_check
      %p4059 = pneg %p4058
    $region58: #{dg_classifier_forward.1} parent=5 // pred_check_branch
      %4061 = sbr.rel (%p4059) target = $region60
    $region59: #{dg_classifier_forward.1} parent=5 // pred_region
      %s4062 = ssub.s32 %s12, 2
      // Predicated region
      $region61: #{dg_classifier_forward.1} parent=59 // pred_check
        %p4063 = pneg %p186
      $region62: #{dg_classifier_forward.1} parent=59 // pred_check_branch
        %4065 = sbr.rel (%p4063) target = $region64
      $region63: #{dg_classifier_forward.1} parent=59 // pred_region
        %p4066 = scmp.lt.s32.totalorder %s23, 1
        %s4067 = scalar_select %p4066, %s23, 1
        %s4068 = smul.addr %s4067, 8
        %s4069 = scalar_lea.vmem %s6, %s4068
      $region64: #{dg_classifier_forward.1} parent=59 // pred_fallthru
        _
    $region60: #{dg_classifier_forward.1} parent=5 // pred_fallthru
      _
  $region6: #{dg_classifier_forward.1} parent=0 // loop_footer
    %s16 = sadd.s32 1, %s12
  $region7: #{dg_classifier_forward.1} parent=0 // loop_footer_branch
    %11 = sbr.rel target = $region3
  $region8: #{dg_classifier_forward.1} parent=0 // loop_exit
    _

</llo_original>
